<compile_context>
chip_gen: v6e
topology: v6e:2x2x1
jax: 0.10.0
libtpu: 0.0.40
codegen_flags: <defaults>
</compile_context>

<pallas_src>
import math
import functools
import numpy as np
import jax
import jax.numpy as jnp
from jax.experimental import pallas as pl
from jax.experimental.pallas import tpu as pltpu

LN_EPS = 1e-5  # nn.LayerNorm default


# ---------------- shared math helper (pure jnp: used inside kernel AND reference) ----------------

def _layernorm(x, w, b):
    mu = jnp.mean(x, axis=-1, keepdims=True)
    var = jnp.mean(jnp.square(x - mu), axis=-1, keepdims=True)
    return (x - mu) * jax.lax.rsqrt(var + LN_EPS) * w + b


# ---------------------------------------- Pallas kernel ----------------------------------------

def posformer_decoder_kernel(
        x_ref, mem_ref, sig_iac_ref,
        sa_w_ref, sa_b_ref, sa_ow_ref, sa_ob_ref,
        ca_qw_ref, ca_qb_ref, ca_kvw_ref, ca_kvb_ref, ca_ow_ref, ca_ob_ref,
        ln1_w_ref, ln1_b_ref, ln2_w_ref, ln2_b_ref, ln3_w_ref, ln3_b_ref,
        ff1_w_ref, ff1_b_ref, ff2_w_ref, ff2_b_ref,
        fc_w_ref, fc_b_ref,
        o_ref, x_scratch, *, num_heads):
    layer = pl.program_id(1)
    bb, T, E = x_ref.shape
    M = mem_ref.shape[1]
    H = num_heads
    Dh = E // H
    bf16 = jnp.bfloat16
    f32 = jnp.float32

    # Load the embedded input into the persistent activation scratch at the first layer only.
    @pl.when(layer == 0)
    def _():
        x_scratch[...] = x_ref[...].reshape(bb * T, E)

    x = x_scratch[...]                                   # (bb*T, E) f32, running activation
    mem = mem_ref[...].reshape(bb * M, E)                # (bb*M, E) f32

    def softmax_attn(q, k, v, Tq, Tk):
        # q: (bb*Tq, E) f32 (scale already folded into weights); k, v: (bb*Tk, E) f32.
        q3 = q.reshape(bb, Tq, E)
        k3 = k.reshape(bb, Tk, E)
        v3 = v.reshape(bb, Tk, E)
        ctxs = []
        for h in range(H):                               # static head loop
            lo = h * Dh
            qh = q3[:, :, lo:lo + Dh].astype(bf16)
            kh = k3[:, :, lo:lo + Dh].astype(bf16)
            vh = v3[:, :, lo:lo + Dh].astype(bf16)
            # batched over bb sequences: no block-diagonal masking, no redundant FLOPs
            s = jax.lax.dot_general(qh, kh, (((2,), (2,)), ((0,), (0,))),
                                    preferred_element_type=f32)          # (bb, Tq, Tk) f32
            s = s - jnp.max(s, axis=-1, keepdims=True)
            p = jnp.exp(s)
            p = p * pl.reciprocal(jnp.sum(p, axis=-1, keepdims=True), approx=True)
            ctxs.append(jax.lax.dot_general(p.astype(bf16), vh, (((2,), (1,)), ((0,), (0,))),
                                            preferred_element_type=f32))  # (bb, Tq, Dh)
        # pack heads back to full lane width -> single K=E output-projection matmul
        return jnp.concatenate(ctxs, axis=-1).reshape(bb * Tq, E)

    # ---- self-attention (single packed (E, 3E) QKV projection) ----
    qkv = jnp.dot(x.astype(bf16), sa_w_ref[0], preferred_element_type=f32) + sa_b_ref[0]
    sa_ctx = softmax_attn(qkv[:, :E], qkv[:, E:2 * E], qkv[:, 2 * E:], T, T)
    sa = jnp.dot(sa_ctx.astype(bf16), sa_ow_ref[0], preferred_element_type=f32) + sa_ob_ref[0]
    x = _layernorm(x + sa, ln1_w_ref[0], ln1_b_ref[0])

    # ---- cross-attention (packed (E, 2E) K/V projection of memory) ----
    q = jnp.dot(x.astype(bf16), ca_qw_ref[0], preferred_element_type=f32) + ca_qb_ref[0]
    kv = jnp.dot(mem.astype(bf16), ca_kvw_ref[0], preferred_element_type=f32) + ca_kvb_ref[0]
    ca_ctx = softmax_attn(q, kv[:, :E], kv[:, E:], T, M)
    ca = jnp.dot(ca_ctx.astype(bf16), ca_ow_ref[0], preferred_element_type=f32) + ca_ob_ref[0]
    x = _layernorm(x + ca, ln2_w_ref[0], ln2_b_ref[0])

    # ---- ReLU FFN ----
    hdn = jnp.maximum(
        jnp.dot(x.astype(bf16), ff1_w_ref[0], preferred_element_type=f32) + ff1_b_ref[0], 0.0)
    ff = jnp.dot(hdn.astype(bf16), ff2_w_ref[0], preferred_element_type=f32) + ff2_b_ref[0]
    x = _layernorm(x + ff, ln3_w_ref[0], ln3_b_ref[0])

    x_scratch[...] = x

    # output * sigmoid(iac_mask) (valid because V == E), then fc_out — only at the last layer.
    # TODO(synk): at realistic vocab sizes, tile this fc_out matmul over V with its own grid
    # axis (fc_w BlockSpec (E, tn), lane-blocked out_spec) instead of keeping fc_w resident.
    @pl.when(layer == pl.num_programs(1) - 1)
    def _():
        gated = x * sig_iac_ref[...]                                      # (bb*T, E) * (1, V)
        out = (jnp.dot(gated.astype(bf16), fc_w_ref[...], preferred_element_type=f32)
               + fc_b_ref[...])                                           # (bb*T, V) lane-dense
        o_ref[...] = out.reshape(bb, T, o_ref.shape[-1])


# ---------------------------------------- wrapper / glue ----------------------------------------

KERNEL_WEIGHT_NAMES = [
    "sa_w", "sa_b", "sa_ow", "sa_ob",
    "ca_qw", "ca_qb", "ca_kvw", "ca_kvb", "ca_ow", "ca_ob",
    "ln1_w", "ln1_b", "ln2_w", "ln2_b", "ln3_w", "ln3_b",
    "ff1_w", "ff1_b", "ff2_w", "ff2_b",
    "fc_w", "fc_b",
]


def posformer_decoder_forward(kparams, memory, tgt, *, num_heads, num_layers, batch_block=1):
    B, T = tgt.shape
    _, M, E = memory.shape
    F = kparams["ff1_w"].shape[-1]
    V = kparams["fc_w"].shape[-1]
    bb = batch_block
    assert B % bb == 0

    # Embedding gather, sqrt(E) scaling and positional add stay in plain JAX.
    x = jnp.take(kparams["embedding"], tgt, axis=0) * jnp.float32(math.sqrt(E))   # (B, T, E)
    # pe[:tgt.size(0)].unsqueeze(1) with batch_first=True -> indexed by BATCH (as in the PyTorch code)
    x = x + kparams["pos_encoding"][:B][:, None, :]

    def layer_spec(*dims):          # per-layer weight, streamed/prefetched along the layer axis
        return pl.BlockSpec((1,) + dims, lambda b, l: (l,) + (0,) * len(dims))

    def batch_spec(*dims):          # per-sequence-block activation
        return pl.BlockSpec((bb,) + dims, lambda b, l: (b,) + (0,) * len(dims))

    def shared_spec(*dims):         # layer- and batch-invariant
        return pl.BlockSpec(dims, lambda b, l: (0,) * len(dims))

    in_specs = [
        batch_spec(T, E),                                   # x
        batch_spec(M, E),                                   # memory
        shared_spec(1, V),                                  # sigmoid(iac)
        layer_spec(E, 3 * E), layer_spec(1, 3 * E),         # sa packed QKV w / b
        layer_spec(E, E), layer_spec(1, E),                 # sa out proj w / b
        layer_spec(E, E), layer_spec(1, E),                 # ca q w / b
        layer_spec(E, 2 * E), layer_spec(1, 2 * E),         # ca packed KV w / b
        layer_spec(E, E), layer_spec(1, E),                 # ca out proj w / b
        layer_spec(1, E), layer_spec(1, E),                 # ln1 w / b
        layer_spec(1, E), layer_spec(1, E),                 # ln2 w / b
        layer_spec(1, E), layer_spec(1, E),                 # ln3 w / b
        layer_spec(E, F), layer_spec(1, F),                 # ff1 w / b
        layer_spec(F, E), layer_spec(1, E),                 # ff2 w / b
        shared_spec(E, V), shared_spec(1, V),               # fc_out w / b
    ]
    out_spec = pl.BlockSpec((bb, T, V), lambda b, l: (b, 0, 0))

    kernel = functools.partial(posformer_decoder_kernel, num_heads=num_heads)

    out = pl.pallas_call(
        kernel,
        out_shape=jax.ShapeDtypeStruct((B, T, V), jnp.float32),
        grid_spec=pltpu.PrefetchScalarGridSpec(
            num_scalar_prefetch=0,
            grid=(B // bb, num_layers),          # (sequence blocks, layers)
            in_specs=in_specs,
            out_specs=out_spec,
            scratch_shapes=[pltpu.VMEM((bb * T, E), jnp.float32)],   # running activation
        ),
        compiler_params=pltpu.CompilerParams(
            dimension_semantics=("parallel", "arbitrary")),
    )(x, memory, kparams["sig_iac"], *[kparams[n] for n in KERNEL_WEIGHT_NAMES])
    return out


# ---------------------------------------- parameter init ----------------------------------------

def init_params(key, vocab_size, embed_dim, num_heads, num_layers, mlp_dim):
    assert vocab_size == embed_dim, \
        "PyTorch forward's `output * sigmoid(iac_mask)` only broadcasts when vocab_size == embed_dim"
    assert embed_dim % num_heads == 0
    L, E, F, V = num_layers, embed_dim, mlp_dim, vocab_size
    keys = iter(jax.random.split(key, 32))
    std = 0.02

    def w(shape):
        return (std * jax.random.normal(next(keys), shape)).astype(jnp.float32)

    params = {
        "embedding": w((V, E)),
        # canonical (in, out) attention weights; head h owns cols [h*Dh:(h+1)*Dh] of q/k/v
        # and rows [h*Dh:(h+1)*Dh] of the output projection.
        "sa_qw": w((L, E, E)), "sa_kw": w((L, E, E)), "sa_vw": w((L, E, E)),
        "sa_qb": w((L, 1, E)), "sa_kb": w((L, 1, E)), "sa_vb": w((L, 1, E)),
        "sa_ow": w((L, E, E)), "sa_ob": w((L, 1, E)),
        "ca_qw": w((L, E, E)), "ca_kw": w((L, E, E)), "ca_vw": w((L, E, E)),
        "ca_qb": w((L, 1, E)), "ca_kb": w((L, 1, E)), "ca_vb": w((L, 1, E)),
        "ca_ow": w((L, E, E)), "ca_ob": w((L, 1, E)),
        "ln1_w": jnp.ones((L, 1, E), jnp.float32), "ln1_b": jnp.zeros((L, 1, E), jnp.float32),
        "ln2_w": jnp.ones((L, 1, E), jnp.float32), "ln2_b": jnp.zeros((L, 1, E), jnp.float32),
        "ln3_w": jnp.ones((L, 1, E), jnp.float32), "ln3_b": jnp.zeros((L, 1, E), jnp.float32),
        "ff1_w": w((L, E, F)), "ff1_b": w((L, 1, F)),
        "ff2_w": w((L, F, E)), "ff2_b": w((L, 1, E)),
        "fc_w": w((E, V)), "fc_b": w((1, V)),
        "iac": jnp.zeros((1, V), jnp.float32),   # torch.zeros(1, 1, vocab_size)
    }
    # sinusoidal positional encoding (1000, E) — same formula as the PyTorch module
    position = jnp.arange(1000, dtype=jnp.float32)[:, None]
    div_term = jnp.exp(jnp.arange(0, E, 2, dtype=jnp.float32) * (-math.log(10000.0) / E))
    pe = jnp.zeros((1000, E), jnp.float32)
    pe = pe.at[:, 0::2].set(jnp.sin(position * div_term))
    pe = pe.at[:, 1::2].set(jnp.cos(position * div_term))
    params["pos_encoding"] = pe
    return params


def prepare_kernel_params(params, *, num_heads):
    """One-time (init-time) repack for the kernel: fold 1/sqrt(Dh) into Q, drop the K bias
    (softmax-invariant), pack QKV / KV weights, and cast matmul weights to bf16."""
    E = params["sa_qw"].shape[1]
    scale = jnp.float32(1.0 / math.sqrt(E // num_heads))
    bf16 = jnp.bfloat16
    zeros_b = jnp.zeros_like(params["sa_kb"])
    return {
        "embedding": params["embedding"],
        "pos_encoding": params["pos_encoding"],
        "sig_iac": jax.nn.sigmoid(params["iac"]),                         # (1, V) f32
        "sa_w": jnp.concatenate([params["sa_qw"] * scale, params["sa_kw"], params["sa_vw"]],
                                axis=-1).astype(bf16),                    # (L, E, 3E)
        "sa_b": jnp.concatenate([params["sa_qb"] * scale, zeros_b, params["sa_vb"]], axis=-1),
        "sa_ow": params["sa_ow"].astype(bf16), "sa_ob": params["sa_ob"],
        "ca_qw": (params["ca_qw"] * scale).astype(bf16),
        "ca_qb": params["ca_qb"] * scale,
        "ca_kvw": jnp.concatenate([params["ca_kw"], params["ca_vw"]], axis=-1).astype(bf16),
        "ca_kvb": jnp.concatenate([zeros_b, params["ca_vb"]], axis=-1),
        "ca_ow": params["ca_ow"].astype(bf16), "ca_ob": params["ca_ob"],
        "ln1_w": params["ln1_w"], "ln1_b": params["ln1_b"],
        "ln2_w": params["ln2_w"], "ln2_b": params["ln2_b"],
        "ln3_w": params["ln3_w"], "ln3_b": params["ln3_b"],
        "ff1_w": params["ff1_w"].astype(bf16), "ff1_b": params["ff1_b"],
        "ff2_w": params["ff2_w"].astype(bf16), "ff2_b": params["ff2_b"],
        "fc_w": params["fc_w"].astype(bf16), "fc_b": params["fc_b"],
    }


# ---------------------------------------- pure-JAX reference ----------------------------------------

def _ref_mha(xq, xkv, params, pfx, l, num_heads):
    E = xq.shape[-1]
    H, Dh = num_heads, E // num_heads
    q = xq @ params[pfx + "_qw"][l] + params[pfx + "_qb"][l]
    k = xkv @ params[pfx + "_kw"][l] + params[pfx + "_kb"][l]
    v = xkv @ params[pfx + "_vw"][l] + params[pfx + "_vb"][l]
    B, Tq, _ = q.shape
    Tk = k.shape[1]
    qh = q.reshape(B, Tq, H, Dh).transpose(0, 2, 1, 3)
    kh = k.reshape(B, Tk, H, Dh).transpose(0, 2, 1, 3)
    vh = v.reshape(B, Tk, H, Dh).transpose(0, 2, 1, 3)
    s = jnp.einsum("bhqd,bhkd->bhqk", qh, kh) / math.sqrt(Dh)
    p = jax.nn.softmax(s, axis=-1)
    ctx = jnp.einsum("bhqk,bhkd->bhqd", p, vh).transpose(0, 2, 1, 3).reshape(B, Tq, E)
    return ctx @ params[pfx + "_ow"][l] + params[pfx + "_ob"][l]


def reference_forward(params, memory, tgt, *, num_heads, num_layers):
    B, T = tgt.shape
    E = params["embedding"].shape[1]
    x = jnp.take(params["embedding"], tgt, axis=0) * jnp.float32(math.sqrt(E))
    x = x + params["pos_encoding"][:B][:, None, :]
    for l in range(num_layers):
        x = _layernorm(x + _ref_mha(x, x, params, "sa", l, num_heads),
                       params["ln1_w"][l], params["ln1_b"][l])
        x = _layernorm(x + _ref_mha(x, memory, params, "ca", l, num_heads),
                       params["ln2_w"][l], params["ln2_b"][l])
        h = jnp.maximum(x @ params["ff1_w"][l] + params["ff1_b"][l], 0.0)
        ff = h @ params["ff2_w"][l] + params["ff2_b"][l]
        x = _layernorm(x + ff, params["ln3_w"][l], params["ln3_b"][l])
    return (x * jax.nn.sigmoid(params["iac"])) @ params["fc_w"] + params["fc_b"]


# ---------------------------------------- main ----------------------------------------

if __name__ == "__main__":
    V = E = 128       # vocab_size == embed_dim (required by the forward's broadcast); lane-aligned
    H = 4             # num_heads  (head_dim = 32)
    L = 3             # num_layers
    F = 256           # mlp_dim    (multiple of 128)
    B, T, M = 2, 8, 16
    # TODO(synk): for a real benchmark, grow B*T (per-core row block) to a multiple of 128 so
    # the MXU-fill / bf16 / layer-streaming levers become visible; the demo stays tiny.

    key = jax.random.PRNGKey(0)
    pkey, mkey, tkey = jax.random.split(key, 3)
    params = init_params(pkey, V, E, H, L, F)
    kparams = prepare_kernel_params(params, num_heads=H)
    memory = jax.random.normal(mkey, (B, M, E), dtype=jnp.float32)
    tgt = jax.random.randint(tkey, (B, T), 0, V, dtype=jnp.int32)

    out = posformer_decoder_forward(kparams, memory, tgt, num_heads=H, num_layers=L,
                                    batch_block=1)
    out = jax.block_until_ready(out)

    ref = reference_forward(params, memory, tgt, num_heads=H, num_layers=L)
    # Kernel runs its matmuls in bf16 (f32 accumulation) and uses an approx softmax reciprocal,
    # so compare against the f32 reference at a bf16-appropriate tolerance.
    np.testing.assert_allclose(np.asarray(out), np.asarray(ref), rtol=1e-2, atol=1e-2)
    print("KERNEL_OK")
</pallas_src>

<mosaic_0001>
module attributes {stable_mosaic.version = 11 : i64} {
  func.func @posformer_decoder_kernel(%arg0: i32, %arg1: i32, %arg2: memref<1x8x128xf32, #tpu.memory_space<vmem>>, %arg3: memref<1x16x128xf32, #tpu.memory_space<vmem>>, %arg4: memref<1x128xf32, #tpu.memory_space<vmem>>, %arg5: memref<1x128x384xbf16, #tpu.memory_space<vmem>>, %arg6: memref<1x1x384xf32, #tpu.memory_space<vmem>>, %arg7: memref<1x128x128xbf16, #tpu.memory_space<vmem>>, %arg8: memref<1x1x128xf32, #tpu.memory_space<vmem>>, %arg9: memref<1x128x128xbf16, #tpu.memory_space<vmem>>, %arg10: memref<1x1x128xf32, #tpu.memory_space<vmem>>, %arg11: memref<1x128x256xbf16, #tpu.memory_space<vmem>>, %arg12: memref<1x1x256xf32, #tpu.memory_space<vmem>>, %arg13: memref<1x128x128xbf16, #tpu.memory_space<vmem>>, %arg14: memref<1x1x128xf32, #tpu.memory_space<vmem>>, %arg15: memref<1x1x128xf32, #tpu.memory_space<vmem>>, %arg16: memref<1x1x128xf32, #tpu.memory_space<vmem>>, %arg17: memref<1x1x128xf32, #tpu.memory_space<vmem>>, %arg18: memref<1x1x128xf32, #tpu.memory_space<vmem>>, %arg19: memref<1x1x128xf32, #tpu.memory_space<vmem>>, %arg20: memref<1x1x128xf32, #tpu.memory_space<vmem>>, %arg21: memref<1x128x256xbf16, #tpu.memory_space<vmem>>, %arg22: memref<1x1x256xf32, #tpu.memory_space<vmem>>, %arg23: memref<1x256x128xbf16, #tpu.memory_space<vmem>>, %arg24: memref<1x1x128xf32, #tpu.memory_space<vmem>>, %arg25: memref<128x128xbf16, #tpu.memory_space<vmem>>, %arg26: memref<1x128xf32, #tpu.memory_space<vmem>>, %arg27: memref<1x8x128xf32, #tpu.memory_space<vmem>>, %arg28: memref<8x128xf32, #tpu.memory_space<vmem>>) attributes {dimension_semantics = [#tpu.dimension_semantics<parallel>, #tpu.dimension_semantics<arbitrary>], iteration_bounds = array<i64: 2, 3>, scalar_prefetch = 0 : i64, scratch_operands = 1 : i64, tpu.core_type = #tpu.core_type<tc>, window_params = [{transform_indices = @transform_0, window_bounds = array<i64: 1, 8, 128>}, {transform_indices = @transform_1, window_bounds = array<i64: 1, 16, 128>}, {pipeline_mode = #tpu.pipeline_mode<synchronous>, transform_indices = @transform_2, window_bounds = array<i64: 1, 128>}, {transform_indices = @transform_3, window_bounds = array<i64: 1, 128, 384>}, {transform_indices = @transform_4, window_bounds = array<i64: 1, 1, 384>}, {transform_indices = @transform_5, window_bounds = array<i64: 1, 128, 128>}, {transform_indices = @transform_6, window_bounds = array<i64: 1, 1, 128>}, {transform_indices = @transform_7, window_bounds = array<i64: 1, 128, 128>}, {transform_indices = @transform_8, window_bounds = array<i64: 1, 1, 128>}, {transform_indices = @transform_9, window_bounds = array<i64: 1, 128, 256>}, {transform_indices = @transform_10, window_bounds = array<i64: 1, 1, 256>}, {transform_indices = @transform_11, window_bounds = array<i64: 1, 128, 128>}, {transform_indices = @transform_12, window_bounds = array<i64: 1, 1, 128>}, {transform_indices = @transform_13, window_bounds = array<i64: 1, 1, 128>}, {transform_indices = @transform_14, window_bounds = array<i64: 1, 1, 128>}, {transform_indices = @transform_15, window_bounds = array<i64: 1, 1, 128>}, {transform_indices = @transform_16, window_bounds = array<i64: 1, 1, 128>}, {transform_indices = @transform_17, window_bounds = array<i64: 1, 1, 128>}, {transform_indices = @transform_18, window_bounds = array<i64: 1, 1, 128>}, {transform_indices = @transform_19, window_bounds = array<i64: 1, 128, 256>}, {transform_indices = @transform_20, window_bounds = array<i64: 1, 1, 256>}, {transform_indices = @transform_21, window_bounds = array<i64: 1, 256, 128>}, {transform_indices = @transform_22, window_bounds = array<i64: 1, 1, 128>}, {pipeline_mode = #tpu.pipeline_mode<synchronous>, transform_indices = @transform_23, window_bounds = array<i64: 128, 128>}, {pipeline_mode = #tpu.pipeline_mode<synchronous>, transform_indices = @transform_24, window_bounds = array<i64: 1, 128>}, {transform_indices = @transform_25, window_bounds = array<i64: 1, 8, 128>}]} {
    %c0_i32 = arith.constant 0 : i32
    %0 = arith.cmpi eq, %arg1, %c0_i32 : i32
    %1 = arith.extui %0 : i1 to i32
    %c0_i32_0 = arith.constant 0 : i32
    %2 = arith.cmpi ne, %1, %c0_i32_0 : i32
    scf.if %2 {
      %c0_122 = arith.constant 0 : index
      %c0_123 = arith.constant 0 : index
      %c0_124 = arith.constant 0 : index
      %316 = vector.load %arg2[%c0_122, %c0_123, %c0_124] : memref<1x8x128xf32, #tpu.memory_space<vmem>>, vector<1x8x128xf32>
      %317 = vector.shape_cast %316 : vector<1x8x128xf32> to vector<8x128xf32>
      %c0_125 = arith.constant 0 : index
      %c0_126 = arith.constant 0 : index
      %318 = vector.load %arg28[%c0_125, %c0_126] : memref<8x128xf32, #tpu.memory_space<vmem>>, vector<8x128xf32>
      tpu.vector_store %arg28[%c0_125, %c0_126], %317 {strides = array<i32>} : memref<8x128xf32, #tpu.memory_space<vmem>>, vector<8x128xf32>,
    } else {
    }
    %c0 = arith.constant 0 : index
    %c0_1 = arith.constant 0 : index
    %3 = vector.load %arg28[%c0, %c0_1] : memref<8x128xf32, #tpu.memory_space<vmem>>, vector<8x128xf32>
    %c0_2 = arith.constant 0 : index
    %c0_3 = arith.constant 0 : index
    %c0_4 = arith.constant 0 : index
    %4 = vector.load %arg3[%c0_2, %c0_3, %c0_4] : memref<1x16x128xf32, #tpu.memory_space<vmem>>, vector<1x16x128xf32>
    %5 = vector.shape_cast %4 : vector<1x16x128xf32> to vector<16x128xf32>
    %6 = arith.truncf %3 : vector<8x128xf32> to vector<8x128xbf16>
    %c0_5 = arith.constant 0 : index
    %c0_6 = arith.constant 0 : index
    %c0_7 = arith.constant 0 : index
    %7 = vector.load %arg5[%c0_5, %c0_6, %c0_7] : memref<1x128x384xbf16, #tpu.memory_space<vmem>>, vector<1x128x384xbf16>
    %8 = vector.shape_cast %7 : vector<1x128x384xbf16> to vector<128x384xbf16>
    %cst = arith.constant dense<0.000000e+00> : vector<8x384xf32>
    %9 = tpu.matmul %6, %8, %cst {dimension_numbers = #tpu.dot_dimension_numbers<[1], [0], [0], [1], [0, 0, 1, 1], [], []>} : vector<8x128xbf16>, vector<128x384xbf16>, vector<8x384xf32> -> vector<8x384xf32>
    %c0_8 = arith.constant 0 : index
    %c0_9 = arith.constant 0 : index
    %c0_10 = arith.constant 0 : index
    %10 = vector.load %arg6[%c0_8, %c0_9, %c0_10] : memref<1x1x384xf32, #tpu.memory_space<vmem>>, vector<1x1x384xf32>
    %11 = vector.shape_cast %10 : vector<1x1x384xf32> to vector<1x384xf32>
    %12 = vector.broadcast %11 : vector<1x384xf32> to vector<8x384xf32>
    %13 = arith.addf %9, %12 : vector<8x384xf32>
    %14 = vector.extract_strided_slice %13 {offsets = [0, 0], sizes = [8, 128], strides = [1, 1]} : vector<8x384xf32> to vector<8x128xf32>
    %15 = vector.extract_strided_slice %13 {offsets = [0, 128], sizes = [8, 128], strides = [1, 1]} : vector<8x384xf32> to vector<8x128xf32>
    %16 = vector.extract_strided_slice %13 {offsets = [0, 256], sizes = [8, 128], strides = [1, 1]} : vector<8x384xf32> to vector<8x128xf32>
    %17 = vector.shape_cast %14 : vector<8x128xf32> to vector<1x8x128xf32>
    %18 = vector.shape_cast %15 : vector<8x128xf32> to vector<1x8x128xf32>
    %19 = vector.shape_cast %16 : vector<8x128xf32> to vector<1x8x128xf32>
    %20 = vector.extract_strided_slice %17 {offsets = [0, 0, 0], sizes = [1, 8, 32], strides = [1, 1, 1]} : vector<1x8x128xf32> to vector<1x8x32xf32>
    %21 = arith.truncf %20 : vector<1x8x32xf32> to vector<1x8x32xbf16>
    %22 = vector.extract_strided_slice %18 {offsets = [0, 0, 0], sizes = [1, 8, 32], strides = [1, 1, 1]} : vector<1x8x128xf32> to vector<1x8x32xf32>
    %23 = arith.truncf %22 : vector<1x8x32xf32> to vector<1x8x32xbf16>
    %24 = vector.extract_strided_slice %19 {offsets = [0, 0, 0], sizes = [1, 8, 32], strides = [1, 1, 1]} : vector<1x8x128xf32> to vector<1x8x32xf32>
    %25 = arith.truncf %24 : vector<1x8x32xf32> to vector<1x8x32xbf16>
    %cst_11 = arith.constant dense<0.000000e+00> : vector<1x8x8xf32>
    %26 = tpu.matmul %21, %23, %cst_11 {dimension_numbers = #tpu.dot_dimension_numbers<[2], [2], [1], [1], [0, 0, 0, 1, 1, 1], [0], [0]>} : vector<1x8x32xbf16>, vector<1x8x32xbf16>, vector<1x8x8xf32> -> vector<1x8x8xf32>
    %cst_12 = arith.constant dense<0xFF800000> : vector<1x8xf32>
    %27 = vector.multi_reduction <maximumf>, %26, %cst_12 [2] : vector<1x8x8xf32> to vector<1x8xf32>
    %28 = vector.shape_cast %27 : vector<1x8xf32> to vector<1x8x1xf32>
    %29 = vector.broadcast %28 : vector<1x8x1xf32> to vector<1x8x8xf32>
    %30 = arith.subf %26, %29 : vector<1x8x8xf32>
    %31 = math.exp %30 : vector<1x8x8xf32>
    %cst_13 = arith.constant dense<0.000000e+00> : vector<1x8xf32>
    %32 = vector.multi_reduction <add>, %31, %cst_13 [2] : vector<1x8x8xf32> to vector<1x8xf32>
    %33 = vector.shape_cast %32 : vector<1x8xf32> to vector<1x8x1xf32>
    %34 = tpu.reciprocal %33 {approx = true} : vector<1x8x1xf32> -> vector<1x8x1xf32>
    %35 = vector.broadcast %34 : vector<1x8x1xf32> to vector<1x8x8xf32>
    %36 = arith.mulf %31, %35 : vector<1x8x8xf32>
    %37 = arith.truncf %36 : vector<1x8x8xf32> to vector<1x8x8xbf16>
    %cst_14 = arith.constant dense<0.000000e+00> : vector<1x8x32xf32>
    %38 = tpu.matmul %37, %25, %cst_14 {dimension_numbers = #tpu.dot_dimension_numbers<[2], [1], [1], [2], [0, 0, 0, 1, 1, 2], [0], [0]>} : vector<1x8x8xbf16>, vector<1x8x32xbf16>, vector<1x8x32xf32> -> vector<1x8x32xf32>
    %39 = vector.extract_strided_slice %17 {offsets = [0, 0, 32], sizes = [1, 8, 32], strides = [1, 1, 1]} : vector<1x8x128xf32> to vector<1x8x32xf32>
    %40 = arith.truncf %39 : vector<1x8x32xf32> to vector<1x8x32xbf16>
    %41 = vector.extract_strided_slice %18 {offsets = [0, 0, 32], sizes = [1, 8, 32], strides = [1, 1, 1]} : vector<1x8x128xf32> to vector<1x8x32xf32>
    %42 = arith.truncf %41 : vector<1x8x32xf32> to vector<1x8x32xbf16>
    %43 = vector.extract_strided_slice %19 {offsets = [0, 0, 32], sizes = [1, 8, 32], strides = [1, 1, 1]} : vector<1x8x128xf32> to vector<1x8x32xf32>
    %44 = arith.truncf %43 : vector<1x8x32xf32> to vector<1x8x32xbf16>
    %cst_15 = arith.constant dense<0.000000e+00> : vector<1x8x8xf32>
    %45 = tpu.matmul %40, %42, %cst_15 {dimension_numbers = #tpu.dot_dimension_numbers<[2], [2], [1], [1], [0, 0, 0, 1, 1, 1], [0], [0]>} : vector<1x8x32xbf16>, vector<1x8x32xbf16>, vector<1x8x8xf32> -> vector<1x8x8xf32>
    %cst_16 = arith.constant dense<0xFF800000> : vector<1x8xf32>
    %46 = vector.multi_reduction <maximumf>, %45, %cst_16 [2] : vector<1x8x8xf32> to vector<1x8xf32>
    %47 = vector.shape_cast %46 : vector<1x8xf32> to vector<1x8x1xf32>
    %48 = vector.broadcast %47 : vector<1x8x1xf32> to vector<1x8x8xf32>
    %49 = arith.subf %45, %48 : vector<1x8x8xf32>
    %50 = math.exp %49 : vector<1x8x8xf32>
    %cst_17 = arith.constant dense<0.000000e+00> : vector<1x8xf32>
    %51 = vector.multi_reduction <add>, %50, %cst_17 [2] : vector<1x8x8xf32> to vector<1x8xf32>
    %52 = vector.shape_cast %51 : vector<1x8xf32> to vector<1x8x1xf32>
    %53 = tpu.reciprocal %52 {approx = true} : vector<1x8x1xf32> -> vector<1x8x1xf32>
    %54 = vector.broadcast %53 : vector<1x8x1xf32> to vector<1x8x8xf32>
    %55 = arith.mulf %50, %54 : vector<1x8x8xf32>
    %56 = arith.truncf %55 : vector<1x8x8xf32> to vector<1x8x8xbf16>
    %cst_18 = arith.constant dense<0.000000e+00> : vector<1x8x32xf32>
    %57 = tpu.matmul %56, %44, %cst_18 {dimension_numbers = #tpu.dot_dimension_numbers<[2], [1], [1], [2], [0, 0, 0, 1, 1, 2], [0], [0]>} : vector<1x8x8xbf16>, vector<1x8x32xbf16>, vector<1x8x32xf32> -> vector<1x8x32xf32>
    %58 = vector.extract_strided_slice %17 {offsets = [0, 0, 64], sizes = [1, 8, 32], strides = [1, 1, 1]} : vector<1x8x128xf32> to vector<1x8x32xf32>
    %59 = arith.truncf %58 : vector<1x8x32xf32> to vector<1x8x32xbf16>
    %60 = vector.extract_strided_slice %18 {offsets = [0, 0, 64], sizes = [1, 8, 32], strides = [1, 1, 1]} : vector<1x8x128xf32> to vector<1x8x32xf32>
    %61 = arith.truncf %60 : vector<1x8x32xf32> to vector<1x8x32xbf16>
    %62 = vector.extract_strided_slice %19 {offsets = [0, 0, 64], sizes = [1, 8, 32], strides = [1, 1, 1]} : vector<1x8x128xf32> to vector<1x8x32xf32>
    %63 = arith.truncf %62 : vector<1x8x32xf32> to vector<1x8x32xbf16>
    %cst_19 = arith.constant dense<0.000000e+00> : vector<1x8x8xf32>
    %64 = tpu.matmul %59, %61, %cst_19 {dimension_numbers = #tpu.dot_dimension_numbers<[2], [2], [1], [1], [0, 0, 0, 1, 1, 1], [0], [0]>} : vector<1x8x32xbf16>, vector<1x8x32xbf16>, vector<1x8x8xf32> -> vector<1x8x8xf32>
    %cst_20 = arith.constant dense<0xFF800000> : vector<1x8xf32>
    %65 = vector.multi_reduction <maximumf>, %64, %cst_20 [2] : vector<1x8x8xf32> to vector<1x8xf32>
    %66 = vector.shape_cast %65 : vector<1x8xf32> to vector<1x8x1xf32>
    %67 = vector.broadcast %66 : vector<1x8x1xf32> to vector<1x8x8xf32>
    %68 = arith.subf %64, %67 : vector<1x8x8xf32>
    %69 = math.exp %68 : vector<1x8x8xf32>
    %cst_21 = arith.constant dense<0.000000e+00> : vector<1x8xf32>
    %70 = vector.multi_reduction <add>, %69, %cst_21 [2] : vector<1x8x8xf32> to vector<1x8xf32>
    %71 = vector.shape_cast %70 : vector<1x8xf32> to vector<1x8x1xf32>
    %72 = tpu.reciprocal %71 {approx = true} : vector<1x8x1xf32> -> vector<1x8x1xf32>
    %73 = vector.broadcast %72 : vector<1x8x1xf32> to vector<1x8x8xf32>
    %74 = arith.mulf %69, %73 : vector<1x8x8xf32>
    %75 = arith.truncf %74 : vector<1x8x8xf32> to vector<1x8x8xbf16>
    %cst_22 = arith.constant dense<0.000000e+00> : vector<1x8x32xf32>
    %76 = tpu.matmul %75, %63, %cst_22 {dimension_numbers = #tpu.dot_dimension_numbers<[2], [1], [1], [2], [0, 0, 0, 1, 1, 2], [0], [0]>} : vector<1x8x8xbf16>, vector<1x8x32xbf16>, vector<1x8x32xf32> -> vector<1x8x32xf32>
    %77 = vector.extract_strided_slice %17 {offsets = [0, 0, 96], sizes = [1, 8, 32], strides = [1, 1, 1]} : vector<1x8x128xf32> to vector<1x8x32xf32>
    %78 = arith.truncf %77 : vector<1x8x32xf32> to vector<1x8x32xbf16>
    %79 = vector.extract_strided_slice %18 {offsets = [0, 0, 96], sizes = [1, 8, 32], strides = [1, 1, 1]} : vector<1x8x128xf32> to vector<1x8x32xf32>
    %80 = arith.truncf %79 : vector<1x8x32xf32> to vector<1x8x32xbf16>
    %81 = vector.extract_strided_slice %19 {offsets = [0, 0, 96], sizes = [1, 8, 32], strides = [1, 1, 1]} : vector<1x8x128xf32> to vector<1x8x32xf32>
    %82 = arith.truncf %81 : vector<1x8x32xf32> to vector<1x8x32xbf16>
    %cst_23 = arith.constant dense<0.000000e+00> : vector<1x8x8xf32>
    %83 = tpu.matmul %78, %80, %cst_23 {dimension_numbers = #tpu.dot_dimension_numbers<[2], [2], [1], [1], [0, 0, 0, 1, 1, 1], [0], [0]>} : vector<1x8x32xbf16>, vector<1x8x32xbf16>, vector<1x8x8xf32> -> vector<1x8x8xf32>
    %cst_24 = arith.constant dense<0xFF800000> : vector<1x8xf32>
    %84 = vector.multi_reduction <maximumf>, %83, %cst_24 [2] : vector<1x8x8xf32> to vector<1x8xf32>
    %85 = vector.shape_cast %84 : vector<1x8xf32> to vector<1x8x1xf32>
    %86 = vector.broadcast %85 : vector<1x8x1xf32> to vector<1x8x8xf32>
    %87 = arith.subf %83, %86 : vector<1x8x8xf32>
    %88 = math.exp %87 : vector<1x8x8xf32>
    %cst_25 = arith.constant dense<0.000000e+00> : vector<1x8xf32>
    %89 = vector.multi_reduction <add>, %88, %cst_25 [2] : vector<1x8x8xf32> to vector<1x8xf32>
    %90 = vector.shape_cast %89 : vector<1x8xf32> to vector<1x8x1xf32>
    %91 = tpu.reciprocal %90 {approx = true} : vector<1x8x1xf32> -> vector<1x8x1xf32>
    %92 = vector.broadcast %91 : vector<1x8x1xf32> to vector<1x8x8xf32>
    %93 = arith.mulf %88, %92 : vector<1x8x8xf32>
    %94 = arith.truncf %93 : vector<1x8x8xf32> to vector<1x8x8xbf16>
    %cst_26 = arith.constant dense<0.000000e+00> : vector<1x8x32xf32>
    %95 = tpu.matmul %94, %82, %cst_26 {dimension_numbers = #tpu.dot_dimension_numbers<[2], [1], [1], [2], [0, 0, 0, 1, 1, 2], [0], [0]>} : vector<1x8x8xbf16>, vector<1x8x32xbf16>, vector<1x8x32xf32> -> vector<1x8x32xf32>
    %96 = tpu.concatenate %38, %57, %76, %95 in 2 : vector<1x8x32xf32>, vector<1x8x32xf32>, vector<1x8x32xf32>, vector<1x8x32xf32> -> vector<1x8x128xf32>
    %97 = vector.shape_cast %96 : vector<1x8x128xf32> to vector<8x128xf32>
    %98 = arith.truncf %97 : vector<8x128xf32> to vector<8x128xbf16>
    %c0_27 = arith.constant 0 : index
    %c0_28 = arith.constant 0 : index
    %c0_29 = arith.constant 0 : index
    %99 = vector.load %arg7[%c0_27, %c0_28, %c0_29] : memref<1x128x128xbf16, #tpu.memory_space<vmem>>, vector<1x128x128xbf16>
    %100 = vector.shape_cast %99 : vector<1x128x128xbf16> to vector<128x128xbf16>
    %cst_30 = arith.constant dense<0.000000e+00> : vector<8x128xf32>
    %101 = tpu.matmul %98, %100, %cst_30 {dimension_numbers = #tpu.dot_dimension_numbers<[1], [0], [0], [1], [0, 0, 1, 1], [], []>} : vector<8x128xbf16>, vector<128x128xbf16>, vector<8x128xf32> -> vector<8x128xf32>
    %c0_31 = arith.constant 0 : index
    %c0_32 = arith.constant 0 : index
    %c0_33 = arith.constant 0 : index
    %102 = vector.load %arg8[%c0_31, %c0_32, %c0_33] : memref<1x1x128xf32, #tpu.memory_space<vmem>>, vector<1x1x128xf32>
    %103 = vector.shape_cast %102 : vector<1x1x128xf32> to vector<1x128xf32>
    %104 = vector.broadcast %103 : vector<1x128xf32> to vector<8x128xf32>
    %105 = arith.addf %101, %104 : vector<8x128xf32>
    %106 = arith.addf %3, %105 : vector<8x128xf32>
    %c0_34 = arith.constant 0 : index
    %c0_35 = arith.constant 0 : index
    %c0_36 = arith.constant 0 : index
    %107 = vector.load %arg15[%c0_34, %c0_35, %c0_36] : memref<1x1x128xf32, #tpu.memory_space<vmem>>, vector<1x1x128xf32>
    %108 = vector.shape_cast %107 : vector<1x1x128xf32> to vector<1x128xf32>
    %c0_37 = arith.constant 0 : index
    %c0_38 = arith.constant 0 : index
    %c0_39 = arith.constant 0 : index
    %109 = vector.load %arg16[%c0_37, %c0_38, %c0_39] : memref<1x1x128xf32, #tpu.memory_space<vmem>>, vector<1x1x128xf32>
    %110 = vector.shape_cast %109 : vector<1x1x128xf32> to vector<1x128xf32>
    %cst_40 = arith.constant dense<0.000000e+00> : vector<8xf32>
    %111 = vector.multi_reduction <add>, %106, %cst_40 [1] : vector<8x128xf32> to vector<8xf32>
    %112 = vector.shape_cast %111 : vector<8xf32> to vector<8x1xf32>
    %cst_41 = arith.constant 1.280000e+02 : f32
    %113 = vector.broadcast %cst_41 : f32 to vector<8x1xf32>
    %114 = arith.divf %112, %113 : vector<8x1xf32>
    %115 = vector.broadcast %114 : vector<8x1xf32> to vector<8x128xf32>
    %116 = arith.subf %106, %115 : vector<8x128xf32>
    %117 = arith.mulf %116, %116 : vector<8x128xf32>
    %cst_42 = arith.constant dense<0.000000e+00> : vector<8xf32>
    %118 = vector.multi_reduction <add>, %117, %cst_42 [1] : vector<8x128xf32> to vector<8xf32>
    %119 = vector.shape_cast %118 : vector<8xf32> to vector<8x1xf32>
    %cst_43 = arith.constant 1.280000e+02 : f32
    %120 = vector.broadcast %cst_43 : f32 to vector<8x1xf32>
    %121 = arith.divf %119, %120 : vector<8x1xf32>
    %122 = vector.broadcast %114 : vector<8x1xf32> to vector<8x128xf32>
    %123 = arith.subf %106, %122 : vector<8x128xf32>
    %cst_44 = arith.constant 9.99999974E-6 : f32
    %124 = vector.broadcast %cst_44 : f32 to vector<8x1xf32>
    %125 = arith.addf %121, %124 : vector<8x1xf32>
    %126 = math.rsqrt %125 : vector<8x1xf32>
    %127 = vector.broadcast %126 : vector<8x1xf32> to vector<8x128xf32>
    %128 = arith.mulf %123, %127 : vector<8x128xf32>
    %129 = vector.broadcast %108 : vector<1x128xf32> to vector<8x128xf32>
    %130 = arith.mulf %128, %129 : vector<8x128xf32>
    %131 = vector.broadcast %110 : vector<1x128xf32> to vector<8x128xf32>
    %132 = arith.addf %130, %131 : vector<8x128xf32>
    %133 = arith.truncf %132 : vector<8x128xf32> to vector<8x128xbf16>
    %c0_45 = arith.constant 0 : index
    %c0_46 = arith.constant 0 : index
    %c0_47 = arith.constant 0 : index
    %134 = vector.load %arg9[%c0_45, %c0_46, %c0_47] : memref<1x128x128xbf16, #tpu.memory_space<vmem>>, vector<1x128x128xbf16>
    %135 = vector.shape_cast %134 : vector<1x128x128xbf16> to vector<128x128xbf16>
    %cst_48 = arith.constant dense<0.000000e+00> : vector<8x128xf32>
    %136 = tpu.matmul %133, %135, %cst_48 {dimension_numbers = #tpu.dot_dimension_numbers<[1], [0], [0], [1], [0, 0, 1, 1], [], []>} : vector<8x128xbf16>, vector<128x128xbf16>, vector<8x128xf32> -> vector<8x128xf32>
    %c0_49 = arith.constant 0 : index
    %c0_50 = arith.constant 0 : index
    %c0_51 = arith.constant 0 : index
    %137 = vector.load %arg10[%c0_49, %c0_50, %c0_51] : memref<1x1x128xf32, #tpu.memory_space<vmem>>, vector<1x1x128xf32>
    %138 = vector.shape_cast %137 : vector<1x1x128xf32> to vector<1x128xf32>
    %139 = vector.broadcast %138 : vector<1x128xf32> to vector<8x128xf32>
    %140 = arith.addf %136, %139 : vector<8x128xf32>
    %141 = arith.truncf %5 : vector<16x128xf32> to vector<16x128xbf16>
    %c0_52 = arith.constant 0 : index
    %c0_53 = arith.constant 0 : index
    %c0_54 = arith.constant 0 : index
    %142 = vector.load %arg11[%c0_52, %c0_53, %c0_54] : memref<1x128x256xbf16, #tpu.memory_space<vmem>>, vector<1x128x256xbf16>
    %143 = vector.shape_cast %142 : vector<1x128x256xbf16> to vector<128x256xbf16>
    %cst_55 = arith.constant dense<0.000000e+00> : vector<16x256xf32>
    %144 = tpu.matmul %141, %143, %cst_55 {dimension_numbers = #tpu.dot_dimension_numbers<[1], [0], [0], [1], [0, 0, 1, 1], [], []>} : vector<16x128xbf16>, vector<128x256xbf16>, vector<16x256xf32> -> vector<16x256xf32>
    %c0_56 = arith.constant 0 : index
    %c0_57 = arith.constant 0 : index
    %c0_58 = arith.constant 0 : index
    %145 = vector.load %arg12[%c0_56, %c0_57, %c0_58] : memref<1x1x256xf32, #tpu.memory_space<vmem>>, vector<1x1x256xf32>
    %146 = vector.shape_cast %145 : vector<1x1x256xf32> to vector<1x256xf32>
    %147 = vector.broadcast %146 : vector<1x256xf32> to vector<16x256xf32>
    %148 = arith.addf %144, %147 : vector<16x256xf32>
    %149 = vector.extract_strided_slice %148 {offsets = [0, 0], sizes = [16, 128], strides = [1, 1]} : vector<16x256xf32> to vector<16x128xf32>
    %150 = vector.extract_strided_slice %148 {offsets = [0, 128], sizes = [16, 128], strides = [1, 1]} : vector<16x256xf32> to vector<16x128xf32>
    %151 = vector.shape_cast %140 : vector<8x128xf32> to vector<1x8x128xf32>
    %152 = vector.shape_cast %149 : vector<16x128xf32> to vector<1x16x128xf32>
    %153 = vector.shape_cast %150 : vector<16x128xf32> to vector<1x16x128xf32>
    %154 = vector.extract_strided_slice %151 {offsets = [0, 0, 0], sizes = [1, 8, 32], strides = [1, 1, 1]} : vector<1x8x128xf32> to vector<1x8x32xf32>
    %155 = arith.truncf %154 : vector<1x8x32xf32> to vector<1x8x32xbf16>
    %156 = vector.extract_strided_slice %152 {offsets = [0, 0, 0], sizes = [1, 16, 32], strides = [1, 1, 1]} : vector<1x16x128xf32> to vector<1x16x32xf32>
    %157 = arith.truncf %156 : vector<1x16x32xf32> to vector<1x16x32xbf16>
    %158 = vector.extract_strided_slice %153 {offsets = [0, 0, 0], sizes = [1, 16, 32], strides = [1, 1, 1]} : vector<1x16x128xf32> to vector<1x16x32xf32>
    %159 = arith.truncf %158 : vector<1x16x32xf32> to vector<1x16x32xbf16>
    %cst_59 = arith.constant dense<0.000000e+00> : vector<1x8x16xf32>
    %160 = tpu.matmul %155, %157, %cst_59 {dimension_numbers = #tpu.dot_dimension_numbers<[2], [2], [1], [1], [0, 0, 0, 1, 1, 1], [0], [0]>} : vector<1x8x32xbf16>, vector<1x16x32xbf16>, vector<1x8x16xf32> -> vector<1x8x16xf32>
    %cst_60 = arith.constant dense<0xFF800000> : vector<1x8xf32>
    %161 = vector.multi_reduction <maximumf>, %160, %cst_60 [2] : vector<1x8x16xf32> to vector<1x8xf32>
    %162 = vector.shape_cast %161 : vector<1x8xf32> to vector<1x8x1xf32>
    %163 = vector.broadcast %162 : vector<1x8x1xf32> to vector<1x8x16xf32>
    %164 = arith.subf %160, %163 : vector<1x8x16xf32>
    %165 = math.exp %164 : vector<1x8x16xf32>
    %cst_61 = arith.constant dense<0.000000e+00> : vector<1x8xf32>
    %166 = vector.multi_reduction <add>, %165, %cst_61 [2] : vector<1x8x16xf32> to vector<1x8xf32>
    %167 = vector.shape_cast %166 : vector<1x8xf32> to vector<1x8x1xf32>
    %168 = tpu.reciprocal %167 {approx = true} : vector<1x8x1xf32> -> vector<1x8x1xf32>
    %169 = vector.broadcast %168 : vector<1x8x1xf32> to vector<1x8x16xf32>
    %170 = arith.mulf %165, %169 : vector<1x8x16xf32>
    %171 = arith.truncf %170 : vector<1x8x16xf32> to vector<1x8x16xbf16>
    %cst_62 = arith.constant dense<0.000000e+00> : vector<1x8x32xf32>
    %172 = tpu.matmul %171, %159, %cst_62 {dimension_numbers = #tpu.dot_dimension_numbers<[2], [1], [1], [2], [0, 0, 0, 1, 1, 2], [0], [0]>} : vector<1x8x16xbf16>, vector<1x16x32xbf16>, vector<1x8x32xf32> -> vector<1x8x32xf32>
    %173 = vector.extract_strided_slice %151 {offsets = [0, 0, 32], sizes = [1, 8, 32], strides = [1, 1, 1]} : vector<1x8x128xf32> to vector<1x8x32xf32>
    %174 = arith.truncf %173 : vector<1x8x32xf32> to vector<1x8x32xbf16>
    %175 = vector.extract_strided_slice %152 {offsets = [0, 0, 32], sizes = [1, 16, 32], strides = [1, 1, 1]} : vector<1x16x128xf32> to vector<1x16x32xf32>
    %176 = arith.truncf %175 : vector<1x16x32xf32> to vector<1x16x32xbf16>
    %177 = vector.extract_strided_slice %153 {offsets = [0, 0, 32], sizes = [1, 16, 32], strides = [1, 1, 1]} : vector<1x16x128xf32> to vector<1x16x32xf32>
    %178 = arith.truncf %177 : vector<1x16x32xf32> to vector<1x16x32xbf16>
    %cst_63 = arith.constant dense<0.000000e+00> : vector<1x8x16xf32>
    %179 = tpu.matmul %174, %176, %cst_63 {dimension_numbers = #tpu.dot_dimension_numbers<[2], [2], [1], [1], [0, 0, 0, 1, 1, 1], [0], [0]>} : vector<1x8x32xbf16>, vector<1x16x32xbf16>, vector<1x8x16xf32> -> vector<1x8x16xf32>
    %cst_64 = arith.constant dense<0xFF800000> : vector<1x8xf32>
    %180 = vector.multi_reduction <maximumf>, %179, %cst_64 [2] : vector<1x8x16xf32> to vector<1x8xf32>
    %181 = vector.shape_cast %180 : vector<1x8xf32> to vector<1x8x1xf32>
    %182 = vector.broadcast %181 : vector<1x8x1xf32> to vector<1x8x16xf32>
    %183 = arith.subf %179, %182 : vector<1x8x16xf32>
    %184 = math.exp %183 : vector<1x8x16xf32>
    %cst_65 = arith.constant dense<0.000000e+00> : vector<1x8xf32>
    %185 = vector.multi_reduction <add>, %184, %cst_65 [2] : vector<1x8x16xf32> to vector<1x8xf32>
    %186 = vector.shape_cast %185 : vector<1x8xf32> to vector<1x8x1xf32>
    %187 = tpu.reciprocal %186 {approx = true} : vector<1x8x1xf32> -> vector<1x8x1xf32>
    %188 = vector.broadcast %187 : vector<1x8x1xf32> to vector<1x8x16xf32>
    %189 = arith.mulf %184, %188 : vector<1x8x16xf32>
    %190 = arith.truncf %189 : vector<1x8x16xf32> to vector<1x8x16xbf16>
    %cst_66 = arith.constant dense<0.000000e+00> : vector<1x8x32xf32>
    %191 = tpu.matmul %190, %178, %cst_66 {dimension_numbers = #tpu.dot_dimension_numbers<[2], [1], [1], [2], [0, 0, 0, 1, 1, 2], [0], [0]>} : vector<1x8x16xbf16>, vector<1x16x32xbf16>, vector<1x8x32xf32> -> vector<1x8x32xf32>
    %192 = vector.extract_strided_slice %151 {offsets = [0, 0, 64], sizes = [1, 8, 32], strides = [1, 1, 1]} : vector<1x8x128xf32> to vector<1x8x32xf32>
    %193 = arith.truncf %192 : vector<1x8x32xf32> to vector<1x8x32xbf16>
    %194 = vector.extract_strided_slice %152 {offsets = [0, 0, 64], sizes = [1, 16, 32], strides = [1, 1, 1]} : vector<1x16x128xf32> to vector<1x16x32xf32>
    %195 = arith.truncf %194 : vector<1x16x32xf32> to vector<1x16x32xbf16>
    %196 = vector.extract_strided_slice %153 {offsets = [0, 0, 64], sizes = [1, 16, 32], strides = [1, 1, 1]} : vector<1x16x128xf32> to vector<1x16x32xf32>
    %197 = arith.truncf %196 : vector<1x16x32xf32> to vector<1x16x32xbf16>
    %cst_67 = arith.constant dense<0.000000e+00> : vector<1x8x16xf32>
    %198 = tpu.matmul %193, %195, %cst_67 {dimension_numbers = #tpu.dot_dimension_numbers<[2], [2], [1], [1], [0, 0, 0, 1, 1, 1], [0], [0]>} : vector<1x8x32xbf16>, vector<1x16x32xbf16>, vector<1x8x16xf32> -> vector<1x8x16xf32>
    %cst_68 = arith.constant dense<0xFF800000> : vector<1x8xf32>
    %199 = vector.multi_reduction <maximumf>, %198, %cst_68 [2] : vector<1x8x16xf32> to vector<1x8xf32>
    %200 = vector.shape_cast %199 : vector<1x8xf32> to vector<1x8x1xf32>
    %201 = vector.broadcast %200 : vector<1x8x1xf32> to vector<1x8x16xf32>
    %202 = arith.subf %198, %201 : vector<1x8x16xf32>
    %203 = math.exp %202 : vector<1x8x16xf32>
    %cst_69 = arith.constant dense<0.000000e+00> : vector<1x8xf32>
    %204 = vector.multi_reduction <add>, %203, %cst_69 [2] : vector<1x8x16xf32> to vector<1x8xf32>
    %205 = vector.shape_cast %204 : vector<1x8xf32> to vector<1x8x1xf32>
    %206 = tpu.reciprocal %205 {approx = true} : vector<1x8x1xf32> -> vector<1x8x1xf32>
    %207 = vector.broadcast %206 : vector<1x8x1xf32> to vector<1x8x16xf32>
    %208 = arith.mulf %203, %207 : vector<1x8x16xf32>
    %209 = arith.truncf %208 : vector<1x8x16xf32> to vector<1x8x16xbf16>
    %cst_70 = arith.constant dense<0.000000e+00> : vector<1x8x32xf32>
    %210 = tpu.matmul %209, %197, %cst_70 {dimension_numbers = #tpu.dot_dimension_numbers<[2], [1], [1], [2], [0, 0, 0, 1, 1, 2], [0], [0]>} : vector<1x8x16xbf16>, vector<1x16x32xbf16>, vector<1x8x32xf32> -> vector<1x8x32xf32>
    %211 = vector.extract_strided_slice %151 {offsets = [0, 0, 96], sizes = [1, 8, 32], strides = [1, 1, 1]} : vector<1x8x128xf32> to vector<1x8x32xf32>
    %212 = arith.truncf %211 : vector<1x8x32xf32> to vector<1x8x32xbf16>
    %213 = vector.extract_strided_slice %152 {offsets = [0, 0, 96], sizes = [1, 16, 32], strides = [1, 1, 1]} : vector<1x16x128xf32> to vector<1x16x32xf32>
    %214 = arith.truncf %213 : vector<1x16x32xf32> to vector<1x16x32xbf16>
    %215 = vector.extract_strided_slice %153 {offsets = [0, 0, 96], sizes = [1, 16, 32], strides = [1, 1, 1]} : vector<1x16x128xf32> to vector<1x16x32xf32>
    %216 = arith.truncf %215 : vector<1x16x32xf32> to vector<1x16x32xbf16>
    %cst_71 = arith.constant dense<0.000000e+00> : vector<1x8x16xf32>
    %217 = tpu.matmul %212, %214, %cst_71 {dimension_numbers = #tpu.dot_dimension_numbers<[2], [2], [1], [1], [0, 0, 0, 1, 1, 1], [0], [0]>} : vector<1x8x32xbf16>, vector<1x16x32xbf16>, vector<1x8x16xf32> -> vector<1x8x16xf32>
    %cst_72 = arith.constant dense<0xFF800000> : vector<1x8xf32>
    %218 = vector.multi_reduction <maximumf>, %217, %cst_72 [2] : vector<1x8x16xf32> to vector<1x8xf32>
    %219 = vector.shape_cast %218 : vector<1x8xf32> to vector<1x8x1xf32>
    %220 = vector.broadcast %219 : vector<1x8x1xf32> to vector<1x8x16xf32>
    %221 = arith.subf %217, %220 : vector<1x8x16xf32>
    %222 = math.exp %221 : vector<1x8x16xf32>
    %cst_73 = arith.constant dense<0.000000e+00> : vector<1x8xf32>
    %223 = vector.multi_reduction <add>, %222, %cst_73 [2] : vector<1x8x16xf32> to vector<1x8xf32>
    %224 = vector.shape_cast %223 : vector<1x8xf32> to vector<1x8x1xf32>
    %225 = tpu.reciprocal %224 {approx = true} : vector<1x8x1xf32> -> vector<1x8x1xf32>
    %226 = vector.broadcast %225 : vector<1x8x1xf32> to vector<1x8x16xf32>
    %227 = arith.mulf %222, %226 : vector<1x8x16xf32>
    %228 = arith.truncf %227 : vector<1x8x16xf32> to vector<1x8x16xbf16>
    %cst_74 = arith.constant dense<0.000000e+00> : vector<1x8x32xf32>
    %229 = tpu.matmul %228, %216, %cst_74 {dimension_numbers = #tpu.dot_dimension_numbers<[2], [1], [1], [2], [0, 0, 0, 1, 1, 2], [0], [0]>} : vector<1x8x16xbf16>, vector<1x16x32xbf16>, vector<1x8x32xf32> -> vector<1x8x32xf32>
    %230 = tpu.concatenate %172, %191, %210, %229 in 2 : vector<1x8x32xf32>, vector<1x8x32xf32>, vector<1x8x32xf32>, vector<1x8x32xf32> -> vector<1x8x128xf32>
    %231 = vector.shape_cast %230 : vector<1x8x128xf32> to vector<8x128xf32>
    %232 = arith.truncf %231 : vector<8x128xf32> to vector<8x128xbf16>
    %c0_75 = arith.constant 0 : index
    %c0_76 = arith.constant 0 : index
    %c0_77 = arith.constant 0 : index
    %233 = vector.load %arg13[%c0_75, %c0_76, %c0_77] : memref<1x128x128xbf16, #tpu.memory_space<vmem>>, vector<1x128x128xbf16>
    %234 = vector.shape_cast %233 : vector<1x128x128xbf16> to vector<128x128xbf16>
    %cst_78 = arith.constant dense<0.000000e+00> : vector<8x128xf32>
    %235 = tpu.matmul %232, %234, %cst_78 {dimension_numbers = #tpu.dot_dimension_numbers<[1], [0], [0], [1], [0, 0, 1, 1], [], []>} : vector<8x128xbf16>, vector<128x128xbf16>, vector<8x128xf32> -> vector<8x128xf32>
    %c0_79 = arith.constant 0 : index
    %c0_80 = arith.constant 0 : index
    %c0_81 = arith.constant 0 : index
    %236 = vector.load %arg14[%c0_79, %c0_80, %c0_81] : memref<1x1x128xf32, #tpu.memory_space<vmem>>, vector<1x1x128xf32>
    %237 = vector.shape_cast %236 : vector<1x1x128xf32> to vector<1x128xf32>
    %238 = vector.broadcast %237 : vector<1x128xf32> to vector<8x128xf32>
    %239 = arith.addf %235, %238 : vector<8x128xf32>
    %240 = arith.addf %132, %239 : vector<8x128xf32>
    %c0_82 = arith.constant 0 : index
    %c0_83 = arith.constant 0 : index
    %c0_84 = arith.constant 0 : index
    %241 = vector.load %arg17[%c0_82, %c0_83, %c0_84] : memref<1x1x128xf32, #tpu.memory_space<vmem>>, vector<1x1x128xf32>
    %242 = vector.shape_cast %241 : vector<1x1x128xf32> to vector<1x128xf32>
    %c0_85 = arith.constant 0 : index
    %c0_86 = arith.constant 0 : index
    %c0_87 = arith.constant 0 : index
    %243 = vector.load %arg18[%c0_85, %c0_86, %c0_87] : memref<1x1x128xf32, #tpu.memory_space<vmem>>, vector<1x1x128xf32>
    %244 = vector.shape_cast %243 : vector<1x1x128xf32> to vector<1x128xf32>
    %cst_88 = arith.constant dense<0.000000e+00> : vector<8xf32>
    %245 = vector.multi_reduction <add>, %240, %cst_88 [1] : vector<8x128xf32> to vector<8xf32>
    %246 = vector.shape_cast %245 : vector<8xf32> to vector<8x1xf32>
    %cst_89 = arith.constant 1.280000e+02 : f32
    %247 = vector.broadcast %cst_89 : f32 to vector<8x1xf32>
    %248 = arith.divf %246, %247 : vector<8x1xf32>
    %249 = vector.broadcast %248 : vector<8x1xf32> to vector<8x128xf32>
    %250 = arith.subf %240, %249 : vector<8x128xf32>
    %251 = arith.mulf %250, %250 : vector<8x128xf32>
    %cst_90 = arith.constant dense<0.000000e+00> : vector<8xf32>
    %252 = vector.multi_reduction <add>, %251, %cst_90 [1] : vector<8x128xf32> to vector<8xf32>
    %253 = vector.shape_cast %252 : vector<8xf32> to vector<8x1xf32>
    %cst_91 = arith.constant 1.280000e+02 : f32
    %254 = vector.broadcast %cst_91 : f32 to vector<8x1xf32>
    %255 = arith.divf %253, %254 : vector<8x1xf32>
    %256 = vector.broadcast %248 : vector<8x1xf32> to vector<8x128xf32>
    %257 = arith.subf %240, %256 : vector<8x128xf32>
    %cst_92 = arith.constant 9.99999974E-6 : f32
    %258 = vector.broadcast %cst_92 : f32 to vector<8x1xf32>
    %259 = arith.addf %255, %258 : vector<8x1xf32>
    %260 = math.rsqrt %259 : vector<8x1xf32>
    %261 = vector.broadcast %260 : vector<8x1xf32> to vector<8x128xf32>
    %262 = arith.mulf %257, %261 : vector<8x128xf32>
    %263 = vector.broadcast %242 : vector<1x128xf32> to vector<8x128xf32>
    %264 = arith.mulf %262, %263 : vector<8x128xf32>
    %265 = vector.broadcast %244 : vector<1x128xf32> to vector<8x128xf32>
    %266 = arith.addf %264, %265 : vector<8x128xf32>
    %267 = arith.truncf %266 : vector<8x128xf32> to vector<8x128xbf16>
    %c0_93 = arith.constant 0 : index
    %c0_94 = arith.constant 0 : index
    %c0_95 = arith.constant 0 : index
    %268 = vector.load %arg21[%c0_93, %c0_94, %c0_95] : memref<1x128x256xbf16, #tpu.memory_space<vmem>>, vector<1x128x256xbf16>
    %269 = vector.shape_cast %268 : vector<1x128x256xbf16> to vector<128x256xbf16>
    %cst_96 = arith.constant dense<0.000000e+00> : vector<8x256xf32>
    %270 = tpu.matmul %267, %269, %cst_96 {dimension_numbers = #tpu.dot_dimension_numbers<[1], [0], [0], [1], [0, 0, 1, 1], [], []>} : vector<8x128xbf16>, vector<128x256xbf16>, vector<8x256xf32> -> vector<8x256xf32>
    %c0_97 = arith.constant 0 : index
    %c0_98 = arith.constant 0 : index
    %c0_99 = arith.constant 0 : index
    %271 = vector.load %arg22[%c0_97, %c0_98, %c0_99] : memref<1x1x256xf32, #tpu.memory_space<vmem>>, vector<1x1x256xf32>
    %272 = vector.shape_cast %271 : vector<1x1x256xf32> to vector<1x256xf32>
    %273 = vector.broadcast %272 : vector<1x256xf32> to vector<8x256xf32>
    %274 = arith.addf %270, %273 : vector<8x256xf32>
    %cst_100 = arith.constant 0.000000e+00 : f32
    %275 = vector.broadcast %cst_100 : f32 to vector<8x256xf32>
    %276 = arith.maximumf %274, %275 : vector<8x256xf32>
    %277 = arith.truncf %276 : vector<8x256xf32> to vector<8x256xbf16>
    %c0_101 = arith.constant 0 : index
    %c0_102 = arith.constant 0 : index
    %c0_103 = arith.constant 0 : index
    %278 = vector.load %arg23[%c0_101, %c0_102, %c0_103] : memref<1x256x128xbf16, #tpu.memory_space<vmem>>, vector<1x256x128xbf16>
    %279 = vector.shape_cast %278 : vector<1x256x128xbf16> to vector<256x128xbf16>
    %cst_104 = arith.constant dense<0.000000e+00> : vector<8x128xf32>
    %280 = tpu.matmul %277, %279, %cst_104 {dimension_numbers = #tpu.dot_dimension_numbers<[1], [0], [0], [1], [0, 0, 1, 1], [], []>} : vector<8x256xbf16>, vector<256x128xbf16>, vector<8x128xf32> -> vector<8x128xf32>
    %c0_105 = arith.constant 0 : index
    %c0_106 = arith.constant 0 : index
    %c0_107 = arith.constant 0 : index
    %281 = vector.load %arg24[%c0_105, %c0_106, %c0_107] : memref<1x1x128xf32, #tpu.memory_space<vmem>>, vector<1x1x128xf32>
    %282 = vector.shape_cast %281 : vector<1x1x128xf32> to vector<1x128xf32>
    %283 = vector.broadcast %282 : vector<1x128xf32> to vector<8x128xf32>
    %284 = arith.addf %280, %283 : vector<8x128xf32>
    %285 = arith.addf %266, %284 : vector<8x128xf32>
    %c0_108 = arith.constant 0 : index
    %c0_109 = arith.constant 0 : index
    %c0_110 = arith.constant 0 : index
    %286 = vector.load %arg19[%c0_108, %c0_109, %c0_110] : memref<1x1x128xf32, #tpu.memory_space<vmem>>, vector<1x1x128xf32>
    %287 = vector.shape_cast %286 : vector<1x1x128xf32> to vector<1x128xf32>
    %c0_111 = arith.constant 0 : index
    %c0_112 = arith.constant 0 : index
    %c0_113 = arith.constant 0 : index
    %288 = vector.load %arg20[%c0_111, %c0_112, %c0_113] : memref<1x1x128xf32, #tpu.memory_space<vmem>>, vector<1x1x128xf32>
    %289 = vector.shape_cast %288 : vector<1x1x128xf32> to vector<1x128xf32>
    %cst_114 = arith.constant dense<0.000000e+00> : vector<8xf32>
    %290 = vector.multi_reduction <add>, %285, %cst_114 [1] : vector<8x128xf32> to vector<8xf32>
    %291 = vector.shape_cast %290 : vector<8xf32> to vector<8x1xf32>
    %cst_115 = arith.constant 1.280000e+02 : f32
    %292 = vector.broadcast %cst_115 : f32 to vector<8x1xf32>
    %293 = arith.divf %291, %292 : vector<8x1xf32>
    %294 = vector.broadcast %293 : vector<8x1xf32> to vector<8x128xf32>
    %295 = arith.subf %285, %294 : vector<8x128xf32>
    %296 = arith.mulf %295, %295 : vector<8x128xf32>
    %cst_116 = arith.constant dense<0.000000e+00> : vector<8xf32>
    %297 = vector.multi_reduction <add>, %296, %cst_116 [1] : vector<8x128xf32> to vector<8xf32>
    %298 = vector.shape_cast %297 : vector<8xf32> to vector<8x1xf32>
    %cst_117 = arith.constant 1.280000e+02 : f32
    %299 = vector.broadcast %cst_117 : f32 to vector<8x1xf32>
    %300 = arith.divf %298, %299 : vector<8x1xf32>
    %301 = vector.broadcast %293 : vector<8x1xf32> to vector<8x128xf32>
    %302 = arith.subf %285, %301 : vector<8x128xf32>
    %cst_118 = arith.constant 9.99999974E-6 : f32
    %303 = vector.broadcast %cst_118 : f32 to vector<8x1xf32>
    %304 = arith.addf %300, %303 : vector<8x1xf32>
    %305 = math.rsqrt %304 : vector<8x1xf32>
    %306 = vector.broadcast %305 : vector<8x1xf32> to vector<8x128xf32>
    %307 = arith.mulf %302, %306 : vector<8x128xf32>
    %308 = vector.broadcast %287 : vector<1x128xf32> to vector<8x128xf32>
    %309 = arith.mulf %307, %308 : vector<8x128xf32>
    %310 = vector.broadcast %289 : vector<1x128xf32> to vector<8x128xf32>
    %311 = arith.addf %309, %310 : vector<8x128xf32>
    %c0_119 = arith.constant 0 : index
    %c0_120 = arith.constant 0 : index
    %312 = vector.load %arg28[%c0_119, %c0_120] : memref<8x128xf32, #tpu.memory_space<vmem>>, vector<8x128xf32>
    tpu.vector_store %arg28[%c0_119, %c0_120], %311 {strides = array<i32>} : memref<8x128xf32, #tpu.memory_space<vmem>>, vector<8x128xf32>,
    %c2_i32 = arith.constant 2 : i32
    %313 = arith.cmpi eq, %arg1, %c2_i32 : i32
    %314 = arith.extui %313 : i1 to i32
    %c0_i32_121 = arith.constant 0 : i32
    %315 = arith.cmpi ne, %314, %c0_i32_121 : i32
    scf.if %315 {
      %c0_122 = arith.constant 0 : index
      %c0_123 = arith.constant 0 : index
      %316 = vector.load %arg4[%c0_122, %c0_123] : memref<1x128xf32, #tpu.memory_space<vmem>>, vector<1x128xf32>
      %317 = vector.broadcast %316 : vector<1x128xf32> to vector<8x128xf32>
      %318 = arith.mulf %311, %317 : vector<8x128xf32>
      %319 = arith.truncf %318 : vector<8x128xf32> to vector<8x128xbf16>
      %c0_124 = arith.constant 0 : index
      %c0_125 = arith.constant 0 : index
      %320 = vector.load %arg25[%c0_124, %c0_125] : memref<128x128xbf16, #tpu.memory_space<vmem>>, vector<128x128xbf16>
      %cst_126 = arith.constant dense<0.000000e+00> : vector<8x128xf32>
      %321 = tpu.matmul %319, %320, %cst_126 {dimension_numbers = #tpu.dot_dimension_numbers<[1], [0], [0], [1], [0, 0, 1, 1], [], []>} : vector<8x128xbf16>, vector<128x128xbf16>, vector<8x128xf32> -> vector<8x128xf32>
      %c0_127 = arith.constant 0 : index
      %c0_128 = arith.constant 0 : index
      %322 = vector.load %arg26[%c0_127, %c0_128] : memref<1x128xf32, #tpu.memory_space<vmem>>, vector<1x128xf32>
      %323 = vector.broadcast %322 : vector<1x128xf32> to vector<8x128xf32>
      %324 = arith.addf %321, %323 : vector<8x128xf32>
      %325 = vector.shape_cast %324 : vector<8x128xf32> to vector<1x8x128xf32>
      %c0_129 = arith.constant 0 : index
      %c0_130 = arith.constant 0 : index
      %c0_131 = arith.constant 0 : index
      %326 = vector.load %arg27[%c0_129, %c0_130, %c0_131] : memref<1x8x128xf32, #tpu.memory_space<vmem>>, vector<1x8x128xf32>
      tpu.vector_store %arg27[%c0_129, %c0_130, %c0_131], %325 {strides = array<i32>} : memref<1x8x128xf32, #tpu.memory_space<vmem>>, vector<1x8x128xf32>,
    } else {
    }
    return
  }
  func.func @transform_0(%arg0: i32, %arg1: i32) -> (i32, i32, i32) {
    %c0_i32 = arith.constant 0 : i32
    %c0_i32_0 = arith.constant 0 : i32
    %c0_i32_1 = arith.constant 0 : i32
    return %arg0, %c0_i32, %c0_i32_0 : i32, i32, i32
  }
  func.func @transform_1(%arg0: i32, %arg1: i32) -> (i32, i32, i32) {
    %c0_i32 = arith.constant 0 : i32
    %c0_i32_0 = arith.constant 0 : i32
    %c0_i32_1 = arith.constant 0 : i32
    return %arg0, %c0_i32, %c0_i32_0 : i32, i32, i32
  }
  func.func @transform_2(%arg0: i32, %arg1: i32) -> (i32, i32) {
    %c0_i32 = arith.constant 0 : i32
    %c0_i32_0 = arith.constant 0 : i32
    %c0_i32_1 = arith.constant 0 : i32
    return %c0_i32, %c0_i32_0 : i32, i32
  }
  func.func @transform_3(%arg0: i32, %arg1: i32) -> (i32, i32, i32) {
    %c0_i32 = arith.constant 0 : i32
    %c0_i32_0 = arith.constant 0 : i32
    %c0_i32_1 = arith.constant 0 : i32
    return %arg1, %c0_i32, %c0_i32_0 : i32, i32, i32
  }
  func.func @transform_4(%arg0: i32, %arg1: i32) -> (i32, i32, i32) {
    %c0_i32 = arith.constant 0 : i32
    %c0_i32_0 = arith.constant 0 : i32
    %c0_i32_1 = arith.constant 0 : i32
    return %arg1, %c0_i32, %c0_i32_0 : i32, i32, i32
  }
  func.func @transform_5(%arg0: i32, %arg1: i32) -> (i32, i32, i32) {
    %c0_i32 = arith.constant 0 : i32
    %c0_i32_0 = arith.constant 0 : i32
    %c0_i32_1 = arith.constant 0 : i32
    return %arg1, %c0_i32, %c0_i32_0 : i32, i32, i32
  }
  func.func @transform_6(%arg0: i32, %arg1: i32) -> (i32, i32, i32) {
    %c0_i32 = arith.constant 0 : i32
    %c0_i32_0 = arith.constant 0 : i32
    %c0_i32_1 = arith.constant 0 : i32
    return %arg1, %c0_i32, %c0_i32_0 : i32, i32, i32
  }
  func.func @transform_7(%arg0: i32, %arg1: i32) -> (i32, i32, i32) {
    %c0_i32 = arith.constant 0 : i32
    %c0_i32_0 = arith.constant 0 : i32
    %c0_i32_1 = arith.constant 0 : i32
    return %arg1, %c0_i32, %c0_i32_0 : i32, i32, i32
  }
  func.func @transform_8(%arg0: i32, %arg1: i32) -> (i32, i32, i32) {
    %c0_i32 = arith.constant 0 : i32
    %c0_i32_0 = arith.constant 0 : i32
    %c0_i32_1 = arith.constant 0 : i32
    return %arg1, %c0_i32, %c0_i32_0 : i32, i32, i32
  }
  func.func @transform_9(%arg0: i32, %arg1: i32) -> (i32, i32, i32) {
    %c0_i32 = arith.constant 0 : i32
    %c0_i32_0 = arith.constant 0 : i32
    %c0_i32_1 = arith.constant 0 : i32
    return %arg1, %c0_i32, %c0_i32_0 : i32, i32, i32
  }
  func.func @transform_10(%arg0: i32, %arg1: i32) -> (i32, i32, i32) {
    %c0_i32 = arith.constant 0 : i32
    %c0_i32_0 = arith.constant 0 : i32
    %c0_i32_1 = arith.constant 0 : i32
    return %arg1, %c0_i32, %c0_i32_0 : i32, i32, i32
  }
  func.func @transform_11(%arg0: i32, %arg1: i32) -> (i32, i32, i32) {
    %c0_i32 = arith.constant 0 : i32
    %c0_i32_0 = arith.constant 0 : i32
    %c0_i32_1 = arith.constant 0 : i32
    return %arg1, %c0_i32, %c0_i32_0 : i32, i32, i32
  }
  func.func @transform_12(%arg0: i32, %arg1: i32) -> (i32, i32, i32) {
    %c0_i32 = arith.constant 0 : i32
    %c0_i32_0 = arith.constant 0 : i32
    %c0_i32_1 = arith.constant 0 : i32
    return %arg1, %c0_i32, %c0_i32_0 : i32, i32, i32
  }
  func.func @transform_13(%arg0: i32, %arg1: i32) -> (i32, i32, i32) {
    %c0_i32 = arith.constant 0 : i32
    %c0_i32_0 = arith.constant 0 : i32
    %c0_i32_1 = arith.constant 0 : i32
    return %arg1, %c0_i32, %c0_i32_0 : i32, i32, i32
  }
  func.func @transform_14(%arg0: i32, %arg1: i32) -> (i32, i32, i32) {
    %c0_i32 = arith.constant 0 : i32
    %c0_i32_0 = arith.constant 0 : i32
    %c0_i32_1 = arith.constant 0 : i32
    return %arg1, %c0_i32, %c0_i32_0 : i32, i32, i32
  }
  func.func @transform_15(%arg0: i32, %arg1: i32) -> (i32, i32, i32) {
    %c0_i32 = arith.constant 0 : i32
    %c0_i32_0 = arith.constant 0 : i32
    %c0_i32_1 = arith.constant 0 : i32
    return %arg1, %c0_i32, %c0_i32_0 : i32, i32, i32
  }
  func.func @transform_16(%arg0: i32, %arg1: i32) -> (i32, i32, i32) {
    %c0_i32 = arith.constant 0 : i32
    %c0_i32_0 = arith.constant 0 : i32
    %c0_i32_1 = arith.constant 0 : i32
    return %arg1, %c0_i32, %c0_i32_0 : i32, i32, i32
  }
  func.func @transform_17(%arg0: i32, %arg1: i32) -> (i32, i32, i32) {
    %c0_i32 = arith.constant 0 : i32
    %c0_i32_0 = arith.constant 0 : i32
    %c0_i32_1 = arith.constant 0 : i32
    return %arg1, %c0_i32, %c0_i32_0 : i32, i32, i32
  }
  func.func @transform_18(%arg0: i32, %arg1: i32) -> (i32, i32, i32) {
    %c0_i32 = arith.constant 0 : i32
    %c0_i32_0 = arith.constant 0 : i32
    %c0_i32_1 = arith.constant 0 : i32
    return %arg1, %c0_i32, %c0_i32_0 : i32, i32, i32
  }
  func.func @transform_19(%arg0: i32, %arg1: i32) -> (i32, i32, i32) {
    %c0_i32 = arith.constant 0 : i32
    %c0_i32_0 = arith.constant 0 : i32
    %c0_i32_1 = arith.constant 0 : i32
    return %arg1, %c0_i32, %c0_i32_0 : i32, i32, i32
  }
  func.func @transform_20(%arg0: i32, %arg1: i32) -> (i32, i32, i32) {
    %c0_i32 = arith.constant 0 : i32
    %c0_i32_0 = arith.constant 0 : i32
    %c0_i32_1 = arith.constant 0 : i32
    return %arg1, %c0_i32, %c0_i32_0 : i32, i32, i32
  }
  func.func @transform_21(%arg0: i32, %arg1: i32) -> (i32, i32, i32) {
    %c0_i32 = arith.constant 0 : i32
    %c0_i32_0 = arith.constant 0 : i32
    %c0_i32_1 = arith.constant 0 : i32
    return %arg1, %c0_i32, %c0_i32_0 : i32, i32, i32
  }
  func.func @transform_22(%arg0: i32, %arg1: i32) -> (i32, i32, i32) {
    %c0_i32 = arith.constant 0 : i32
    %c0_i32_0 = arith.constant 0 : i32
    %c0_i32_1 = arith.constant 0 : i32
    return %arg1, %c0_i32, %c0_i32_0 : i32, i32, i32
  }
  func.func @transform_23(%arg0: i32, %arg1: i32) -> (i32, i32) {
    %c0_i32 = arith.constant 0 : i32
    %c0_i32_0 = arith.constant 0 : i32
    %c0_i32_1 = arith.constant 0 : i32
    return %c0_i32, %c0_i32_0 : i32, i32
  }
  func.func @transform_24(%arg0: i32, %arg1: i32) -> (i32, i32) {
    %c0_i32 = arith.constant 0 : i32
    %c0_i32_0 = arith.constant 0 : i32
    %c0_i32_1 = arith.constant 0 : i32
    return %c0_i32, %c0_i32_0 : i32, i32
  }
  func.func @transform_25(%arg0: i32, %arg1: i32) -> (i32, i32, i32) {
    %c0_i32 = arith.constant 0 : i32
    %c0_i32_0 = arith.constant 0 : i32
    %c0_i32_1 = arith.constant 0 : i32
    return %arg0, %c0_i32, %c0_i32_0 : i32, i32, i32
  }
}

</mosaic_0001>

<llo_original>
// kernel: tpu_custom_call.1
$region0: #{tpu_custom_call.1}
  #allocation0 [shape = 'u32[]', space=smem, size = 0x4, offset = 0x4, fixed_abs, tag = 'smem constant byte address 0x4 - core index']
  #allocation1 [shape = 'u32[144,128]{1,0:T(1,128)}', space=vmem, size = 0x12000, scoped, tag = 'internal scratch']
  #allocation2 [shape = 'f32[8,128]{1,0:T(8,128)}', space=vmem, size = 0x1000, scoped, tag = 'scratch operand']
  %s0 = inlined_call_operand.hbm [shape: f32[2,8,128], index: 0, kind: input, shape index: {}]
  %s1 = inlined_call_operand.hbm [shape: f32[2,16,128], index: 1, kind: input, shape index: {}]
  %s2 = inlined_call_operand.hbm [shape: f32[1,128], index: 2, kind: input, shape index: {}]
  %s3 = inlined_call_operand.hbm [shape: bf16[3,128,384], index: 3, kind: input, shape index: {}]
  %s4 = inlined_call_operand.hbm [shape: f32[3,1,384], index: 4, kind: input, shape index: {}]
  %s5 = inlined_call_operand.hbm [shape: bf16[3,128,128], index: 5, kind: input, shape index: {}]
  %s6 = inlined_call_operand.hbm [shape: f32[3,1,128], index: 6, kind: input, shape index: {}]
  %s7 = inlined_call_operand.hbm [shape: bf16[3,128,128], index: 7, kind: input, shape index: {}]
  %s8 = inlined_call_operand.hbm [shape: f32[3,1,128], index: 8, kind: input, shape index: {}]
  %s9 = inlined_call_operand.hbm [shape: bf16[3,128,256], index: 9, kind: input, shape index: {}]
  %s10 = inlined_call_operand.vmem [shape: f32[3,1,256], index: 10, kind: input, shape index: {}]
  %s11 = inlined_call_operand.hbm [shape: bf16[3,128,128], index: 11, kind: input, shape index: {}]
  %s12 = inlined_call_operand.vmem [shape: f32[3,1,128], index: 12, kind: input, shape index: {}]
  %s13 = inlined_call_operand.vmem [shape: f32[3,1,128], index: 13, kind: input, shape index: {}]
  %s14 = inlined_call_operand.vmem [shape: f32[3,1,128], index: 14, kind: input, shape index: {}]
  %s15 = inlined_call_operand.vmem [shape: f32[3,1,128], index: 15, kind: input, shape index: {}]
  %s16 = inlined_call_operand.vmem [shape: f32[3,1,128], index: 16, kind: input, shape index: {}]
  %s17 = inlined_call_operand.vmem [shape: f32[3,1,128], index: 17, kind: input, shape index: {}]
  %s18 = inlined_call_operand.hbm [shape: f32[3,1,128], index: 18, kind: input, shape index: {}]
  %s19 = inlined_call_operand.hbm [shape: bf16[3,128,256], index: 19, kind: input, shape index: {}]
  %s20 = inlined_call_operand.vmem [shape: f32[3,1,256], index: 20, kind: input, shape index: {}]
  %s21 = inlined_call_operand.hbm [shape: bf16[3,256,128], index: 21, kind: input, shape index: {}]
  %s22 = inlined_call_operand.vmem [shape: f32[3,1,128], index: 22, kind: input, shape index: {}]
  %s23 = inlined_call_operand.hbm [shape: bf16[128,128], index: 23, kind: input, shape index: {}]
  %s24 = inlined_call_operand.vmem [shape: f32[1,128], index: 24, kind: input, shape index: {}]
  %s25 = inlined_call_operand.hbm [shape: f32[2,8,128], index: 25, kind: output, shape index: {}]
  %s26 = sld [smem:[#allocation0]]
  $region201: #{tpu_custom_call.1} parent=0
    _
  %s28 = ssub.s32 1, %s26
  %s29 = scalar_select 0, %s28, %s26
  $region1: #{tpu_custom_call.1} parent=0
    #allocation3 [shape = 'u8[8192]{0}', space=vmem, size = 0x2000, scoped, tag = 'input window, operand 0']
    #allocation4 [shape = 's32[2]{0}', space=sflag, size = 0x8, scoped, tag = 'scoped memory for tpu_custom_call.1']
    #allocation5 [shape = 's32[2]{0}', space=sflag, size = 0x8, scoped, tag = 'scoped memory for tpu_custom_call.1']
    #allocation6 [shape = 'u8[16384]{0}', space=vmem, size = 0x4000, scoped, tag = 'input window, operand 1']
    #allocation7 [shape = 's32[2]{0}', space=sflag, size = 0x8, scoped, tag = 'scoped memory for tpu_custom_call.1']
    #allocation8 [shape = 'u8[512]{0}', space=vmem, size = 0x400, scoped, tag = 'input window, operand 2, single buffered']
    #allocation9 [shape = 'u8[196608]{0}', space=vmem, size = 0x30000, scoped, tag = 'input window, operand 3']
    #allocation10 [shape = 's32[2]{0}', space=sflag, size = 0x8, scoped, tag = 'scoped memory for tpu_custom_call.1']
    #allocation11 [shape = 'u8[3072]{0}', space=vmem, size = 0xc00, scoped, tag = 'input window, operand 4']
    #allocation12 [shape = 'u8[65536]{0}', space=vmem, size = 0x10000, scoped, tag = 'input window, operand 5']
    #allocation13 [shape = 's32[2]{0}', space=sflag, size = 0x8, scoped, tag = 'scoped memory for tpu_custom_call.1']
    #allocation14 [shape = 'u8[1024]{0}', space=vmem, size = 0x400, scoped, tag = 'input window, operand 6']
    #allocation15 [shape = 'u8[65536]{0}', space=vmem, size = 0x10000, scoped, tag = 'input window, operand 7']
    #allocation16 [shape = 's32[2]{0}', space=sflag, size = 0x8, scoped, tag = 'scoped memory for tpu_custom_call.1']
    #allocation17 [shape = 'u8[1024]{0}', space=vmem, size = 0x400, scoped, tag = 'input window, operand 8']
    #allocation18 [shape = 'u8[131072]{0}', space=vmem, size = 0x20000, scoped, tag = 'input window, operand 9']
    #allocation19 [shape = 's32[2]{0}', space=sflag, size = 0x8, scoped, tag = 'scoped memory for tpu_custom_call.1']
    #allocation20 [shape = 'u8[65536]{0}', space=vmem, size = 0x10000, scoped, tag = 'input window, operand 11']
    #allocation21 [shape = 'u8[1024]{0}', space=vmem, size = 0x400, scoped, tag = 'input window, operand 18']
    #allocation22 [shape = 's32[2]{0}', space=sflag, size = 0x8, scoped, tag = 'scoped memory for tpu_custom_call.1']
    #allocation23 [shape = 'u8[131072]{0}', space=vmem, size = 0x20000, scoped, tag = 'input window, operand 19']
    #allocation24 [shape = 'u8[131072]{0}', space=vmem, size = 0x20000, scoped, tag = 'input window, operand 21']
    #allocation25 [shape = 's32[2]{0}', space=sflag, size = 0x8, scoped, tag = 'scoped memory for tpu_custom_call.1']
    #allocation26 [shape = 'u8[32768]{0}', space=vmem, size = 0x8000, scoped, tag = 'input window, operand 23, single buffered']
    #allocation27 [shape = 'u8[8192]{0}', space=vmem, size = 0x2000, scoped, tag = 'output window, operand 0']
    %30 = vsyncpa [#allocation4], 0
    %s31 = scalar_lea.sflag [#allocation4], 1
    %32 = vsyncpa %s31, 0
    %33 = vsyncpa [#allocation7], 0
    %s34 = scalar_lea.sflag [#allocation7], 1
    %35 = vsyncpa %s34, 0
    %36 = vsyncpa [#allocation10], 0
    %s37 = scalar_lea.sflag [#allocation10], 1
    %38 = vsyncpa %s37, 0
    %39 = vsyncpa [#allocation13], 0
    %s40 = scalar_lea.sflag [#allocation13], 1
    %41 = vsyncpa %s40, 0
    %42 = vsyncpa [#allocation16], 0
    %s43 = scalar_lea.sflag [#allocation16], 1
    %44 = vsyncpa %s43, 0
    %45 = vsyncpa [#allocation19], 0
    %s46 = scalar_lea.sflag [#allocation19], 1
    %47 = vsyncpa %s46, 0
    %48 = vsyncpa [#allocation22], 0
    %s49 = scalar_lea.sflag [#allocation22], 1
    %50 = vsyncpa %s49, 0
    %51 = vsyncpa [#allocation25], 0
    %s52 = scalar_lea.sflag [#allocation25], 1
    %53 = vsyncpa %s52, 0
    %54 = vsyncpa [#allocation5], 0
    %s55 = scalar_lea.sflag [#allocation5], 1
    %56 = vsyncpa %s55, 0
    loop: start=0, step=1, limit=8
    $region2: #{tpu_custom_call.1} parent=1 // loop_pre_header
      _
    $region3: #{tpu_custom_call.1} parent=1 // loop_header
      %s58 = sphi 0, %s62
      %p59 = scmp.ge.s32.totalorder %s58, 8
      %s65 = sphi 0, %s77
      %s66 = sphi 0, %s73
      %s67 = sphi 0, %s65
      %s68 = sphi 0, %s66
      %s69 = sphi 0, %s67
      %s70 = sphi 0, %s68
      %s80 = sphi 0, %s82
      %s83 = sphi 0, %s80
      %s84 = sphi 0, %s83
      %s100 = sphi 0, %s84
      %s106 = sphi 0, %s108
      %s109 = sphi 0, %s106
      %s110 = sphi 0, %s109
      %s126 = sphi 0, %s110
      %s130 = sphi 0, %s130
      %s132 = sphi 0, %s130
      %s133 = sphi 0, %s132
      %s147 = sphi 0, %s133
      %s153 = sphi 0, %s155
      %s156 = sphi 0, %s153
      %s157 = sphi 0, %s156
      %s173 = sphi 0, %s157
      %s179 = sphi 0, %s181
      %s182 = sphi 0, %s179
      %s183 = sphi 0, %s182
      %s199 = sphi 0, %s183
      %s205 = sphi 0, %s207
      %s208 = sphi 0, %s205
      %s209 = sphi 0, %s208
      %s225 = sphi 0, %s209
      %s231 = sphi 0, %s233
      %s234 = sphi 0, %s231
      %s235 = sphi 0, %s234
      %s251 = sphi 0, %s235
      %s257 = sphi 0, %s259
      %s260 = sphi 0, %s257
      %s261 = sphi 0, %s260
      %s277 = sphi 0, %s261
      %s283 = sphi 0, %s285
      %s286 = sphi 0, %s283
      %s287 = sphi 0, %s286
      %s303 = sphi 0, %s287
      %s309 = sphi 0, %s311
      %s312 = sphi 0, %s309
      %s313 = sphi 0, %s312
      %s329 = sphi 0, %s313
      %s335 = sphi 0, %s337
      %s338 = sphi 0, %s335
      %s339 = sphi 0, %s338
      %s355 = sphi 0, %s339
      %s361 = sphi 0, %s363
      %s364 = sphi 0, %s361
      %s365 = sphi 0, %s364
      %s381 = sphi 0, %s365
      %s387 = sphi 0, %s389
      %s390 = sphi 0, %s387
      %s391 = sphi 0, %s390
      %s407 = sphi 0, %s391
      %s413 = sphi 0, %s415
      %s416 = sphi 0, %s413
      %s417 = sphi 0, %s416
      %s433 = sphi 0, %s417
      %s439 = sphi 0, %s441
      %s442 = sphi 0, %s439
      %s443 = sphi 0, %s442
      %s459 = sphi 0, %s443
      %s465 = sphi 0, %s467
      %s468 = sphi 0, %s465
      %s469 = sphi 0, %s468
      %s485 = sphi 0, %s469
      %s491 = sphi 0, %s493
      %s494 = sphi 0, %s491
      %s495 = sphi 0, %s494
      %s511 = sphi 0, %s495
      %s517 = sphi 0, %s519
      %s520 = sphi 0, %s517
      %s521 = sphi 0, %s520
      %s537 = sphi 0, %s521
      %s543 = sphi 0, %s545
      %s546 = sphi 0, %s543
      %s547 = sphi 0, %s546
      %s563 = sphi 0, %s547
      %s569 = sphi 0, %s571
      %s572 = sphi 0, %s569
      %s573 = sphi 0, %s572
      %s589 = sphi 0, %s573
      %s595 = sphi 0, %s597
      %s598 = sphi 0, %s595
      %s599 = sphi 0, %s598
      %s615 = sphi 0, %s599
      %s621 = sphi 0, %s623
      %s624 = sphi 0, %s621
      %s625 = sphi 0, %s624
      %s641 = sphi 0, %s625
      %s647 = sphi 0, %s649
      %s650 = sphi 0, %s647
      %s651 = sphi 0, %s650
      %s667 = sphi 0, %s651
      %s671 = sphi 0, %s671
      %s673 = sphi 0, %s671
      %s674 = sphi 0, %s673
      %s688 = sphi 0, %s674
      %s692 = sphi 0, %s692
      %s694 = sphi 0, %s692
      %s695 = sphi 0, %s694
      %s709 = sphi 0, %s695
      %s715 = sphi 0, %s717
      %s718 = sphi 0, %s715
      %s719 = sphi 0, %s718
      %s735 = sphi 0, %s719
    $region4: #{tpu_custom_call.1} parent=1 // loop_header_branch
      %61 = sbr.rel (%p59) target = $region8
    $region5: #{tpu_custom_call.1} parent=1 // loop_body
      %s63 = ssub.s32 %s58, 1
      %s64 = ssub.s32 %s58, 2
      %s71 = sadd.s32 1, %s66
      %p72 = scmp.ge.s32.totalorder %s71, 3
      %s73 = scalar_select %p72, 0, %s71
      %s74 = sadd.s32 1, %s65
      %s75 = scalar_select %p72, %s74, %s65
      %p76 = scmp.ge.s32.totalorder %s75, 2
      %s77 = scalar_select %p76, 0, %s75
      %s78 = ssub.s32 %s65, %s77
      %p79 = scmp.eq.s32.totalorder %s78, 0
      %s81 = sadd.s32 %s80, 1
      %s82 = scalar_select %p79, %s80, %s81
      %p85 = pneg %p79
      %p86 = scmp.eq.s32.totalorder %s58, 5
      %p87 = por %p85, %p86
      %p88 = scmp.ne.s32.totalorder %s80, %s83
      %p89 = scmp.eq.s32.totalorder %s58, 0
      %p90 = por %p88, %p89
      %p91 = scmp.ne.s32.totalorder %s80, %s83
      %p92 = scmp.eq.s32.totalorder %s63, 5
      %p93 = por %p91, %p92
      %p94 = scmp.ne.s32.totalorder %s83, %s84
      %p95 = scmp.eq.s32.totalorder %s63, 0
      %p96 = por %p94, %p95
      %p97 = scmp.ne.s32.totalorder %s83, %s84
      %p98 = scmp.eq.s32.totalorder %s64, 5
      %p99 = por %p97, %p98
      %p101 = scmp.ne.s32.totalorder %s84, %s100
      %p102 = scmp.eq.s32.totalorder %s64, 0
      %p103 = por %p101, %p102
      %s104 = ssub.s32 %s65, %s77
      %p105 = scmp.eq.s32.totalorder %s104, 0
      %s107 = sadd.s32 %s106, 1
      %s108 = scalar_select %p105, %s106, %s107
      %p111 = pneg %p105
      %p112 = scmp.eq.s32.totalorder %s58, 5
      %p113 = por %p111, %p112
      %p114 = scmp.ne.s32.totalorder %s106, %s109
      %p115 = scmp.eq.s32.totalorder %s58, 0
      %p116 = por %p114, %p115
      %p117 = scmp.ne.s32.totalorder %s106, %s109
      %p118 = scmp.eq.s32.totalorder %s63, 5
      %p119 = por %p117, %p118
      %p120 = scmp.ne.s32.totalorder %s109, %s110
      %p121 = scmp.eq.s32.totalorder %s63, 0
      %p122 = por %p120, %p121
      %p123 = scmp.ne.s32.totalorder %s109, %s110
      %p124 = scmp.eq.s32.totalorder %s64, 5
      %p125 = por %p123, %p124
      %p127 = scmp.ne.s32.totalorder %s110, %s126
      %p128 = scmp.eq.s32.totalorder %s64, 0
      %p129 = por %p127, %p128
      %s131 = sadd.s32 %s130, 1
      %p134 = scmp.eq.s32.totalorder %s58, 5
      %p135 = scmp.ne.s32.totalorder %s130, %s132
      %p136 = scmp.eq.s32.totalorder %s58, 0
      %p137 = por %p135, %p136
      %p138 = scmp.ne.s32.totalorder %s130, %s132
      %p139 = scmp.eq.s32.totalorder %s63, 5
      %p140 = por %p138, %p139
      %p141 = scmp.ne.s32.totalorder %s132, %s133
      %p142 = scmp.eq.s32.totalorder %s63, 0
      %p143 = por %p141, %p142
      %p144 = scmp.ne.s32.totalorder %s132, %s133
      %p145 = scmp.eq.s32.totalorder %s64, 5
      %p146 = por %p144, %p145
      %p148 = scmp.ne.s32.totalorder %s133, %s147
      %p149 = scmp.eq.s32.totalorder %s64, 0
      %p150 = por %p148, %p149
      %s151 = ssub.s32 %s66, %s73
      %p152 = scmp.eq.s32.totalorder %s151, 0
      %s154 = sadd.s32 %s153, 1
      %s155 = scalar_select %p152, %s153, %s154
      %p158 = pneg %p152
      %p159 = scmp.eq.s32.totalorder %s58, 5
      %p160 = por %p158, %p159
      %p161 = scmp.ne.s32.totalorder %s153, %s156
      %p162 = scmp.eq.s32.totalorder %s58, 0
      %p163 = por %p161, %p162
      %p164 = scmp.ne.s32.totalorder %s153, %s156
      %p165 = scmp.eq.s32.totalorder %s63, 5
      %p166 = por %p164, %p165
      %p167 = scmp.ne.s32.totalorder %s156, %s157
      %p168 = scmp.eq.s32.totalorder %s63, 0
      %p169 = por %p167, %p168
      %p170 = scmp.ne.s32.totalorder %s156, %s157
      %p171 = scmp.eq.s32.totalorder %s64, 5
      %p172 = por %p170, %p171
      %p174 = scmp.ne.s32.totalorder %s157, %s173
      %p175 = scmp.eq.s32.totalorder %s64, 0
      %p176 = por %p174, %p175
      %s177 = ssub.s32 %s66, %s73
      %p178 = scmp.eq.s32.totalorder %s177, 0
      %s180 = sadd.s32 %s179, 1
      %s181 = scalar_select %p178, %s179, %s180
      %p184 = pneg %p178
      %p185 = scmp.eq.s32.totalorder %s58, 5
      %p186 = por %p184, %p185
      %p187 = scmp.ne.s32.totalorder %s179, %s182
      %p188 = scmp.eq.s32.totalorder %s58, 0
      %p189 = por %p187, %p188
      %p190 = scmp.ne.s32.totalorder %s179, %s182
      %p191 = scmp.eq.s32.totalorder %s63, 5
      %p192 = por %p190, %p191
      %p193 = scmp.ne.s32.totalorder %s182, %s183
      %p194 = scmp.eq.s32.totalorder %s63, 0
      %p195 = por %p193, %p194
      %p196 = scmp.ne.s32.totalorder %s182, %s183
      %p197 = scmp.eq.s32.totalorder %s64, 5
      %p198 = por %p196, %p197
      %p200 = scmp.ne.s32.totalorder %s183, %s199
      %p201 = scmp.eq.s32.totalorder %s64, 0
      %p202 = por %p200, %p201
      %s203 = ssub.s32 %s66, %s73
      %p204 = scmp.eq.s32.totalorder %s203, 0
      %s206 = sadd.s32 %s205, 1
      %s207 = scalar_select %p204, %s205, %s206
      %p210 = pneg %p204
      %p211 = scmp.eq.s32.totalorder %s58, 5
      %p212 = por %p210, %p211
      %p213 = scmp.ne.s32.totalorder %s205, %s208
      %p214 = scmp.eq.s32.totalorder %s58, 0
      %p215 = por %p213, %p214
      %p216 = scmp.ne.s32.totalorder %s205, %s208
      %p217 = scmp.eq.s32.totalorder %s63, 5
      %p218 = por %p216, %p217
      %p219 = scmp.ne.s32.totalorder %s208, %s209
      %p220 = scmp.eq.s32.totalorder %s63, 0
      %p221 = por %p219, %p220
      %p222 = scmp.ne.s32.totalorder %s208, %s209
      %p223 = scmp.eq.s32.totalorder %s64, 5
      %p224 = por %p222, %p223
      %p226 = scmp.ne.s32.totalorder %s209, %s225
      %p227 = scmp.eq.s32.totalorder %s64, 0
      %p228 = por %p226, %p227
      %s229 = ssub.s32 %s66, %s73
      %p230 = scmp.eq.s32.totalorder %s229, 0
      %s232 = sadd.s32 %s231, 1
      %s233 = scalar_select %p230, %s231, %s232
      %p236 = pneg %p230
      %p237 = scmp.eq.s32.totalorder %s58, 5
      %p238 = por %p236, %p237
      %p239 = scmp.ne.s32.totalorder %s231, %s234
      %p240 = scmp.eq.s32.totalorder %s58, 0
      %p241 = por %p239, %p240
      %p242 = scmp.ne.s32.totalorder %s231, %s234
      %p243 = scmp.eq.s32.totalorder %s63, 5
      %p244 = por %p242, %p243
      %p245 = scmp.ne.s32.totalorder %s234, %s235
      %p246 = scmp.eq.s32.totalorder %s63, 0
      %p247 = por %p245, %p246
      %p248 = scmp.ne.s32.totalorder %s234, %s235
      %p249 = scmp.eq.s32.totalorder %s64, 5
      %p250 = por %p248, %p249
      %p252 = scmp.ne.s32.totalorder %s235, %s251
      %p253 = scmp.eq.s32.totalorder %s64, 0
      %p254 = por %p252, %p253
      %s255 = ssub.s32 %s66, %s73
      %p256 = scmp.eq.s32.totalorder %s255, 0
      %s258 = sadd.s32 %s257, 1
      %s259 = scalar_select %p256, %s257, %s258
      %p262 = pneg %p256
      %p263 = scmp.eq.s32.totalorder %s58, 5
      %p264 = por %p262, %p263
      %p265 = scmp.ne.s32.totalorder %s257, %s260
      %p266 = scmp.eq.s32.totalorder %s58, 0
      %p267 = por %p265, %p266
      %p268 = scmp.ne.s32.totalorder %s257, %s260
      %p269 = scmp.eq.s32.totalorder %s63, 5
      %p270 = por %p268, %p269
      %p271 = scmp.ne.s32.totalorder %s260, %s261
      %p272 = scmp.eq.s32.totalorder %s63, 0
      %p273 = por %p271, %p272
      %p274 = scmp.ne.s32.totalorder %s260, %s261
      %p275 = scmp.eq.s32.totalorder %s64, 5
      %p276 = por %p274, %p275
      %p278 = scmp.ne.s32.totalorder %s261, %s277
      %p279 = scmp.eq.s32.totalorder %s64, 0
      %p280 = por %p278, %p279
      %s281 = ssub.s32 %s66, %s73
      %p282 = scmp.eq.s32.totalorder %s281, 0
      %s284 = sadd.s32 %s283, 1
      %s285 = scalar_select %p282, %s283, %s284
      %p288 = pneg %p282
      %p289 = scmp.eq.s32.totalorder %s58, 5
      %p290 = por %p288, %p289
      %p291 = scmp.ne.s32.totalorder %s283, %s286
      %p292 = scmp.eq.s32.totalorder %s58, 0
      %p293 = por %p291, %p292
      %p294 = scmp.ne.s32.totalorder %s283, %s286
      %p295 = scmp.eq.s32.totalorder %s63, 5
      %p296 = por %p294, %p295
      %p297 = scmp.ne.s32.totalorder %s286, %s287
      %p298 = scmp.eq.s32.totalorder %s63, 0
      %p299 = por %p297, %p298
      %p300 = scmp.ne.s32.totalorder %s286, %s287
      %p301 = scmp.eq.s32.totalorder %s64, 5
      %p302 = por %p300, %p301
      %p304 = scmp.ne.s32.totalorder %s287, %s303
      %p305 = scmp.eq.s32.totalorder %s64, 0
      %p306 = por %p304, %p305
      %s307 = ssub.s32 %s66, %s73
      %p308 = scmp.eq.s32.totalorder %s307, 0
      %s310 = sadd.s32 %s309, 1
      %s311 = scalar_select %p308, %s309, %s310
      %p314 = pneg %p308
      %p315 = scmp.eq.s32.totalorder %s58, 5
      %p316 = por %p314, %p315
      %p317 = scmp.ne.s32.totalorder %s309, %s312
      %p318 = scmp.eq.s32.totalorder %s58, 0
      %p319 = por %p317, %p318
      %p320 = scmp.ne.s32.totalorder %s309, %s312
      %p321 = scmp.eq.s32.totalorder %s63, 5
      %p322 = por %p320, %p321
      %p323 = scmp.ne.s32.totalorder %s312, %s313
      %p324 = scmp.eq.s32.totalorder %s63, 0
      %p325 = por %p323, %p324
      %p326 = scmp.ne.s32.totalorder %s312, %s313
      %p327 = scmp.eq.s32.totalorder %s64, 5
      %p328 = por %p326, %p327
      %p330 = scmp.ne.s32.totalorder %s313, %s329
      %p331 = scmp.eq.s32.totalorder %s64, 0
      %p332 = por %p330, %p331
      %s333 = ssub.s32 %s66, %s73
      %p334 = scmp.eq.s32.totalorder %s333, 0
      %s336 = sadd.s32 %s335, 1
      %s337 = scalar_select %p334, %s335, %s336
      %p340 = pneg %p334
      %p341 = scmp.eq.s32.totalorder %s58, 5
      %p342 = por %p340, %p341
      %p343 = scmp.ne.s32.totalorder %s335, %s338
      %p344 = scmp.eq.s32.totalorder %s58, 0
      %p345 = por %p343, %p344
      %p346 = scmp.ne.s32.totalorder %s335, %s338
      %p347 = scmp.eq.s32.totalorder %s63, 5
      %p348 = por %p346, %p347
      %p349 = scmp.ne.s32.totalorder %s338, %s339
      %p350 = scmp.eq.s32.totalorder %s63, 0
      %p351 = por %p349, %p350
      %p352 = scmp.ne.s32.totalorder %s338, %s339
      %p353 = scmp.eq.s32.totalorder %s64, 5
      %p354 = por %p352, %p353
      %p356 = scmp.ne.s32.totalorder %s339, %s355
      %p357 = scmp.eq.s32.totalorder %s64, 0
      %p358 = por %p356, %p357
      %s359 = ssub.s32 %s66, %s73
      %p360 = scmp.eq.s32.totalorder %s359, 0
      %s362 = sadd.s32 %s361, 1
      %s363 = scalar_select %p360, %s361, %s362
      %p366 = pneg %p360
      %p367 = scmp.eq.s32.totalorder %s58, 5
      %p368 = por %p366, %p367
      %p369 = scmp.ne.s32.totalorder %s361, %s364
      %p370 = scmp.eq.s32.totalorder %s58, 0
      %p371 = por %p369, %p370
      %p372 = scmp.ne.s32.totalorder %s361, %s364
      %p373 = scmp.eq.s32.totalorder %s63, 5
      %p374 = por %p372, %p373
      %p375 = scmp.ne.s32.totalorder %s364, %s365
      %p376 = scmp.eq.s32.totalorder %s63, 0
      %p377 = por %p375, %p376
      %p378 = scmp.ne.s32.totalorder %s364, %s365
      %p379 = scmp.eq.s32.totalorder %s64, 5
      %p380 = por %p378, %p379
      %p382 = scmp.ne.s32.totalorder %s365, %s381
      %p383 = scmp.eq.s32.totalorder %s64, 0
      %p384 = por %p382, %p383
      %s385 = ssub.s32 %s66, %s73
      %p386 = scmp.eq.s32.totalorder %s385, 0
      %s388 = sadd.s32 %s387, 1
      %s389 = scalar_select %p386, %s387, %s388
      %p392 = pneg %p386
      %p393 = scmp.eq.s32.totalorder %s58, 5
      %p394 = por %p392, %p393
      %p395 = scmp.ne.s32.totalorder %s387, %s390
      %p396 = scmp.eq.s32.totalorder %s58, 0
      %p397 = por %p395, %p396
      %p398 = scmp.ne.s32.totalorder %s387, %s390
      %p399 = scmp.eq.s32.totalorder %s63, 5
      %p400 = por %p398, %p399
      %p401 = scmp.ne.s32.totalorder %s390, %s391
      %p402 = scmp.eq.s32.totalorder %s63, 0
      %p403 = por %p401, %p402
      %p404 = scmp.ne.s32.totalorder %s390, %s391
      %p405 = scmp.eq.s32.totalorder %s64, 5
      %p406 = por %p404, %p405
      %p408 = scmp.ne.s32.totalorder %s391, %s407
      %p409 = scmp.eq.s32.totalorder %s64, 0
      %p410 = por %p408, %p409
      %s411 = ssub.s32 %s66, %s73
      %p412 = scmp.eq.s32.totalorder %s411, 0
      %s414 = sadd.s32 %s413, 1
      %s415 = scalar_select %p412, %s413, %s414
      %p418 = pneg %p412
      %p419 = scmp.eq.s32.totalorder %s58, 5
      %p420 = por %p418, %p419
      %p421 = scmp.ne.s32.totalorder %s413, %s416
      %p422 = scmp.eq.s32.totalorder %s58, 0
      %p423 = por %p421, %p422
      %p424 = scmp.ne.s32.totalorder %s413, %s416
      %p425 = scmp.eq.s32.totalorder %s63, 5
      %p426 = por %p424, %p425
      %p427 = scmp.ne.s32.totalorder %s416, %s417
      %p428 = scmp.eq.s32.totalorder %s63, 0
      %p429 = por %p427, %p428
      %p430 = scmp.ne.s32.totalorder %s416, %s417
      %p431 = scmp.eq.s32.totalorder %s64, 5
      %p432 = por %p430, %p431
      %p434 = scmp.ne.s32.totalorder %s417, %s433
      %p435 = scmp.eq.s32.totalorder %s64, 0
      %p436 = por %p434, %p435
      %s437 = ssub.s32 %s66, %s73
      %p438 = scmp.eq.s32.totalorder %s437, 0
      %s440 = sadd.s32 %s439, 1
      %s441 = scalar_select %p438, %s439, %s440
      %p444 = pneg %p438
      %p445 = scmp.eq.s32.totalorder %s58, 5
      %p446 = por %p444, %p445
      %p447 = scmp.ne.s32.totalorder %s439, %s442
      %p448 = scmp.eq.s32.totalorder %s58, 0
      %p449 = por %p447, %p448
      %p450 = scmp.ne.s32.totalorder %s439, %s442
      %p451 = scmp.eq.s32.totalorder %s63, 5
      %p452 = por %p450, %p451
      %p453 = scmp.ne.s32.totalorder %s442, %s443
      %p454 = scmp.eq.s32.totalorder %s63, 0
      %p455 = por %p453, %p454
      %p456 = scmp.ne.s32.totalorder %s442, %s443
      %p457 = scmp.eq.s32.totalorder %s64, 5
      %p458 = por %p456, %p457
      %p460 = scmp.ne.s32.totalorder %s443, %s459
      %p461 = scmp.eq.s32.totalorder %s64, 0
      %p462 = por %p460, %p461
      %s463 = ssub.s32 %s66, %s73
      %p464 = scmp.eq.s32.totalorder %s463, 0
      %s466 = sadd.s32 %s465, 1
      %s467 = scalar_select %p464, %s465, %s466
      %p470 = pneg %p464
      %p471 = scmp.eq.s32.totalorder %s58, 5
      %p472 = por %p470, %p471
      %p473 = scmp.ne.s32.totalorder %s465, %s468
      %p474 = scmp.eq.s32.totalorder %s58, 0
      %p475 = por %p473, %p474
      %p476 = scmp.ne.s32.totalorder %s465, %s468
      %p477 = scmp.eq.s32.totalorder %s63, 5
      %p478 = por %p476, %p477
      %p479 = scmp.ne.s32.totalorder %s468, %s469
      %p480 = scmp.eq.s32.totalorder %s63, 0
      %p481 = por %p479, %p480
      %p482 = scmp.ne.s32.totalorder %s468, %s469
      %p483 = scmp.eq.s32.totalorder %s64, 5
      %p484 = por %p482, %p483
      %p486 = scmp.ne.s32.totalorder %s469, %s485
      %p487 = scmp.eq.s32.totalorder %s64, 0
      %p488 = por %p486, %p487
      %s489 = ssub.s32 %s66, %s73
      %p490 = scmp.eq.s32.totalorder %s489, 0
      %s492 = sadd.s32 %s491, 1
      %s493 = scalar_select %p490, %s491, %s492
      %p496 = pneg %p490
      %p497 = scmp.eq.s32.totalorder %s58, 5
      %p498 = por %p496, %p497
      %p499 = scmp.ne.s32.totalorder %s491, %s494
      %p500 = scmp.eq.s32.totalorder %s58, 0
      %p501 = por %p499, %p500
      %p502 = scmp.ne.s32.totalorder %s491, %s494
      %p503 = scmp.eq.s32.totalorder %s63, 5
      %p504 = por %p502, %p503
      %p505 = scmp.ne.s32.totalorder %s494, %s495
      %p506 = scmp.eq.s32.totalorder %s63, 0
      %p507 = por %p505, %p506
      %p508 = scmp.ne.s32.totalorder %s494, %s495
      %p509 = scmp.eq.s32.totalorder %s64, 5
      %p510 = por %p508, %p509
      %p512 = scmp.ne.s32.totalorder %s495, %s511
      %p513 = scmp.eq.s32.totalorder %s64, 0
      %p514 = por %p512, %p513
      %s515 = ssub.s32 %s66, %s73
      %p516 = scmp.eq.s32.totalorder %s515, 0
      %s518 = sadd.s32 %s517, 1
      %s519 = scalar_select %p516, %s517, %s518
      %p522 = pneg %p516
      %p523 = scmp.eq.s32.totalorder %s58, 5
      %p524 = por %p522, %p523
      %p525 = scmp.ne.s32.totalorder %s517, %s520
      %p526 = scmp.eq.s32.totalorder %s58, 0
      %p527 = por %p525, %p526
      %p528 = scmp.ne.s32.totalorder %s517, %s520
      %p529 = scmp.eq.s32.totalorder %s63, 5
      %p530 = por %p528, %p529
      %p531 = scmp.ne.s32.totalorder %s520, %s521
      %p532 = scmp.eq.s32.totalorder %s63, 0
      %p533 = por %p531, %p532
      %p534 = scmp.ne.s32.totalorder %s520, %s521
      %p535 = scmp.eq.s32.totalorder %s64, 5
      %p536 = por %p534, %p535
      %p538 = scmp.ne.s32.totalorder %s521, %s537
      %p539 = scmp.eq.s32.totalorder %s64, 0
      %p540 = por %p538, %p539
      %s541 = ssub.s32 %s66, %s73
      %p542 = scmp.eq.s32.totalorder %s541, 0
      %s544 = sadd.s32 %s543, 1
      %s545 = scalar_select %p542, %s543, %s544
      %p548 = pneg %p542
      %p549 = scmp.eq.s32.totalorder %s58, 5
      %p550 = por %p548, %p549
      %p551 = scmp.ne.s32.totalorder %s543, %s546
      %p552 = scmp.eq.s32.totalorder %s58, 0
      %p553 = por %p551, %p552
      %p554 = scmp.ne.s32.totalorder %s543, %s546
      %p555 = scmp.eq.s32.totalorder %s63, 5
      %p556 = por %p554, %p555
      %p557 = scmp.ne.s32.totalorder %s546, %s547
      %p558 = scmp.eq.s32.totalorder %s63, 0
      %p559 = por %p557, %p558
      %p560 = scmp.ne.s32.totalorder %s546, %s547
      %p561 = scmp.eq.s32.totalorder %s64, 5
      %p562 = por %p560, %p561
      %p564 = scmp.ne.s32.totalorder %s547, %s563
      %p565 = scmp.eq.s32.totalorder %s64, 0
      %p566 = por %p564, %p565
      %s567 = ssub.s32 %s66, %s73
      %p568 = scmp.eq.s32.totalorder %s567, 0
      %s570 = sadd.s32 %s569, 1
      %s571 = scalar_select %p568, %s569, %s570
      %p574 = pneg %p568
      %p575 = scmp.eq.s32.totalorder %s58, 5
      %p576 = por %p574, %p575
      %p577 = scmp.ne.s32.totalorder %s569, %s572
      %p578 = scmp.eq.s32.totalorder %s58, 0
      %p579 = por %p577, %p578
      %p580 = scmp.ne.s32.totalorder %s569, %s572
      %p581 = scmp.eq.s32.totalorder %s63, 5
      %p582 = por %p580, %p581
      %p583 = scmp.ne.s32.totalorder %s572, %s573
      %p584 = scmp.eq.s32.totalorder %s63, 0
      %p585 = por %p583, %p584
      %p586 = scmp.ne.s32.totalorder %s572, %s573
      %p587 = scmp.eq.s32.totalorder %s64, 5
      %p588 = por %p586, %p587
      %p590 = scmp.ne.s32.totalorder %s573, %s589
      %p591 = scmp.eq.s32.totalorder %s64, 0
      %p592 = por %p590, %p591
      %s593 = ssub.s32 %s66, %s73
      %p594 = scmp.eq.s32.totalorder %s593, 0
      %s596 = sadd.s32 %s595, 1
      %s597 = scalar_select %p594, %s595, %s596
      %p600 = pneg %p594
      %p601 = scmp.eq.s32.totalorder %s58, 5
      %p602 = por %p600, %p601
      %p603 = scmp.ne.s32.totalorder %s595, %s598
      %p604 = scmp.eq.s32.totalorder %s58, 0
      %p605 = por %p603, %p604
      %p606 = scmp.ne.s32.totalorder %s595, %s598
      %p607 = scmp.eq.s32.totalorder %s63, 5
      %p608 = por %p606, %p607
      %p609 = scmp.ne.s32.totalorder %s598, %s599
      %p610 = scmp.eq.s32.totalorder %s63, 0
      %p611 = por %p609, %p610
      %p612 = scmp.ne.s32.totalorder %s598, %s599
      %p613 = scmp.eq.s32.totalorder %s64, 5
      %p614 = por %p612, %p613
      %p616 = scmp.ne.s32.totalorder %s599, %s615
      %p617 = scmp.eq.s32.totalorder %s64, 0
      %p618 = por %p616, %p617
      %s619 = ssub.s32 %s66, %s73
      %p620 = scmp.eq.s32.totalorder %s619, 0
      %s622 = sadd.s32 %s621, 1
      %s623 = scalar_select %p620, %s621, %s622
      %p626 = pneg %p620
      %p627 = scmp.eq.s32.totalorder %s58, 5
      %p628 = por %p626, %p627
      %p629 = scmp.ne.s32.totalorder %s621, %s624
      %p630 = scmp.eq.s32.totalorder %s58, 0
      %p631 = por %p629, %p630
      %p632 = scmp.ne.s32.totalorder %s621, %s624
      %p633 = scmp.eq.s32.totalorder %s63, 5
      %p634 = por %p632, %p633
      %p635 = scmp.ne.s32.totalorder %s624, %s625
      %p636 = scmp.eq.s32.totalorder %s63, 0
      %p637 = por %p635, %p636
      %p638 = scmp.ne.s32.totalorder %s624, %s625
      %p639 = scmp.eq.s32.totalorder %s64, 5
      %p640 = por %p638, %p639
      %p642 = scmp.ne.s32.totalorder %s625, %s641
      %p643 = scmp.eq.s32.totalorder %s64, 0
      %p644 = por %p642, %p643
      %s645 = ssub.s32 %s66, %s73
      %p646 = scmp.eq.s32.totalorder %s645, 0
      %s648 = sadd.s32 %s647, 1
      %s649 = scalar_select %p646, %s647, %s648
      %p652 = pneg %p646
      %p653 = scmp.eq.s32.totalorder %s58, 5
      %p654 = por %p652, %p653
      %p655 = scmp.ne.s32.totalorder %s647, %s650
      %p656 = scmp.eq.s32.totalorder %s58, 0
      %p657 = por %p655, %p656
      %p658 = scmp.ne.s32.totalorder %s647, %s650
      %p659 = scmp.eq.s32.totalorder %s63, 5
      %p660 = por %p658, %p659
      %p661 = scmp.ne.s32.totalorder %s650, %s651
      %p662 = scmp.eq.s32.totalorder %s63, 0
      %p663 = por %p661, %p662
      %p664 = scmp.ne.s32.totalorder %s650, %s651
      %p665 = scmp.eq.s32.totalorder %s64, 5
      %p666 = por %p664, %p665
      %p668 = scmp.ne.s32.totalorder %s651, %s667
      %p669 = scmp.eq.s32.totalorder %s64, 0
      %p670 = por %p668, %p669
      %s672 = sadd.s32 %s671, 1
      %p675 = scmp.eq.s32.totalorder %s58, 5
      %p676 = scmp.ne.s32.totalorder %s671, %s673
      %p677 = scmp.eq.s32.totalorder %s58, 0
      %p678 = por %p676, %p677
      %p679 = scmp.ne.s32.totalorder %s671, %s673
      %p680 = scmp.eq.s32.totalorder %s63, 5
      %p681 = por %p679, %p680
      %p682 = scmp.ne.s32.totalorder %s673, %s674
      %p683 = scmp.eq.s32.totalorder %s63, 0
      %p684 = por %p682, %p683
      %p685 = scmp.ne.s32.totalorder %s673, %s674
      %p686 = scmp.eq.s32.totalorder %s64, 5
      %p687 = por %p685, %p686
      %p689 = scmp.ne.s32.totalorder %s674, %s688
      %p690 = scmp.eq.s32.totalorder %s64, 0
      %p691 = por %p689, %p690
      %s693 = sadd.s32 %s692, 1
      %p696 = scmp.eq.s32.totalorder %s58, 5
      %p697 = scmp.ne.s32.totalorder %s692, %s694
      %p698 = scmp.eq.s32.totalorder %s58, 0
      %p699 = por %p697, %p698
      %p700 = scmp.ne.s32.totalorder %s692, %s694
      %p701 = scmp.eq.s32.totalorder %s63, 5
      %p702 = por %p700, %p701
      %p703 = scmp.ne.s32.totalorder %s694, %s695
      %p704 = scmp.eq.s32.totalorder %s63, 0
      %p705 = por %p703, %p704
      %p706 = scmp.ne.s32.totalorder %s694, %s695
      %p707 = scmp.eq.s32.totalorder %s64, 5
      %p708 = por %p706, %p707
      %p710 = scmp.ne.s32.totalorder %s695, %s709
      %p711 = scmp.eq.s32.totalorder %s64, 0
      %p712 = por %p710, %p711
      %s713 = ssub.s32 %s65, %s77
      %p714 = scmp.eq.s32.totalorder %s713, 0
      %s716 = sadd.s32 %s715, 1
      %s717 = scalar_select %p714, %s715, %s716
      %p720 = pneg %p714
      %p721 = scmp.eq.s32.totalorder %s58, 5
      %p722 = por %p720, %p721
      %p723 = scmp.ne.s32.totalorder %s715, %s718
      %p724 = scmp.eq.s32.totalorder %s58, 0
      %p725 = por %p723, %p724
      %p726 = scmp.ne.s32.totalorder %s715, %s718
      %p727 = scmp.eq.s32.totalorder %s63, 5
      %p728 = por %p726, %p727
      %p729 = scmp.ne.s32.totalorder %s718, %s719
      %p730 = scmp.eq.s32.totalorder %s63, 0
      %p731 = por %p729, %p730
      %p732 = scmp.ne.s32.totalorder %s718, %s719
      %p733 = scmp.eq.s32.totalorder %s64, 5
      %p734 = por %p732, %p733
      %p736 = scmp.ne.s32.totalorder %s719, %s735
      %p737 = scmp.eq.s32.totalorder %s64, 0
      %p738 = por %p736, %p737
      %p739 = scmp.le.s32.totalorder 1, %s58
      %p740 = scmp.lt.s32.totalorder %s58, 7
      %p741 = pnand %p739, %p740
      %p742 = pneg %p741
      // Predicated region
      $region9: #{tpu_custom_call.1} parent=5 // pred_check
        _
      $region10: #{tpu_custom_call.1} parent=5 // pred_check_branch
        %744 = sbr.rel (%p741) target = $region12
      $region11: #{tpu_custom_call.1} parent=5 // pred_region
        %s745 = ssub.s32 %s58, 1
        // Predicated region
        $region13: #{tpu_custom_call.1} parent=11 // pred_check
          %p746 = pneg %p143
        $region14: #{tpu_custom_call.1} parent=11 // pred_check_branch
          %748 = sbr.rel (%p746) target = $region16
        $region15: #{tpu_custom_call.1} parent=11 // pred_region
          %s750 = ssub.s32 16, 16
          %751 = vsyncadd [#allocation7], %s750
          %s753 = sshll.u32 [#allocation8], 4
          %s754 = int_to_ptr.vmem [resolvable:$true] %s753
          %756 = dma.hbm_to_vmem [thread:$0]  %s2, 16, %s754, [#allocation7]
        $region16: #{tpu_custom_call.1} parent=11 // pred_fallthru
          _
        // Predicated region
        $region17: #{tpu_custom_call.1} parent=11 // pred_check
          %p757 = pneg %p684
        $region18: #{tpu_custom_call.1} parent=11 // pred_check_branch
          %759 = sbr.rel (%p757) target = $region20
        $region19: #{tpu_custom_call.1} parent=11 // pred_region
          %s761 = ssub.s32 1024, 1024
          %762 = vsyncadd [#allocation25], %s761
          %s763 = sshll.u32 [#allocation26], 4
          %s764 = int_to_ptr.vmem [resolvable:$true] %s763
          %769 = dma.hbm_to_vmem [thread:$0]  %s23, 1024, %s764, [#allocation25], 64, 64, 4
        $region20: #{tpu_custom_call.1} parent=11 // pred_fallthru
          _
        // Predicated region
        $region21: #{tpu_custom_call.1} parent=11 // pred_check
          %p770 = pneg %p705
        $region22: #{tpu_custom_call.1} parent=11 // pred_check_branch
          %772 = sbr.rel (%p770) target = $region24
        $region23: #{tpu_custom_call.1} parent=11 // pred_region
          _
        $region24: #{tpu_custom_call.1} parent=11 // pred_fallthru
          _
      $region12: #{tpu_custom_call.1} parent=5 // pred_fallthru
        _
      %p773 = scmp.lt.s32.totalorder %s58, 6
      // Predicated region
      $region25: #{tpu_custom_call.1} parent=5 // pred_check
        %p774 = pneg %p773
      $region26: #{tpu_custom_call.1} parent=5 // pred_check_branch
        %776 = sbr.rel (%p774) target = $region28
      $region27: #{tpu_custom_call.1} parent=5 // pred_region
        // Predicated region
        $region29: #{tpu_custom_call.1} parent=27 // pred_check
          %p777 = pneg %p90
        $region30: #{tpu_custom_call.1} parent=27 // pred_check_branch
          %779 = sbr.rel (%p777) target = $region32
        $region31: #{tpu_custom_call.1} parent=27 // pred_region
          %s780 = sand.u32 %s80, 1
          %s781 = scalar_lea.sflag [#allocation4], %s780
          %s782 = sand.u32 %s80, 1
          %s783 = smul.addr %s782, 8
          %s784 = scalar_lea.vmem [#allocation3], %s783
          %s786 = ssub.s32 128, 128
          %787 = vsyncadd %s781, %s786
          %s788 = smul.addr %s65, 128
          %s789 = scalar_lea.hbm %s0, %s788
          %s791 = sshll.u32 %s784, 4
          %s792 = int_to_ptr.vmem [resolvable:$true] %s791
          %794 = dma.hbm_to_vmem [thread:$0]  %s789, 128, %s792, %s781
        $region32: #{tpu_custom_call.1} parent=27 // pred_fallthru
          _
        // Predicated region
        $region33: #{tpu_custom_call.1} parent=27 // pred_check
          %p795 = pneg %p116
        $region34: #{tpu_custom_call.1} parent=27 // pred_check_branch
          %797 = sbr.rel (%p795) target = $region36
        $region35: #{tpu_custom_call.1} parent=27 // pred_region
          %s798 = sand.u32 %s58, 1
          %s799 = scalar_lea.sflag [#allocation7], %s798
          %s800 = sand.u32 %s106, 1
          %s801 = smul.addr %s800, 16
          %s802 = scalar_lea.vmem [#allocation6], %s801
          %s804 = ssub.s32 256, 256
          %805 = vsyncadd %s799, %s804
          %s806 = smul.addr %s65, 2
          %s807 = smul.addr %s806, 128
          %s808 = scalar_lea.hbm %s1, %s807
          %s809 = sshll.u32 %s802, 4
          %s810 = int_to_ptr.vmem [resolvable:$true] %s809
          %815 = dma.hbm_to_vmem [thread:$0]  %s808, 256, %s810, %s799, 128, 128, 8
        $region36: #{tpu_custom_call.1} parent=27 // pred_fallthru
          _
        // Predicated region
        $region37: #{tpu_custom_call.1} parent=27 // pred_check
          %p816 = pneg %p163
        $region38: #{tpu_custom_call.1} parent=27 // pred_check_branch
          %818 = sbr.rel (%p816) target = $region40
        $region39: #{tpu_custom_call.1} parent=27 // pred_region
          %s819 = sand.u32 %s58, 1
          %s820 = scalar_lea.sflag [#allocation10], %s819
          %s821 = sand.u32 %s153, 1
          %s822 = smul.addr %s821, 192
          %s823 = scalar_lea.vmem [#allocation9], %s822
          %s825 = ssub.s32 3072, 3072
          %826 = vsyncadd %s820, %s825
          %s827 = smul.addr %s66, 48
          %s828 = smul.addr %s827, 64
          %s829 = scalar_lea.hbm %s3, %s828
          %s830 = sshll.u32 %s823, 4
          %s831 = int_to_ptr.vmem [resolvable:$true] %s830
          %836 = dma.hbm_to_vmem [thread:$0]  %s829, 3072, %s831, %s820, 192, 192, 12
        $region40: #{tpu_custom_call.1} parent=27 // pred_fallthru
          _
        // Predicated region
        $region41: #{tpu_custom_call.1} parent=27 // pred_check
          %p837 = pneg %p189
        $region42: #{tpu_custom_call.1} parent=27 // pred_check_branch
          %839 = sbr.rel (%p837) target = $region44
        $region43: #{tpu_custom_call.1} parent=27 // pred_region
          %s840 = sand.u32 %s58, 1
          %s841 = scalar_lea.sflag [#allocation10], %s840
          %s842 = sand.u32 %s179, 1
          %s843 = smul.addr %s842, 3
          %s844 = scalar_lea.vmem [#allocation11], %s843
          %s846 = ssub.s32 48, 48
          %847 = vsyncadd %s841, %s846
          %s848 = smul.addr %s66, 3
          %s849 = smul.addr %s848, 16
          %s850 = scalar_lea.hbm %s4, %s849
          %s852 = sshll.u32 %s844, 4
          %s853 = int_to_ptr.vmem [resolvable:$true] %s852
          %855 = dma.hbm_to_vmem [thread:$0]  %s850, 48, %s853, %s841
        $region44: #{tpu_custom_call.1} parent=27 // pred_fallthru
          _
        // Predicated region
        $region45: #{tpu_custom_call.1} parent=27 // pred_check
          %p856 = pneg %p215
        $region46: #{tpu_custom_call.1} parent=27 // pred_check_branch
          %858 = sbr.rel (%p856) target = $region48
        $region47: #{tpu_custom_call.1} parent=27 // pred_region
          %s859 = sand.u32 %s58, 1
          %s860 = scalar_lea.sflag [#allocation13], %s859
          %s861 = sand.u32 %s205, 1
          %s862 = smul.addr %s861, 64
          %s863 = scalar_lea.vmem [#allocation12], %s862
          %s865 = ssub.s32 1024, 1024
          %866 = vsyncadd %s860, %s865
          %s867 = smul.addr %s66, 16
          %s868 = smul.addr %s867, 64
          %s869 = scalar_lea.hbm %s5, %s868
          %s870 = sshll.u32 %s863, 4
          %s871 = int_to_ptr.vmem [resolvable:$true] %s870
          %876 = dma.hbm_to_vmem [thread:$0]  %s869, 1024, %s871, %s860, 64, 64, 4
        $region48: #{tpu_custom_call.1} parent=27 // pred_fallthru
          _
        // Predicated region
        $region49: #{tpu_custom_call.1} parent=27 // pred_check
          %p877 = pneg %p241
        $region50: #{tpu_custom_call.1} parent=27 // pred_check_branch
          %879 = sbr.rel (%p877) target = $region52
        $region51: #{tpu_custom_call.1} parent=27 // pred_region
          %s880 = sand.u32 %s58, 1
          %s881 = scalar_lea.sflag [#allocation13], %s880
          %s882 = sand.u32 %s231, 1
          %s883 = scalar_lea.vmem [#allocation14], %s882
          %s885 = ssub.s32 16, 16
          %886 = vsyncadd %s881, %s885
          %s887 = smul.addr %s66, 16
          %s888 = scalar_lea.hbm %s6, %s887
          %s890 = sshll.u32 %s883, 4
          %s891 = int_to_ptr.vmem [resolvable:$true] %s890
          %893 = dma.hbm_to_vmem [thread:$0]  %s888, 16, %s891, %s881
        $region52: #{tpu_custom_call.1} parent=27 // pred_fallthru
          _
        // Predicated region
        $region53: #{tpu_custom_call.1} parent=27 // pred_check
          %p894 = pneg %p267
        $region54: #{tpu_custom_call.1} parent=27 // pred_check_branch
          %896 = sbr.rel (%p894) target = $region56
        $region55: #{tpu_custom_call.1} parent=27 // pred_region
          %s897 = sand.u32 %s58, 1
          %s898 = scalar_lea.sflag [#allocation16], %s897
          %s899 = sand.u32 %s257, 1
          %s900 = smul.addr %s899, 64
          %s901 = scalar_lea.vmem [#allocation15], %s900
          %s903 = ssub.s32 1024, 1024
          %904 = vsyncadd %s898, %s903
          %s905 = smul.addr %s66, 16
          %s906 = smul.addr %s905, 64
          %s907 = scalar_lea.hbm %s7, %s906
          %s908 = sshll.u32 %s901, 4
          %s909 = int_to_ptr.vmem [resolvable:$true] %s908
          %914 = dma.hbm_to_vmem [thread:$0]  %s907, 1024, %s909, %s898, 64, 64, 4
        $region56: #{tpu_custom_call.1} parent=27 // pred_fallthru
          _
        // Predicated region
        $region57: #{tpu_custom_call.1} parent=27 // pred_check
          %p915 = pneg %p293
        $region58: #{tpu_custom_call.1} parent=27 // pred_check_branch
          %917 = sbr.rel (%p915) target = $region60
        $region59: #{tpu_custom_call.1} parent=27 // pred_region
          %s918 = sand.u32 %s58, 1
          %s919 = scalar_lea.sflag [#allocation16], %s918
          %s920 = sand.u32 %s283, 1
          %s921 = scalar_lea.vmem [#allocation17], %s920
          %s923 = ssub.s32 16, 16
          %924 = vsyncadd %s919, %s923
          %s925 = smul.addr %s66, 16
          %s926 = scalar_lea.hbm %s8, %s925
          %s928 = sshll.u32 %s921, 4
          %s929 = int_to_ptr.vmem [resolvable:$true] %s928
          %931 = dma.hbm_to_vmem [thread:$0]  %s926, 16, %s929, %s919
        $region60: #{tpu_custom_call.1} parent=27 // pred_fallthru
          _
        // Predicated region
        $region61: #{tpu_custom_call.1} parent=27 // pred_check
          %p932 = pneg %p319
        $region62: #{tpu_custom_call.1} parent=27 // pred_check_branch
          %934 = sbr.rel (%p932) target = $region64
        $region63: #{tpu_custom_call.1} parent=27 // pred_region
          %s935 = sand.u32 %s58, 1
          %s936 = scalar_lea.sflag [#allocation19], %s935
          %s937 = sand.u32 %s309, 1
          %s938 = smul.addr %s937, 128
          %s939 = scalar_lea.vmem [#allocation18], %s938
          %s941 = ssub.s32 2048, 2048
          %942 = vsyncadd %s936, %s941
          %s943 = smul.addr %s66, 32
          %s944 = smul.addr %s943, 64
          %s945 = scalar_lea.hbm %s9, %s944
          %s946 = sshll.u32 %s939, 4
          %s947 = int_to_ptr.vmem [resolvable:$true] %s946
          %952 = dma.hbm_to_vmem [thread:$0]  %s945, 2048, %s947, %s936, 128, 128, 8
        $region64: #{tpu_custom_call.1} parent=27 // pred_fallthru
          _
        // Predicated region
        $region65: #{tpu_custom_call.1} parent=27 // pred_check
          %p953 = pneg %p345
        $region66: #{tpu_custom_call.1} parent=27 // pred_check_branch
          %955 = sbr.rel (%p953) target = $region68
        $region67: #{tpu_custom_call.1} parent=27 // pred_region
          %p956 = scmp.lt.s32.totalorder %s66, 2
          %s957 = scalar_select %p956, %s66, 2
          %s958 = smul.addr %s957, 2
          %s959 = scalar_lea.vmem %s10, %s958
        $region68: #{tpu_custom_call.1} parent=27 // pred_fallthru
          _
        // Predicated region
        $region69: #{tpu_custom_call.1} parent=27 // pred_check
          %p960 = pneg %p371
        $region70: #{tpu_custom_call.1} parent=27 // pred_check_branch
          %962 = sbr.rel (%p960) target = $region72
        $region71: #{tpu_custom_call.1} parent=27 // pred_region
          %s963 = sand.u32 %s58, 1
          %s964 = scalar_lea.sflag [#allocation19], %s963
          %s965 = sand.u32 %s361, 1
          %s966 = smul.addr %s965, 64
          %s967 = scalar_lea.vmem [#allocation20], %s966
          %s969 = ssub.s32 1024, 1024
          %970 = vsyncadd %s964, %s969
          %s971 = smul.addr %s66, 16
          %s972 = smul.addr %s971, 64
          %s973 = scalar_lea.hbm %s11, %s972
          %s974 = sshll.u32 %s967, 4
          %s975 = int_to_ptr.vmem [resolvable:$true] %s974
          %980 = dma.hbm_to_vmem [thread:$0]  %s973, 1024, %s975, %s964, 64, 64, 4
        $region72: #{tpu_custom_call.1} parent=27 // pred_fallthru
          _
        // Predicated region
        $region73: #{tpu_custom_call.1} parent=27 // pred_check
          %p981 = pneg %p397
        $region74: #{tpu_custom_call.1} parent=27 // pred_check_branch
          %983 = sbr.rel (%p981) target = $region76
        $region75: #{tpu_custom_call.1} parent=27 // pred_region
          %p984 = scmp.lt.s32.totalorder %s66, 2
          %s985 = scalar_select %p984, %s66, 2
          %s986 = scalar_lea.vmem %s12, %s985
        $region76: #{tpu_custom_call.1} parent=27 // pred_fallthru
          _
        // Predicated region
        $region77: #{tpu_custom_call.1} parent=27 // pred_check
          %p987 = pneg %p423
        $region78: #{tpu_custom_call.1} parent=27 // pred_check_branch
          %989 = sbr.rel (%p987) target = $region80
        $region79: #{tpu_custom_call.1} parent=27 // pred_region
          %p990 = scmp.lt.s32.totalorder %s66, 2
          %s991 = scalar_select %p990, %s66, 2
          %s992 = scalar_lea.vmem %s13, %s991
        $region80: #{tpu_custom_call.1} parent=27 // pred_fallthru
          _
        // Predicated region
        $region81: #{tpu_custom_call.1} parent=27 // pred_check
          %p993 = pneg %p449
        $region82: #{tpu_custom_call.1} parent=27 // pred_check_branch
          %995 = sbr.rel (%p993) target = $region84
        $region83: #{tpu_custom_call.1} parent=27 // pred_region
          %p996 = scmp.lt.s32.totalorder %s66, 2
          %s997 = scalar_select %p996, %s66, 2
          %s998 = scalar_lea.vmem %s14, %s997
        $region84: #{tpu_custom_call.1} parent=27 // pred_fallthru
          _
        // Predicated region
        $region85: #{tpu_custom_call.1} parent=27 // pred_check
          %p999 = pneg %p475
        $region86: #{tpu_custom_call.1} parent=27 // pred_check_branch
          %1001 = sbr.rel (%p999) target = $region88
        $region87: #{tpu_custom_call.1} parent=27 // pred_region
          %p1002 = scmp.lt.s32.totalorder %s66, 2
          %s1003 = scalar_select %p1002, %s66, 2
          %s1004 = scalar_lea.vmem %s15, %s1003
        $region88: #{tpu_custom_call.1} parent=27 // pred_fallthru
          _
        // Predicated region
        $region89: #{tpu_custom_call.1} parent=27 // pred_check
          %p1005 = pneg %p501
        $region90: #{tpu_custom_call.1} parent=27 // pred_check_branch
          %1007 = sbr.rel (%p1005) target = $region92
        $region91: #{tpu_custom_call.1} parent=27 // pred_region
          %p1008 = scmp.lt.s32.totalorder %s66, 2
          %s1009 = scalar_select %p1008, %s66, 2
          %s1010 = scalar_lea.vmem %s16, %s1009
        $region92: #{tpu_custom_call.1} parent=27 // pred_fallthru
          _
        // Predicated region
        $region93: #{tpu_custom_call.1} parent=27 // pred_check
          %p1011 = pneg %p527
        $region94: #{tpu_custom_call.1} parent=27 // pred_check_branch
          %1013 = sbr.rel (%p1011) target = $region96
        $region95: #{tpu_custom_call.1} parent=27 // pred_region
          %p1014 = scmp.lt.s32.totalorder %s66, 2
          %s1015 = scalar_select %p1014, %s66, 2
          %s1016 = scalar_lea.vmem %s17, %s1015
        $region96: #{tpu_custom_call.1} parent=27 // pred_fallthru
          _
        // Predicated region
        $region97: #{tpu_custom_call.1} parent=27 // pred_check
          %p1017 = pneg %p553
        $region98: #{tpu_custom_call.1} parent=27 // pred_check_branch
          %1019 = sbr.rel (%p1017) target = $region100
        $region99: #{tpu_custom_call.1} parent=27 // pred_region
          %s1020 = sand.u32 %s58, 1
          %s1021 = scalar_lea.sflag [#allocation22], %s1020
          %s1022 = sand.u32 %s543, 1
          %s1023 = scalar_lea.vmem [#allocation21], %s1022
          %s1025 = ssub.s32 16, 16
          %1026 = vsyncadd %s1021, %s1025
          %s1027 = smul.addr %s66, 16
          %s1028 = scalar_lea.hbm %s18, %s1027
          %s1030 = sshll.u32 %s1023, 4
          %s1031 = int_to_ptr.vmem [resolvable:$true] %s1030
          %1033 = dma.hbm_to_vmem [thread:$0]  %s1028, 16, %s1031, %s1021
        $region100: #{tpu_custom_call.1} parent=27 // pred_fallthru
          _
        // Predicated region
        $region101: #{tpu_custom_call.1} parent=27 // pred_check
          %p1034 = pneg %p579
        $region102: #{tpu_custom_call.1} parent=27 // pred_check_branch
          %1036 = sbr.rel (%p1034) target = $region104
        $region103: #{tpu_custom_call.1} parent=27 // pred_region
          %s1037 = sand.u32 %s58, 1
          %s1038 = scalar_lea.sflag [#allocation22], %s1037
          %s1039 = sand.u32 %s569, 1
          %s1040 = smul.addr %s1039, 128
          %s1041 = scalar_lea.vmem [#allocation23], %s1040
          %s1043 = ssub.s32 2048, 2048
          %1044 = vsyncadd %s1038, %s1043
          %s1045 = smul.addr %s66, 32
          %s1046 = smul.addr %s1045, 64
          %s1047 = scalar_lea.hbm %s19, %s1046
          %s1048 = sshll.u32 %s1041, 4
          %s1049 = int_to_ptr.vmem [resolvable:$true] %s1048
          %1054 = dma.hbm_to_vmem [thread:$0]  %s1047, 2048, %s1049, %s1038, 128, 128, 8
        $region104: #{tpu_custom_call.1} parent=27 // pred_fallthru
          _
        // Predicated region
        $region105: #{tpu_custom_call.1} parent=27 // pred_check
          %p1055 = pneg %p605
        $region106: #{tpu_custom_call.1} parent=27 // pred_check_branch
          %1057 = sbr.rel (%p1055) target = $region108
        $region107: #{tpu_custom_call.1} parent=27 // pred_region
          %p1058 = scmp.lt.s32.totalorder %s66, 2
          %s1059 = scalar_select %p1058, %s66, 2
          %s1060 = smul.addr %s1059, 2
          %s1061 = scalar_lea.vmem %s20, %s1060
        $region108: #{tpu_custom_call.1} parent=27 // pred_fallthru
          _
        // Predicated region
        $region109: #{tpu_custom_call.1} parent=27 // pred_check
          %p1062 = pneg %p631
        $region110: #{tpu_custom_call.1} parent=27 // pred_check_branch
          %1064 = sbr.rel (%p1062) target = $region112
        $region111: #{tpu_custom_call.1} parent=27 // pred_region
          %s1065 = sand.u32 %s58, 1
          %s1066 = scalar_lea.sflag [#allocation25], %s1065
          %s1067 = sand.u32 %s621, 1
          %s1068 = smul.addr %s1067, 128
          %s1069 = scalar_lea.vmem [#allocation24], %s1068
          %s1071 = ssub.s32 2048, 2048
          %1072 = vsyncadd %s1066, %s1071
          %s1073 = smul.addr %s66, 32
          %s1074 = smul.addr %s1073, 64
          %s1075 = scalar_lea.hbm %s21, %s1074
          %s1076 = sshll.u32 %s1069, 4
          %s1077 = int_to_ptr.vmem [resolvable:$true] %s1076
          %1082 = dma.hbm_to_vmem [thread:$0]  %s1075, 2048, %s1077, %s1066, 64, 64, 4
        $region112: #{tpu_custom_call.1} parent=27 // pred_fallthru
          _
        // Predicated region
        $region113: #{tpu_custom_call.1} parent=27 // pred_check
          %p1083 = pneg %p657
        $region114: #{tpu_custom_call.1} parent=27 // pred_check_branch
          %1085 = sbr.rel (%p1083) target = $region116
        $region115: #{tpu_custom_call.1} parent=27 // pred_region
          %p1086 = scmp.lt.s32.totalorder %s66, 2
          %s1087 = scalar_select %p1086, %s66, 2
          %s1088 = scalar_lea.vmem %s22, %s1087
        $region116: #{tpu_custom_call.1} parent=27 // pred_fallthru
          _
      $region28: #{tpu_custom_call.1} parent=5 // pred_fallthru
        _
      %p1089 = scmp.le.s32.totalorder 1, %s58
      %p1090 = scmp.lt.s32.totalorder %s58, 7
      %p1091 = pnand %p1089, %p1090
      %p1092 = pneg %p1091
      // Predicated region
      $region117: #{tpu_custom_call.1} parent=5 // pred_check
        _
      $region118: #{tpu_custom_call.1} parent=5 // pred_check_branch
        %1094 = sbr.rel (%p1091) target = $region120
      $region119: #{tpu_custom_call.1} parent=5 // pred_region
        %s1095 = ssub.s32 %s58, 1
        %s1096 = sand.u32 %s83, 1
        %s1097 = scalar_lea.sflag [#allocation4], %s1096
        %s1098 = sand.u32 %s83, 1
        %s1099 = smul.addr %s1098, 8
        %s1100 = scalar_lea.vmem [#allocation3], %s1099
        // Predicated region
        $region121: #{tpu_custom_call.1} parent=119 // pred_check
          %p1101 = pneg %p96
        $region122: #{tpu_custom_call.1} parent=119 // pred_check_branch
          %1103 = sbr.rel (%p1101) target = $region124
        $region123: #{tpu_custom_call.1} parent=119 // pred_region
          %1104 = dma.done %s1097, 128
        $region124: #{tpu_custom_call.1} parent=119 // pred_fallthru
          _
        %s1105 = sand.u32 %s63, 1
        %s1106 = scalar_lea.sflag [#allocation7], %s1105
        %s1107 = sand.u32 %s109, 1
        %s1108 = smul.addr %s1107, 16
        %s1109 = scalar_lea.vmem [#allocation6], %s1108
        // Predicated region
        $region125: #{tpu_custom_call.1} parent=119 // pred_check
          %p1110 = pneg %p122
        $region126: #{tpu_custom_call.1} parent=119 // pred_check_branch
          %1112 = sbr.rel (%p1110) target = $region128
        $region127: #{tpu_custom_call.1} parent=119 // pred_region
          %1113 = dma.done %s1106, 256
        $region128: #{tpu_custom_call.1} parent=119 // pred_fallthru
          _
        // Predicated region
        $region129: #{tpu_custom_call.1} parent=119 // pred_check
          %p1114 = pneg %p143
        $region130: #{tpu_custom_call.1} parent=119 // pred_check_branch
          %1116 = sbr.rel (%p1114) target = $region132
        $region131: #{tpu_custom_call.1} parent=119 // pred_region
          %1117 = dma.done [#allocation7], 16
        $region132: #{tpu_custom_call.1} parent=119 // pred_fallthru
          _
        %s1118 = sand.u32 %s63, 1
        %s1119 = scalar_lea.sflag [#allocation10], %s1118
        %s1120 = sand.u32 %s156, 1
        %s1121 = smul.addr %s1120, 192
        %s1122 = scalar_lea.vmem [#allocation9], %s1121
        // Predicated region
        $region133: #{tpu_custom_call.1} parent=119 // pred_check
          %p1123 = pneg %p169
        $region134: #{tpu_custom_call.1} parent=119 // pred_check_branch
          %1125 = sbr.rel (%p1123) target = $region136
        $region135: #{tpu_custom_call.1} parent=119 // pred_region
          %1126 = dma.done %s1119, 3072
        $region136: #{tpu_custom_call.1} parent=119 // pred_fallthru
          _
        %s1127 = sand.u32 %s63, 1
        %s1128 = scalar_lea.sflag [#allocation10], %s1127
        %s1129 = sand.u32 %s182, 1
        %s1130 = smul.addr %s1129, 3
        %s1131 = scalar_lea.vmem [#allocation11], %s1130
        // Predicated region
        $region137: #{tpu_custom_call.1} parent=119 // pred_check
          %p1132 = pneg %p195
        $region138: #{tpu_custom_call.1} parent=119 // pred_check_branch
          %1134 = sbr.rel (%p1132) target = $region140
        $region139: #{tpu_custom_call.1} parent=119 // pred_region
          %1135 = dma.done %s1128, 48
        $region140: #{tpu_custom_call.1} parent=119 // pred_fallthru
          _
        %s1136 = sand.u32 %s63, 1
        %s1137 = scalar_lea.sflag [#allocation13], %s1136
        %s1138 = sand.u32 %s208, 1
        %s1139 = smul.addr %s1138, 64
        %s1140 = scalar_lea.vmem [#allocation12], %s1139
        // Predicated region
        $region141: #{tpu_custom_call.1} parent=119 // pred_check
          %p1141 = pneg %p221
        $region142: #{tpu_custom_call.1} parent=119 // pred_check_branch
          %1143 = sbr.rel (%p1141) target = $region144
        $region143: #{tpu_custom_call.1} parent=119 // pred_region
          %1144 = dma.done %s1137, 1024
        $region144: #{tpu_custom_call.1} parent=119 // pred_fallthru
          _
        %s1145 = sand.u32 %s63, 1
        %s1146 = scalar_lea.sflag [#allocation13], %s1145
        %s1147 = sand.u32 %s234, 1
        %s1148 = scalar_lea.vmem [#allocation14], %s1147
        // Predicated region
        $region145: #{tpu_custom_call.1} parent=119 // pred_check
          %p1149 = pneg %p247
        $region146: #{tpu_custom_call.1} parent=119 // pred_check_branch
          %1151 = sbr.rel (%p1149) target = $region148
        $region147: #{tpu_custom_call.1} parent=119 // pred_region
          %1152 = dma.done %s1146, 16
        $region148: #{tpu_custom_call.1} parent=119 // pred_fallthru
          _
        %s1153 = sand.u32 %s63, 1
        %s1154 = scalar_lea.sflag [#allocation16], %s1153
        %s1155 = sand.u32 %s260, 1
        %s1156 = smul.addr %s1155, 64
        %s1157 = scalar_lea.vmem [#allocation15], %s1156
        // Predicated region
        $region149: #{tpu_custom_call.1} parent=119 // pred_check
          %p1158 = pneg %p273
        $region150: #{tpu_custom_call.1} parent=119 // pred_check_branch
          %1160 = sbr.rel (%p1158) target = $region152
        $region151: #{tpu_custom_call.1} parent=119 // pred_region
          %1161 = dma.done %s1154, 1024
        $region152: #{tpu_custom_call.1} parent=119 // pred_fallthru
          _
        %s1162 = sand.u32 %s63, 1
        %s1163 = scalar_lea.sflag [#allocation16], %s1162
        %s1164 = sand.u32 %s286, 1
        %s1165 = scalar_lea.vmem [#allocation17], %s1164
        // Predicated region
        $region153: #{tpu_custom_call.1} parent=119 // pred_check
          %p1166 = pneg %p299
        $region154: #{tpu_custom_call.1} parent=119 // pred_check_branch
          %1168 = sbr.rel (%p1166) target = $region156
        $region155: #{tpu_custom_call.1} parent=119 // pred_region
          %1169 = dma.done %s1163, 16
        $region156: #{tpu_custom_call.1} parent=119 // pred_fallthru
          _
        %s1170 = sand.u32 %s63, 1
        %s1171 = scalar_lea.sflag [#allocation19], %s1170
        %s1172 = sand.u32 %s312, 1
        %s1173 = smul.addr %s1172, 128
        %s1174 = scalar_lea.vmem [#allocation18], %s1173
        // Predicated region
        $region157: #{tpu_custom_call.1} parent=119 // pred_check
          %p1175 = pneg %p325
        $region158: #{tpu_custom_call.1} parent=119 // pred_check_branch
          %1177 = sbr.rel (%p1175) target = $region160
        $region159: #{tpu_custom_call.1} parent=119 // pred_region
          %1178 = dma.done %s1171, 2048
        $region160: #{tpu_custom_call.1} parent=119 // pred_fallthru
          _
        %s1179 = sand.u32 %s63, 1
        %s1180 = scalar_lea.sflag [#allocation19], %s1179
        %s1181 = sand.u32 %s364, 1
        %s1182 = smul.addr %s1181, 64
        %s1183 = scalar_lea.vmem [#allocation20], %s1182
        // Predicated region
        $region161: #{tpu_custom_call.1} parent=119 // pred_check
          %p1184 = pneg %p377
        $region162: #{tpu_custom_call.1} parent=119 // pred_check_branch
          %1186 = sbr.rel (%p1184) target = $region164
        $region163: #{tpu_custom_call.1} parent=119 // pred_region
          %1187 = dma.done %s1180, 1024
        $region164: #{tpu_custom_call.1} parent=119 // pred_fallthru
          _
        %s1188 = sand.u32 %s63, 1
        %s1189 = scalar_lea.sflag [#allocation22], %s1188
        %s1190 = sand.u32 %s546, 1
        %s1191 = scalar_lea.vmem [#allocation21], %s1190
        // Predicated region
        $region165: #{tpu_custom_call.1} parent=119 // pred_check
          %p1192 = pneg %p559
        $region166: #{tpu_custom_call.1} parent=119 // pred_check_branch
          %1194 = sbr.rel (%p1192) target = $region168
        $region167: #{tpu_custom_call.1} parent=119 // pred_region
          %1195 = dma.done %s1189, 16
        $region168: #{tpu_custom_call.1} parent=119 // pred_fallthru
          _
        %s1196 = sand.u32 %s63, 1
        %s1197 = scalar_lea.sflag [#allocation22], %s1196
        %s1198 = sand.u32 %s572, 1
        %s1199 = smul.addr %s1198, 128
        %s1200 = scalar_lea.vmem [#allocation23], %s1199
        // Predicated region
        $region169: #{tpu_custom_call.1} parent=119 // pred_check
          %p1201 = pneg %p585
        $region170: #{tpu_custom_call.1} parent=119 // pred_check_branch
          %1203 = sbr.rel (%p1201) target = $region172
        $region171: #{tpu_custom_call.1} parent=119 // pred_region
          %1204 = dma.done %s1197, 2048
        $region172: #{tpu_custom_call.1} parent=119 // pred_fallthru
          _
        %s1205 = sand.u32 %s63, 1
        %s1206 = scalar_lea.sflag [#allocation25], %s1205
        %s1207 = sand.u32 %s624, 1
        %s1208 = smul.addr %s1207, 128
        %s1209 = scalar_lea.vmem [#allocation24], %s1208
        // Predicated region
        $region173: #{tpu_custom_call.1} parent=119 // pred_check
          %p1210 = pneg %p637
        $region174: #{tpu_custom_call.1} parent=119 // pred_check_branch
          %1212 = sbr.rel (%p1210) target = $region176
        $region175: #{tpu_custom_call.1} parent=119 // pred_region
          %1213 = dma.done %s1206, 2048
        $region176: #{tpu_custom_call.1} parent=119 // pred_fallthru
          _
        // Predicated region
        $region177: #{tpu_custom_call.1} parent=119 // pred_check
          %p1214 = pneg %p684
        $region178: #{tpu_custom_call.1} parent=119 // pred_check_branch
          %1216 = sbr.rel (%p1214) target = $region180
        $region179: #{tpu_custom_call.1} parent=119 // pred_region
          %1217 = dma.done [#allocation25], 1024
        $region180: #{tpu_custom_call.1} parent=119 // pred_fallthru
          _
        %s1218 = sand.u32 %s83, 1
        %s1219 = scalar_lea.sflag [#allocation4], %s1218
        %s1220 = sand.u32 %s83, 1
        %s1221 = smul.addr %s1220, 8
        %s1222 = scalar_lea.vmem [#allocation3], %s1221
        %p1223 = pneg %p96
        %p1224 = pneg %p93
        %s1225 = sand.u32 %s63, 1
        %s1226 = scalar_lea.sflag [#allocation7], %s1225
        %s1227 = sand.u32 %s109, 1
        %s1228 = smul.addr %s1227, 16
        %s1229 = scalar_lea.vmem [#allocation6], %s1228
        %p1230 = pneg %p122
        %p1231 = pneg %p119
        %p1232 = pneg %p143
        %p1233 = pneg %p140
        %s1234 = sand.u32 %s63, 1
        %s1235 = scalar_lea.sflag [#allocation10], %s1234
        %s1236 = sand.u32 %s156, 1
        %s1237 = smul.addr %s1236, 192
        %s1238 = scalar_lea.vmem [#allocation9], %s1237
        %p1239 = pneg %p169
        %p1240 = pneg %p166
        %s1241 = sand.u32 %s63, 1
        %s1242 = scalar_lea.sflag [#allocation10], %s1241
        %s1243 = sand.u32 %s182, 1
        %s1244 = smul.addr %s1243, 3
        %s1245 = scalar_lea.vmem [#allocation11], %s1244
        %p1246 = pneg %p195
        %p1247 = pneg %p192
        %s1248 = sand.u32 %s63, 1
        %s1249 = scalar_lea.sflag [#allocation13], %s1248
        %s1250 = sand.u32 %s208, 1
        %s1251 = smul.addr %s1250, 64
        %s1252 = scalar_lea.vmem [#allocation12], %s1251
        %p1253 = pneg %p221
        %p1254 = pneg %p218
        %s1255 = sand.u32 %s63, 1
        %s1256 = scalar_lea.sflag [#allocation13], %s1255
        %s1257 = sand.u32 %s234, 1
        %s1258 = scalar_lea.vmem [#allocation14], %s1257
        %p1259 = pneg %p247
        %p1260 = pneg %p244
        %s1261 = sand.u32 %s63, 1
        %s1262 = scalar_lea.sflag [#allocation16], %s1261
        %s1263 = sand.u32 %s260, 1
        %s1264 = smul.addr %s1263, 64
        %s1265 = scalar_lea.vmem [#allocation15], %s1264
        %p1266 = pneg %p273
        %p1267 = pneg %p270
        %s1268 = sand.u32 %s63, 1
        %s1269 = scalar_lea.sflag [#allocation16], %s1268
        %s1270 = sand.u32 %s286, 1
        %s1271 = scalar_lea.vmem [#allocation17], %s1270
        %p1272 = pneg %p299
        %p1273 = pneg %p296
        %s1274 = sand.u32 %s63, 1
        %s1275 = scalar_lea.sflag [#allocation19], %s1274
        %s1276 = sand.u32 %s312, 1
        %s1277 = smul.addr %s1276, 128
        %s1278 = scalar_lea.vmem [#allocation18], %s1277
        %p1279 = pneg %p325
        %p1280 = pneg %p322
        %p1281 = scmp.lt.s32.totalorder %s68, 2
        %s1282 = scalar_select %p1281, %s68, 2
        %s1283 = smul.addr %s1282, 2
        %s1284 = scalar_lea.vmem %s10, %s1283
        %p1285 = pneg %p351
        %p1286 = pneg %p348
        %s1287 = sand.u32 %s63, 1
        %s1288 = scalar_lea.sflag [#allocation19], %s1287
        %s1289 = sand.u32 %s364, 1
        %s1290 = smul.addr %s1289, 64
        %s1291 = scalar_lea.vmem [#allocation20], %s1290
        %p1292 = pneg %p377
        %p1293 = pneg %p374
        %p1294 = scmp.lt.s32.totalorder %s68, 2
        %s1295 = scalar_select %p1294, %s68, 2
        %s1296 = scalar_lea.vmem %s12, %s1295
        %p1297 = pneg %p403
        %p1298 = pneg %p400
        %p1299 = scmp.lt.s32.totalorder %s68, 2
        %s1300 = scalar_select %p1299, %s68, 2
        %s1301 = scalar_lea.vmem %s13, %s1300
        %p1302 = pneg %p429
        %p1303 = pneg %p426
        %p1304 = scmp.lt.s32.totalorder %s68, 2
        %s1305 = scalar_select %p1304, %s68, 2
        %s1306 = scalar_lea.vmem %s14, %s1305
        %p1307 = pneg %p455
        %p1308 = pneg %p452
        %p1309 = scmp.lt.s32.totalorder %s68, 2
        %s1310 = scalar_select %p1309, %s68, 2
        %s1311 = scalar_lea.vmem %s15, %s1310
        %p1312 = pneg %p481
        %p1313 = pneg %p478
        %p1314 = scmp.lt.s32.totalorder %s68, 2
        %s1315 = scalar_select %p1314, %s68, 2
        %s1316 = scalar_lea.vmem %s16, %s1315
        %p1317 = pneg %p507
        %p1318 = pneg %p504
        %p1319 = scmp.lt.s32.totalorder %s68, 2
        %s1320 = scalar_select %p1319, %s68, 2
        %s1321 = scalar_lea.vmem %s17, %s1320
        %p1322 = pneg %p533
        %p1323 = pneg %p530
        %s1324 = sand.u32 %s63, 1
        %s1325 = scalar_lea.sflag [#allocation22], %s1324
        %s1326 = sand.u32 %s546, 1
        %s1327 = scalar_lea.vmem [#allocation21], %s1326
        %p1328 = pneg %p559
        %p1329 = pneg %p556
        %s1330 = sand.u32 %s63, 1
        %s1331 = scalar_lea.sflag [#allocation22], %s1330
        %s1332 = sand.u32 %s572, 1
        %s1333 = smul.addr %s1332, 128
        %s1334 = scalar_lea.vmem [#allocation23], %s1333
        %p1335 = pneg %p585
        %p1336 = pneg %p582
        %p1337 = scmp.lt.s32.totalorder %s68, 2
        %s1338 = scalar_select %p1337, %s68, 2
        %s1339 = smul.addr %s1338, 2
        %s1340 = scalar_lea.vmem %s20, %s1339
        %p1341 = pneg %p611
        %p1342 = pneg %p608
        %s1343 = sand.u32 %s63, 1
        %s1344 = scalar_lea.sflag [#allocation25], %s1343
        %s1345 = sand.u32 %s624, 1
        %s1346 = smul.addr %s1345, 128
        %s1347 = scalar_lea.vmem [#allocation24], %s1346
        %p1348 = pneg %p637
        %p1349 = pneg %p634
        %p1350 = scmp.lt.s32.totalorder %s68, 2
        %s1351 = scalar_select %p1350, %s68, 2
        %s1352 = scalar_lea.vmem %s22, %s1351
        %p1353 = pneg %p663
        %p1354 = pneg %p660
        %p1355 = pneg %p684
        %p1356 = pneg %p681
        %p1357 = pneg %p705
        %p1358 = pneg %p702
        %p1359 = pneg %p731
        %p1360 = pneg %p728
        %s1361 = sand.u32 %s718, 1
        %s1362 = scalar_lea.sflag [#allocation5], %s1361
        %s1363 = sand.u32 %s718, 1
        %s1364 = smul.addr %s1363, 8
        %s1365 = scalar_lea.vmem [#allocation27], %s1364
        %p1366 = scmp.lt.s32.totalorder %s68, 2
        %s1367 = scalar_select %p1366, %s68, 2
        %s1368 = smul.addr %s1367, 2
        %s1369 = scalar_lea.vmem %s10, %s1368
        %p1370 = scmp.lt.s32.totalorder %s68, 2
        %s1371 = scalar_select %p1370, %s68, 2
        %s1372 = scalar_lea.vmem %s12, %s1371
        %p1373 = scmp.lt.s32.totalorder %s68, 2
        %s1374 = scalar_select %p1373, %s68, 2
        %s1375 = scalar_lea.vmem %s13, %s1374
        %p1376 = scmp.lt.s32.totalorder %s68, 2
        %s1377 = scalar_select %p1376, %s68, 2
        %s1378 = scalar_lea.vmem %s14, %s1377
        %p1379 = scmp.lt.s32.totalorder %s68, 2
        %s1380 = scalar_select %p1379, %s68, 2
        %s1381 = scalar_lea.vmem %s15, %s1380
        %p1382 = scmp.lt.s32.totalorder %s68, 2
        %s1383 = scalar_select %p1382, %s68, 2
        %s1384 = scalar_lea.vmem %s16, %s1383
        %p1385 = scmp.lt.s32.totalorder %s68, 2
        %s1386 = scalar_select %p1385, %s68, 2
        %s1387 = scalar_lea.vmem %s17, %s1386
        %p1388 = scmp.lt.s32.totalorder %s68, 2
        %s1389 = scalar_select %p1388, %s68, 2
        %s1390 = smul.addr %s1389, 2
        %s1391 = scalar_lea.vmem %s20, %s1390
        %p1392 = scmp.lt.s32.totalorder %s68, 2
        %s1393 = scalar_select %p1392, %s68, 2
        %s1394 = scalar_lea.vmem %s22, %s1393
        %p1396 = scmp.eq.s32.totalorder %s68, 0
        // Predicated region
        $region181: #{tpu_custom_call.1} parent=119 // pred_check
          %p1397 = pneg %p1396
        $region182: #{tpu_custom_call.1} parent=119 // pred_check_branch
          %1399 = sbr.rel (%p1397) target = $region184
        $region183: #{tpu_custom_call.1} parent=119 // pred_region
          %v1400 = vld [vmem:[%s1100] sm:$0xff]
          %1401 = vst [vmem:[#allocation2] sm:$0xff] %v1400
        $region184: #{tpu_custom_call.1} parent=119 // pred_fallthru
          _
        %v1402 = vld [vmem:[#allocation2] sm:$0xff]
        %v1403 = vld [vmem:[%s1109] sm:$0xff]
        %v1404 = vld [vmem:[%s1109 + $0x8] sm:$0xff]
        %v1405 = vpack.c.bf16 %v1402, %v1402
        %v1406 = vld [vmem:[%s1122] sm:$0xff]
        %v1407 = vld [vmem:[%s1122 + $0x8] sm:$0xf]
        %v1408 = vld [vmem:[%s1122 + $0xc] sm:$0xff]
        %v1409 = vld [vmem:[%s1122 + $0x14] sm:$0xf]
        %v1410 = vld [vmem:[%s1122 + $0x18] sm:$0xff]
        %v1411 = vld [vmem:[%s1122 + $0x20] sm:$0xf]
        %v1412 = vld [vmem:[%s1122 + $0x24] sm:$0xff]
        %v1413 = vld [vmem:[%s1122 + $0x2c] sm:$0xf]
        %v1414 = vld [vmem:[%s1122 + $0x30] sm:$0xff]
        %v1415 = vld [vmem:[%s1122 + $0x38] sm:$0xf]
        %v1416 = vld [vmem:[%s1122 + $0x3c] sm:$0xff]
        %v1417 = vld [vmem:[%s1122 + $0x44] sm:$0xf]
        %v1418 = vld [vmem:[%s1122 + $0x48] sm:$0xff]
        %v1419 = vld [vmem:[%s1122 + $0x50] sm:$0xf]
        %v1420 = vld [vmem:[%s1122 + $0x54] sm:$0xff]
        %v1421 = vld [vmem:[%s1122 + $0x5c] sm:$0xf]
        %v1422 = vld [vmem:[%s1122 + $0x60] sm:$0xff]
        %v1423 = vld [vmem:[%s1122 + $0x68] sm:$0xf]
        %v1424 = vld [vmem:[%s1122 + $0x6c] sm:$0xff]
        %v1425 = vld [vmem:[%s1122 + $0x74] sm:$0xf]
        %v1426 = vld [vmem:[%s1122 + $0x78] sm:$0xff]
        %v1427 = vld [vmem:[%s1122 + $0x80] sm:$0xf]
        %v1428 = vld [vmem:[%s1122 + $0x84] sm:$0xff]
        %v1429 = vld [vmem:[%s1122 + $0x8c] sm:$0xf]
        %v1430 = vld [vmem:[%s1122 + $0x90] sm:$0xff]
        %v1431 = vld [vmem:[%s1122 + $0x98] sm:$0xf]
        %v1432 = vld [vmem:[%s1122 + $0x9c] sm:$0xff]
        %v1433 = vld [vmem:[%s1122 + $0xa4] sm:$0xf]
        %v1434 = vld [vmem:[%s1122 + $0xa8] sm:$0xff]
        %v1435 = vld [vmem:[%s1122 + $0xb0] sm:$0xf]
        %v1436 = vld [vmem:[%s1122 + $0xb4] sm:$0xff]
        %v1437 = vld [vmem:[%s1122 + $0xbc] sm:$0xf]
        %v1438 = vld [vmem:[%s1131] sm:$0x7]
        %v1440 = vlaneseq
        %v1441 = vshrl.u32 %v1440, 7
        %v1442 = vsub.s32 0, %v1441
        %v1443 = vrot.slane %v1438, %v1442
        %v1444 = vlaneseq
        %v1445 = vshrl.u32 %v1444, 7
        %v1446 = vsub.s32 1, %v1445
        %v1447 = vrot.slane %v1438, %v1446
        %v1448 = vlaneseq
        %v1449 = vshrl.u32 %v1448, 7
        %v1450 = vsub.s32 2, %v1449
        %v1451 = vrot.slane %v1438, %v1450
        %v1487 = vunpack.c.l.b16 %v1406
        %v1488 = vunpack.c.h.b16 %v1406
        %v1489 = vunpack.c.l.b16 %v1407
        %v1490 = vunpack.c.l.b16 %v1408
        %v1491 = vunpack.c.h.b16 %v1408
        %v1492 = vunpack.c.l.b16 %v1409
        %v1493 = vunpack.c.l.b16 %v1410
        %v1494 = vunpack.c.h.b16 %v1410
        %v1495 = vunpack.c.l.b16 %v1411
        %v1496 = vunpack.c.l.b16 %v1412
        %v1497 = vunpack.c.h.b16 %v1412
        %v1498 = vunpack.c.l.b16 %v1413
        %v1499 = vunpack.c.l.b16 %v1414
        %v1500 = vunpack.c.h.b16 %v1414
        %v1501 = vunpack.c.l.b16 %v1415
        %v1502 = vunpack.c.l.b16 %v1416
        %v1503 = vunpack.c.h.b16 %v1416
        %v1504 = vunpack.c.l.b16 %v1417
        %v1505 = vunpack.c.l.b16 %v1418
        %v1506 = vunpack.c.h.b16 %v1418
        %v1507 = vunpack.c.l.b16 %v1419
        %v1508 = vunpack.c.l.b16 %v1420
        %v1509 = vunpack.c.h.b16 %v1420
        %v1510 = vunpack.c.l.b16 %v1421
        %v1511 = vunpack.c.l.b16 %v1422
        %v1512 = vunpack.c.h.b16 %v1422
        %v1513 = vunpack.c.l.b16 %v1423
        %v1514 = vunpack.c.l.b16 %v1424
        %v1515 = vunpack.c.h.b16 %v1424
        %v1516 = vunpack.c.l.b16 %v1425
        %v1517 = vunpack.c.l.b16 %v1426
        %v1518 = vunpack.c.h.b16 %v1426
        %v1519 = vunpack.c.l.b16 %v1427
        %v1520 = vunpack.c.l.b16 %v1428
        %v1521 = vunpack.c.h.b16 %v1428
        %v1522 = vunpack.c.l.b16 %v1429
        %v1523 = vunpack.c.l.b16 %v1430
        %v1524 = vunpack.c.h.b16 %v1430
        %v1525 = vunpack.c.l.b16 %v1431
        %v1526 = vunpack.c.l.b16 %v1432
        %v1527 = vunpack.c.h.b16 %v1432
        %v1528 = vunpack.c.l.b16 %v1433
        %v1529 = vunpack.c.l.b16 %v1434
        %v1530 = vunpack.c.h.b16 %v1434
        %v1531 = vunpack.c.l.b16 %v1435
        %v1532 = vunpack.c.l.b16 %v1436
        %v1533 = vunpack.c.h.b16 %v1436
        %v1534 = vunpack.c.l.b16 %v1437
        %v1535 = vpack.c.b16 %v1490, %v1487
        %v1536 = vpack.c.b16 %v1491, %v1488
        %v1537 = vpack.c.b16 %v1492, %v1489
        %v1538 = vpack.c.b16 %v1496, %v1493
        %v1539 = vpack.c.b16 %v1497, %v1494
        %v1540 = vpack.c.b16 %v1498, %v1495
        %v1541 = vpack.c.b16 %v1502, %v1499
        %v1542 = vpack.c.b16 %v1503, %v1500
        %v1543 = vpack.c.b16 %v1504, %v1501
        %v1544 = vpack.c.b16 %v1508, %v1505
        %v1545 = vpack.c.b16 %v1509, %v1506
        %v1546 = vpack.c.b16 %v1510, %v1507
        %v1547 = vpack.c.b16 %v1514, %v1511
        %v1548 = vpack.c.b16 %v1515, %v1512
        %v1549 = vpack.c.b16 %v1516, %v1513
        %v1550 = vpack.c.b16 %v1520, %v1517
        %v1551 = vpack.c.b16 %v1521, %v1518
        %v1552 = vpack.c.b16 %v1522, %v1519
        %v1553 = vpack.c.b16 %v1526, %v1523
        %v1554 = vpack.c.b16 %v1527, %v1524
        %v1555 = vpack.c.b16 %v1528, %v1525
        %v1556 = vpack.c.b16 %v1532, %v1529
        %v1557 = vpack.c.b16 %v1533, %v1530
        %v1558 = vpack.c.b16 %v1534, %v1531
        %1583 = vmatprep.subr.bf16.mxu0 %v1557
        %1584 = vmatpush1.bf16.msra.mxu0 %v1556
        %1585 = vmatprep.subr.bf16.mxu0 %v1554
        %1586 = vmatpush1.bf16.msra.mxu0 %v1553
        %1587 = vmatprep.subr.bf16.mxu0 %v1551
        %1588 = vmatpush1.bf16.msra.mxu0 %v1550
        %1589 = vmatprep.subr.bf16.mxu0 %v1548
        %1590 = vmatpush1.bf16.msra.mxu0 %v1547
        %1591 = vmatprep.subr.bf16.mxu0 %v1545
        %1592 = vmatpush1.bf16.msra.mxu0 %v1544
        %1593 = vmatprep.subr.bf16.mxu0 %v1542
        %1594 = vmatpush1.bf16.msra.mxu0 %v1541
        %1595 = vmatprep.subr.bf16.mxu0 %v1539
        %1596 = vmatpush1.bf16.msra.mxu0 %v1538
        %1597 = vmatprep.subr.bf16.mxu0 %v1536
        %1598 = vmatpush1.bf16.msra.mxu0 %v1535
        %1599 = vmatprep.subr.bf16.mxu0 0
        %1600 = vmatpush2.bf16.msra.mxu0 0
        %1601 = vmatprep.subr.bf16.mxu0 0
        %1602 = vmatpush2.bf16.msra.mxu0 0
        %1603 = vmatprep.subr.bf16.mxu0 0
        %1604 = vmatpush2.bf16.msra.mxu0 0
        %1605 = vmatprep.subr.bf16.mxu0 0
        %1606 = vmatpush2.bf16.msra.mxu0 0
        %1607 = vmatprep.subr.bf16.mxu0 0
        %1608 = vmatpush2.bf16.msra.mxu0 0
        %1609 = vmatprep.subr.bf16.mxu0 0
        %1610 = vmatpush2.bf16.msra.mxu0 0
        %1611 = vmatprep.subr.bf16.mxu0 0
        %1612 = vmatpush2.bf16.msra.mxu0 0
        %1613 = vmatprep.subr.bf16.mxu0 0
        %1614 = vmatpush2.bf16.msra.mxu0 0
        %1615 = vmatprep.mubr.bf16.mxu0 0
        %1616 = vmatmul.mubr.bf16.gmra.mxu0 %v1405
        %v1617 = vpop.f32.mrf.mxu0
        %v1618 = vadd.f32 %v1443, %v1617
        %v1619 = vpop.f32.mrf.mxu0
        %v1620 = vadd.f32 %v1447, %v1619
        %v1621 = vpop.f32.mrf.mxu0
        %v1622 = vpop.f32.mrf.mxu0
        %1623 = vdwg.mxu0
        %1624 = vmatprep.subr.bf16.mxu0 0
        %1625 = vmatpush1.bf16.msra.mxu0 %v1558
        %1626 = vmatprep.subr.bf16.mxu0 0
        %1627 = vmatpush1.bf16.msra.mxu0 %v1555
        %1628 = vmatprep.subr.bf16.mxu0 0
        %1629 = vmatpush1.bf16.msra.mxu0 %v1552
        %1630 = vmatprep.subr.bf16.mxu0 0
        %1631 = vmatpush1.bf16.msra.mxu0 %v1549
        %1632 = vmatprep.subr.bf16.mxu0 0
        %1633 = vmatpush1.bf16.msra.mxu0 %v1546
        %1634 = vmatprep.subr.bf16.mxu0 0
        %1635 = vmatpush1.bf16.msra.mxu0 %v1543
        %1636 = vmatprep.subr.bf16.mxu0 0
        %1637 = vmatpush1.bf16.msra.mxu0 %v1540
        %1638 = vmatprep.subr.bf16.mxu0 0
        %1639 = vmatpush1.bf16.msra.mxu0 %v1537
        %1640 = vmatprep.subr.bf16.mxu0 0
        %1641 = vmatpush2.bf16.msra.mxu0 0
        %1642 = vmatprep.subr.bf16.mxu0 0
        %1643 = vmatpush2.bf16.msra.mxu0 0
        %1644 = vmatprep.subr.bf16.mxu0 0
        %1645 = vmatpush2.bf16.msra.mxu0 0
        %1646 = vmatprep.subr.bf16.mxu0 0
        %1647 = vmatpush2.bf16.msra.mxu0 0
        %1648 = vmatprep.subr.bf16.mxu0 0
        %1649 = vmatpush2.bf16.msra.mxu0 0
        %1650 = vmatprep.subr.bf16.mxu0 0
        %1651 = vmatpush2.bf16.msra.mxu0 0
        %1652 = vmatprep.subr.bf16.mxu0 0
        %1653 = vmatpush2.bf16.msra.mxu0 0
        %1654 = vmatprep.subr.bf16.mxu0 0
        %1655 = vmatpush2.bf16.msra.mxu0 0
        %1656 = vmatprep.mubr.bf16.mxu0 0
        %1657 = vmatmul.mubr.bf16.gmra.mxu0 %v1405
        %v1658 = vpop.f32.mrf.mxu0
        %v1659 = vadd.f32 %v1451, %v1658
        %v1660 = vpop.f32.mrf.mxu0
        %v1661 = vpop.f32.mrf.mxu0
        %v1662 = vpop.f32.mrf.mxu0
        %1663 = vdwg.mxu0
        %v1664 = vpack.c.bf16 %v1618, %v1618
        %v1665 = vpack.c.bf16 %v1620, %v1620
        %v1666 = vpack.c.bf16 %v1659, %v1659
        %vm1667 = vcmask 261120
        %v1669 = vsel %vm1667, %v1664, 0
        %v1672 = vsel %vm1667, %v1665, 0
        %1674 = vmatprep.subr.bf16.mxu0 0
        %1675 = vmatpush1.bf16.xpose.msra.mxu0 0
        %1676 = vmatprep.subr.bf16.mxu0 0
        %1677 = vmatpush1.bf16.xpose.msra.mxu0 0
        %1678 = vmatprep.subr.bf16.mxu0 0
        %1679 = vmatpush1.bf16.xpose.msra.mxu0 0
        %1680 = vmatprep.subr.bf16.mxu0 0
        %1681 = vmatpush1.bf16.xpose.msra.mxu0 0
        %1682 = vmatprep.subr.bf16.mxu0 0
        %1683 = vmatpush1.bf16.xpose.msra.mxu0 0
        %1684 = vmatprep.subr.bf16.mxu0 0
        %1685 = vmatpush1.bf16.xpose.msra.mxu0 0
        %1686 = vmatprep.subr.bf16.mxu0 0
        %1687 = vmatpush1.bf16.xpose.msra.mxu0 0
        %1688 = vmatprep.subr.bf16.mxu0 0
        %1689 = vmatpush1.bf16.xpose.msra.mxu0 %v1672
        %1690 = vmatprep.subr.bf16.mxu0 0
        %1691 = vmatpush2.bf16.xpose.msra.mxu0 0
        %1692 = vmatprep.subr.bf16.mxu0 0
        %1693 = vmatpush2.bf16.xpose.msra.mxu0 0
        %1694 = vmatprep.subr.bf16.mxu0 0
        %1695 = vmatpush2.bf16.xpose.msra.mxu0 0
        %1696 = vmatprep.subr.bf16.mxu0 0
        %1697 = vmatpush2.bf16.xpose.msra.mxu0 0
        %1698 = vmatprep.subr.bf16.mxu0 0
        %1699 = vmatpush2.bf16.xpose.msra.mxu0 0
        %1700 = vmatprep.subr.bf16.mxu0 0
        %1701 = vmatpush2.bf16.xpose.msra.mxu0 0
        %1702 = vmatprep.subr.bf16.mxu0 0
        %1703 = vmatpush2.bf16.xpose.msra.mxu0 0
        %1704 = vmatprep.subr.bf16.mxu0 0
        %1705 = vmatpush2.bf16.xpose.msra.mxu0 0
        %1706 = vmatprep.mubr.bf16.mxu0 0
        %1707 = vmatmul.mubr.bf16.gmra.mxu0 %v1669
        %v1708 = vpop.f32.mrf.mxu0
        %v1709 = vadd.f32 0.0, %v1708
        %v1710 = vpop.f32.mrf.mxu0
        %v1711 = vpop.f32.mrf.mxu0
        %v1712 = vpop.f32.mrf.mxu0
        %1713 = vdwg.mxu0
        %vm1714 = vcmask 64512
        %v1715 = vsel %vm1714, %v1709, -inf
        %1716 = vmax.xlane.f32.xlu0 %v1715
        %v1717 = vpop.xlane.xlu0 %1716
        %v1718 = vsub.f32 %v1709, %v1717
        %v1719 = vmul.f32 %v1718, 1.442695
        %v1720 = vpow.pop %v1719
        %v1721 = vsel %vm1714, %v1720, 0.0
        %1722 = vadd.xlane.f32.xlu0 %v1721
        %v1723 = vpop.xlane.xlu0 %1722
        %v1724 = vrcp.pop %v1723
        %v1725 = vmul.f32 %v1720, %v1724
        %v1726 = vpack.c.bf16 %v1725, %v1725
        %v1728 = vsel %vm1714, %v1726, 0
        %vm1730 = vcmask 1043456
        %v1732 = vsel %vm1730, %v1666, 0
        %1734 = vmatprep.subr.bf16.mxu0 0
        %1735 = vmatpush1.bf16.msra.mxu0 0
        %1736 = vmatprep.subr.bf16.mxu0 0
        %1737 = vmatpush1.bf16.msra.mxu0 0
        %1738 = vmatprep.subr.bf16.mxu0 0
        %1739 = vmatpush1.bf16.msra.mxu0 0
        %1740 = vmatprep.subr.bf16.mxu0 0
        %1741 = vmatpush1.bf16.msra.mxu0 0
        %1742 = vmatprep.subr.bf16.mxu0 0
        %1743 = vmatpush1.bf16.msra.mxu0 0
        %1744 = vmatprep.subr.bf16.mxu0 0
        %1745 = vmatpush1.bf16.msra.mxu0 0
        %1746 = vmatprep.subr.bf16.mxu0 0
        %1747 = vmatpush1.bf16.msra.mxu0 0
        %1748 = vmatprep.subr.bf16.mxu0 0
        %1749 = vmatpush1.bf16.msra.mxu0 %v1732
        %1750 = vmatprep.subr.bf16.mxu0 0
        %1751 = vmatpush2.bf16.msra.mxu0 0
        %1752 = vmatprep.subr.bf16.mxu0 0
        %1753 = vmatpush2.bf16.msra.mxu0 0
        %1754 = vmatprep.subr.bf16.mxu0 0
        %1755 = vmatpush2.bf16.msra.mxu0 0
        %1756 = vmatprep.subr.bf16.mxu0 0
        %1757 = vmatpush2.bf16.msra.mxu0 0
        %1758 = vmatprep.subr.bf16.mxu0 0
        %1759 = vmatpush2.bf16.msra.mxu0 0
        %1760 = vmatprep.subr.bf16.mxu0 0
        %1761 = vmatpush2.bf16.msra.mxu0 0
        %1762 = vmatprep.subr.bf16.mxu0 0
        %1763 = vmatpush2.bf16.msra.mxu0 0
        %1764 = vmatprep.subr.bf16.mxu0 0
        %1765 = vmatpush2.bf16.msra.mxu0 0
        %1766 = vmatprep.mubr.bf16.mxu0 0
        %1767 = vmatmul.mubr.bf16.gmra.mxu0 %v1728
        %v1768 = vpop.f32.mrf.mxu0
        %v1769 = vadd.f32 0.0, %v1768
        %v1770 = vpop.f32.mrf.mxu0
        %v1771 = vpop.f32.mrf.mxu0
        %v1772 = vpop.f32.mrf.mxu0
        %1773 = vdwg.mxu0
        %1775 = vrot.lane.b32.xlu0 %v1664, 96
        %v1776 = vpop.permute.xlu0 %1775
        %1778 = vrot.lane.b32.xlu0 %v1665, 96
        %v1779 = vpop.permute.xlu0 %1778
        %v1781 = vsel %vm1667, %v1776, 0
        %v1784 = vsel %vm1667, %v1779, 0
        %1786 = vmatprep.subr.bf16.mxu0 0
        %1787 = vmatpush1.bf16.xpose.msra.mxu0 0
        %1788 = vmatprep.subr.bf16.mxu0 0
        %1789 = vmatpush1.bf16.xpose.msra.mxu0 0
        %1790 = vmatprep.subr.bf16.mxu0 0
        %1791 = vmatpush1.bf16.xpose.msra.mxu0 0
        %1792 = vmatprep.subr.bf16.mxu0 0
        %1793 = vmatpush1.bf16.xpose.msra.mxu0 0
        %1794 = vmatprep.subr.bf16.mxu0 0
        %1795 = vmatpush1.bf16.xpose.msra.mxu0 0
        %1796 = vmatprep.subr.bf16.mxu0 0
        %1797 = vmatpush1.bf16.xpose.msra.mxu0 0
        %1798 = vmatprep.subr.bf16.mxu0 0
        %1799 = vmatpush1.bf16.xpose.msra.mxu0 0
        %1800 = vmatprep.subr.bf16.mxu0 0
        %1801 = vmatpush1.bf16.xpose.msra.mxu0 %v1784
        %1802 = vmatprep.subr.bf16.mxu0 0
        %1803 = vmatpush2.bf16.xpose.msra.mxu0 0
        %1804 = vmatprep.subr.bf16.mxu0 0
        %1805 = vmatpush2.bf16.xpose.msra.mxu0 0
        %1806 = vmatprep.subr.bf16.mxu0 0
        %1807 = vmatpush2.bf16.xpose.msra.mxu0 0
        %1808 = vmatprep.subr.bf16.mxu0 0
        %1809 = vmatpush2.bf16.xpose.msra.mxu0 0
        %1810 = vmatprep.subr.bf16.mxu0 0
        %1811 = vmatpush2.bf16.xpose.msra.mxu0 0
        %1812 = vmatprep.subr.bf16.mxu0 0
        %1813 = vmatpush2.bf16.xpose.msra.mxu0 0
        %1814 = vmatprep.subr.bf16.mxu0 0
        %1815 = vmatpush2.bf16.xpose.msra.mxu0 0
        %1816 = vmatprep.subr.bf16.mxu0 0
        %1817 = vmatpush2.bf16.xpose.msra.mxu0 0
        %1818 = vmatprep.mubr.bf16.mxu0 0
        %1819 = vmatmul.mubr.bf16.gmra.mxu0 %v1781
        %v1820 = vpop.f32.mrf.mxu0
        %v1821 = vadd.f32 0.0, %v1820
        %v1822 = vpop.f32.mrf.mxu0
        %v1823 = vpop.f32.mrf.mxu0
        %v1824 = vpop.f32.mrf.mxu0
        %1825 = vdwg.mxu0
        %v1826 = vsel %vm1714, %v1821, -inf
        %1827 = vmax.xlane.f32.xlu0 %v1826
        %v1828 = vpop.xlane.xlu0 %1827
        %v1829 = vsub.f32 %v1821, %v1828
        %v1830 = vmul.f32 %v1829, 1.442695
        %v1831 = vpow.pop %v1830
        %v1832 = vsel %vm1714, %v1831, 0.0
        %1833 = vadd.xlane.f32.xlu0 %v1832
        %v1834 = vpop.xlane.xlu0 %1833
        %v1835 = vrcp.pop %v1834
        %v1836 = vmul.f32 %v1831, %v1835
        %v1837 = vpack.c.bf16 %v1836, %v1836
        %1839 = vrot.lane.b32.xlu0 %v1666, 96
        %v1840 = vpop.permute.xlu0 %1839
        %v1842 = vsel %vm1714, %v1837, 0
        %v1845 = vsel %vm1730, %v1840, 0
        %1847 = vmatprep.subr.bf16.mxu0 0
        %1848 = vmatpush1.bf16.msra.mxu0 0
        %1849 = vmatprep.subr.bf16.mxu0 0
        %1850 = vmatpush1.bf16.msra.mxu0 0
        %1851 = vmatprep.subr.bf16.mxu0 0
        %1852 = vmatpush1.bf16.msra.mxu0 0
        %1853 = vmatprep.subr.bf16.mxu0 0
        %1854 = vmatpush1.bf16.msra.mxu0 0
        %1855 = vmatprep.subr.bf16.mxu0 0
        %1856 = vmatpush1.bf16.msra.mxu0 0
        %1857 = vmatprep.subr.bf16.mxu0 0
        %1858 = vmatpush1.bf16.msra.mxu0 0
        %1859 = vmatprep.subr.bf16.mxu0 0
        %1860 = vmatpush1.bf16.msra.mxu0 0
        %1861 = vmatprep.subr.bf16.mxu0 0
        %1862 = vmatpush1.bf16.msra.mxu0 %v1845
        %1863 = vmatprep.subr.bf16.mxu0 0
        %1864 = vmatpush2.bf16.msra.mxu0 0
        %1865 = vmatprep.subr.bf16.mxu0 0
        %1866 = vmatpush2.bf16.msra.mxu0 0
        %1867 = vmatprep.subr.bf16.mxu0 0
        %1868 = vmatpush2.bf16.msra.mxu0 0
        %1869 = vmatprep.subr.bf16.mxu0 0
        %1870 = vmatpush2.bf16.msra.mxu0 0
        %1871 = vmatprep.subr.bf16.mxu0 0
        %1872 = vmatpush2.bf16.msra.mxu0 0
        %1873 = vmatprep.subr.bf16.mxu0 0
        %1874 = vmatpush2.bf16.msra.mxu0 0
        %1875 = vmatprep.subr.bf16.mxu0 0
        %1876 = vmatpush2.bf16.msra.mxu0 0
        %1877 = vmatprep.subr.bf16.mxu0 0
        %1878 = vmatpush2.bf16.msra.mxu0 0
        %1879 = vmatprep.mubr.bf16.mxu0 0
        %1880 = vmatmul.mubr.bf16.gmra.mxu0 %v1842
        %v1881 = vpop.f32.mrf.mxu0
        %v1882 = vadd.f32 0.0, %v1881
        %v1883 = vpop.f32.mrf.mxu0
        %v1884 = vpop.f32.mrf.mxu0
        %v1885 = vpop.f32.mrf.mxu0
        %1886 = vdwg.mxu0
        %1887 = vrot.lane.b32.xlu0 %v1664, 64
        %v1888 = vpop.permute.xlu0 %1887
        %1889 = vrot.lane.b32.xlu0 %v1665, 64
        %v1890 = vpop.permute.xlu0 %1889
        %v1892 = vsel %vm1667, %v1888, 0
        %v1895 = vsel %vm1667, %v1890, 0
        %1897 = vmatprep.subr.bf16.mxu0 0
        %1898 = vmatpush1.bf16.xpose.msra.mxu0 0
        %1899 = vmatprep.subr.bf16.mxu0 0
        %1900 = vmatpush1.bf16.xpose.msra.mxu0 0
        %1901 = vmatprep.subr.bf16.mxu0 0
        %1902 = vmatpush1.bf16.xpose.msra.mxu0 0
        %1903 = vmatprep.subr.bf16.mxu0 0
        %1904 = vmatpush1.bf16.xpose.msra.mxu0 0
        %1905 = vmatprep.subr.bf16.mxu0 0
        %1906 = vmatpush1.bf16.xpose.msra.mxu0 0
        %1907 = vmatprep.subr.bf16.mxu0 0
        %1908 = vmatpush1.bf16.xpose.msra.mxu0 0
        %1909 = vmatprep.subr.bf16.mxu0 0
        %1910 = vmatpush1.bf16.xpose.msra.mxu0 0
        %1911 = vmatprep.subr.bf16.mxu0 0
        %1912 = vmatpush1.bf16.xpose.msra.mxu0 %v1895
        %1913 = vmatprep.subr.bf16.mxu0 0
        %1914 = vmatpush2.bf16.xpose.msra.mxu0 0
        %1915 = vmatprep.subr.bf16.mxu0 0
        %1916 = vmatpush2.bf16.xpose.msra.mxu0 0
        %1917 = vmatprep.subr.bf16.mxu0 0
        %1918 = vmatpush2.bf16.xpose.msra.mxu0 0
        %1919 = vmatprep.subr.bf16.mxu0 0
        %1920 = vmatpush2.bf16.xpose.msra.mxu0 0
        %1921 = vmatprep.subr.bf16.mxu0 0
        %1922 = vmatpush2.bf16.xpose.msra.mxu0 0
        %1923 = vmatprep.subr.bf16.mxu0 0
        %1924 = vmatpush2.bf16.xpose.msra.mxu0 0
        %1925 = vmatprep.subr.bf16.mxu0 0
        %1926 = vmatpush2.bf16.xpose.msra.mxu0 0
        %1927 = vmatprep.subr.bf16.mxu0 0
        %1928 = vmatpush2.bf16.xpose.msra.mxu0 0
        %1929 = vmatprep.mubr.bf16.mxu0 0
        %1930 = vmatmul.mubr.bf16.gmra.mxu0 %v1892
        %v1931 = vpop.f32.mrf.mxu0
        %v1932 = vadd.f32 0.0, %v1931
        %v1933 = vpop.f32.mrf.mxu0
        %v1934 = vpop.f32.mrf.mxu0
        %v1935 = vpop.f32.mrf.mxu0
        %1936 = vdwg.mxu0
        %v1937 = vsel %vm1714, %v1932, -inf
        %1938 = vmax.xlane.f32.xlu0 %v1937
        %v1939 = vpop.xlane.xlu0 %1938
        %v1940 = vsub.f32 %v1932, %v1939
        %v1941 = vmul.f32 %v1940, 1.442695
        %v1942 = vpow.pop %v1941
        %v1943 = vsel %vm1714, %v1942, 0.0
        %1944 = vadd.xlane.f32.xlu0 %v1943
        %v1945 = vpop.xlane.xlu0 %1944
        %v1946 = vrcp.pop %v1945
        %v1947 = vmul.f32 %v1942, %v1946
        %v1948 = vpack.c.bf16 %v1947, %v1947
        %1949 = vrot.lane.b32.xlu0 %v1666, 64
        %v1950 = vpop.permute.xlu0 %1949
        %v1952 = vsel %vm1714, %v1948, 0
        %v1955 = vsel %vm1730, %v1950, 0
        %1957 = vmatprep.subr.bf16.mxu0 0
        %1958 = vmatpush1.bf16.msra.mxu0 0
        %1959 = vmatprep.subr.bf16.mxu0 0
        %1960 = vmatpush1.bf16.msra.mxu0 0
        %1961 = vmatprep.subr.bf16.mxu0 0
        %1962 = vmatpush1.bf16.msra.mxu0 0
        %1963 = vmatprep.subr.bf16.mxu0 0
        %1964 = vmatpush1.bf16.msra.mxu0 0
        %1965 = vmatprep.subr.bf16.mxu0 0
        %1966 = vmatpush1.bf16.msra.mxu0 0
        %1967 = vmatprep.subr.bf16.mxu0 0
        %1968 = vmatpush1.bf16.msra.mxu0 0
        %1969 = vmatprep.subr.bf16.mxu0 0
        %1970 = vmatpush1.bf16.msra.mxu0 0
        %1971 = vmatprep.subr.bf16.mxu0 0
        %1972 = vmatpush1.bf16.msra.mxu0 %v1955
        %1973 = vmatprep.subr.bf16.mxu0 0
        %1974 = vmatpush2.bf16.msra.mxu0 0
        %1975 = vmatprep.subr.bf16.mxu0 0
        %1976 = vmatpush2.bf16.msra.mxu0 0
        %1977 = vmatprep.subr.bf16.mxu0 0
        %1978 = vmatpush2.bf16.msra.mxu0 0
        %1979 = vmatprep.subr.bf16.mxu0 0
        %1980 = vmatpush2.bf16.msra.mxu0 0
        %1981 = vmatprep.subr.bf16.mxu0 0
        %1982 = vmatpush2.bf16.msra.mxu0 0
        %1983 = vmatprep.subr.bf16.mxu0 0
        %1984 = vmatpush2.bf16.msra.mxu0 0
        %1985 = vmatprep.subr.bf16.mxu0 0
        %1986 = vmatpush2.bf16.msra.mxu0 0
        %1987 = vmatprep.subr.bf16.mxu0 0
        %1988 = vmatpush2.bf16.msra.mxu0 0
        %1989 = vmatprep.mubr.bf16.mxu0 0
        %1990 = vmatmul.mubr.bf16.gmra.mxu0 %v1952
        %v1991 = vpop.f32.mrf.mxu0
        %v1992 = vadd.f32 0.0, %v1991
        %v1993 = vpop.f32.mrf.mxu0
        %v1994 = vpop.f32.mrf.mxu0
        %v1995 = vpop.f32.mrf.mxu0
        %1996 = vdwg.mxu0
        %1997 = vrot.lane.b32.xlu0 %v1664, 32
        %v1998 = vpop.permute.xlu0 %1997
        %1999 = vrot.lane.b32.xlu0 %v1665, 32
        %v2000 = vpop.permute.xlu0 %1999
        %v2002 = vsel %vm1667, %v1998, 0
        %v2005 = vsel %vm1667, %v2000, 0
        %2007 = vmatprep.subr.bf16.mxu0 0
        %2008 = vmatpush1.bf16.xpose.msra.mxu0 0
        %2009 = vmatprep.subr.bf16.mxu0 0
        %2010 = vmatpush1.bf16.xpose.msra.mxu0 0
        %2011 = vmatprep.subr.bf16.mxu0 0
        %2012 = vmatpush1.bf16.xpose.msra.mxu0 0
        %2013 = vmatprep.subr.bf16.mxu0 0
        %2014 = vmatpush1.bf16.xpose.msra.mxu0 0
        %2015 = vmatprep.subr.bf16.mxu0 0
        %2016 = vmatpush1.bf16.xpose.msra.mxu0 0
        %2017 = vmatprep.subr.bf16.mxu0 0
        %2018 = vmatpush1.bf16.xpose.msra.mxu0 0
        %2019 = vmatprep.subr.bf16.mxu0 0
        %2020 = vmatpush1.bf16.xpose.msra.mxu0 0
        %2021 = vmatprep.subr.bf16.mxu0 0
        %2022 = vmatpush1.bf16.xpose.msra.mxu0 %v2005
        %2023 = vmatprep.subr.bf16.mxu0 0
        %2024 = vmatpush2.bf16.xpose.msra.mxu0 0
        %2025 = vmatprep.subr.bf16.mxu0 0
        %2026 = vmatpush2.bf16.xpose.msra.mxu0 0
        %2027 = vmatprep.subr.bf16.mxu0 0
        %2028 = vmatpush2.bf16.xpose.msra.mxu0 0
        %2029 = vmatprep.subr.bf16.mxu0 0
        %2030 = vmatpush2.bf16.xpose.msra.mxu0 0
        %2031 = vmatprep.subr.bf16.mxu0 0
        %2032 = vmatpush2.bf16.xpose.msra.mxu0 0
        %2033 = vmatprep.subr.bf16.mxu0 0
        %2034 = vmatpush2.bf16.xpose.msra.mxu0 0
        %2035 = vmatprep.subr.bf16.mxu0 0
        %2036 = vmatpush2.bf16.xpose.msra.mxu0 0
        %2037 = vmatprep.subr.bf16.mxu0 0
        %2038 = vmatpush2.bf16.xpose.msra.mxu0 0
        %2039 = vmatprep.mubr.bf16.mxu0 0
        %2040 = vmatmul.mubr.bf16.gmra.mxu0 %v2002
        %v2041 = vpop.f32.mrf.mxu0
        %v2042 = vadd.f32 0.0, %v2041
        %v2043 = vpop.f32.mrf.mxu0
        %v2044 = vpop.f32.mrf.mxu0
        %v2045 = vpop.f32.mrf.mxu0
        %2046 = vdwg.mxu0
        %v2047 = vsel %vm1714, %v2042, -inf
        %2048 = vmax.xlane.f32.xlu0 %v2047
        %v2049 = vpop.xlane.xlu0 %2048
        %v2050 = vsub.f32 %v2042, %v2049
        %v2051 = vmul.f32 %v2050, 1.442695
        %v2052 = vpow.pop %v2051
        %v2053 = vsel %vm1714, %v2052, 0.0
        %2054 = vadd.xlane.f32.xlu0 %v2053
        %v2055 = vpop.xlane.xlu0 %2054
        %v2056 = vrcp.pop %v2055
        %v2057 = vmul.f32 %v2052, %v2056
        %v2058 = vpack.c.bf16 %v2057, %v2057
        %2059 = vrot.lane.b32.xlu0 %v1666, 32
        %v2060 = vpop.permute.xlu0 %2059
        %v2062 = vsel %vm1714, %v2058, 0
        %v2065 = vsel %vm1730, %v2060, 0
        %2067 = vmatprep.subr.bf16.mxu0 0
        %2068 = vmatpush1.bf16.msra.mxu0 0
        %2069 = vmatprep.subr.bf16.mxu0 0
        %2070 = vmatpush1.bf16.msra.mxu0 0
        %2071 = vmatprep.subr.bf16.mxu0 0
        %2072 = vmatpush1.bf16.msra.mxu0 0
        %2073 = vmatprep.subr.bf16.mxu0 0
        %2074 = vmatpush1.bf16.msra.mxu0 0
        %2075 = vmatprep.subr.bf16.mxu0 0
        %2076 = vmatpush1.bf16.msra.mxu0 0
        %2077 = vmatprep.subr.bf16.mxu0 0
        %2078 = vmatpush1.bf16.msra.mxu0 0
        %2079 = vmatprep.subr.bf16.mxu0 0
        %2080 = vmatpush1.bf16.msra.mxu0 0
        %2081 = vmatprep.subr.bf16.mxu0 0
        %2082 = vmatpush1.bf16.msra.mxu0 %v2065
        %2083 = vmatprep.subr.bf16.mxu0 0
        %2084 = vmatpush2.bf16.msra.mxu0 0
        %2085 = vmatprep.subr.bf16.mxu0 0
        %2086 = vmatpush2.bf16.msra.mxu0 0
        %2087 = vmatprep.subr.bf16.mxu0 0
        %2088 = vmatpush2.bf16.msra.mxu0 0
        %2089 = vmatprep.subr.bf16.mxu0 0
        %2090 = vmatpush2.bf16.msra.mxu0 0
        %2091 = vmatprep.subr.bf16.mxu0 0
        %2092 = vmatpush2.bf16.msra.mxu0 0
        %2093 = vmatprep.subr.bf16.mxu0 0
        %2094 = vmatpush2.bf16.msra.mxu0 0
        %2095 = vmatprep.subr.bf16.mxu0 0
        %2096 = vmatpush2.bf16.msra.mxu0 0
        %2097 = vmatprep.subr.bf16.mxu0 0
        %2098 = vmatpush2.bf16.msra.mxu0 0
        %2099 = vmatprep.mubr.bf16.mxu0 0
        %2100 = vmatmul.mubr.bf16.gmra.mxu0 %v2062
        %v2101 = vpop.f32.mrf.mxu0
        %v2102 = vadd.f32 0.0, %v2101
        %v2103 = vpop.f32.mrf.mxu0
        %v2104 = vpop.f32.mrf.mxu0
        %v2105 = vpop.f32.mrf.mxu0
        %2106 = vdwg.mxu0
        %2108 = vrot.lane.b32.xlu0 %v1882, 32
        %v2109 = vpop.permute.xlu0 %2108
        %2112 = vrot.lane.b32.xlu0 %v1992, 64
        %v2113 = vpop.permute.xlu0 %2112
        %2116 = vrot.lane.b32.xlu0 %v2102, 96
        %v2117 = vpop.permute.xlu0 %2116
        %v2119 = vsel %vm1667, %v1769, %v2109
        %vm2120 = vcmask 523264
        %v2121 = vsel %vm2120, %v2119, %v2113
        %vm2122 = vcmask 785408
        %v2123 = vsel %vm2122, %v2121, %v2117
        %v2124 = vpack.c.bf16 %v2123, %v2123
        %v2125 = vld [vmem:[%s1140] sm:$0xf]
        %v2126 = vld [vmem:[%s1140 + $0x4] sm:$0xf]
        %v2127 = vld [vmem:[%s1140 + $0x8] sm:$0xf]
        %v2128 = vld [vmem:[%s1140 + $0xc] sm:$0xf]
        %v2129 = vld [vmem:[%s1140 + $0x10] sm:$0xf]
        %v2130 = vld [vmem:[%s1140 + $0x14] sm:$0xf]
        %v2131 = vld [vmem:[%s1140 + $0x18] sm:$0xf]
        %v2132 = vld [vmem:[%s1140 + $0x1c] sm:$0xf]
        %v2133 = vld [vmem:[%s1140 + $0x20] sm:$0xf]
        %v2134 = vld [vmem:[%s1140 + $0x24] sm:$0xf]
        %v2135 = vld [vmem:[%s1140 + $0x28] sm:$0xf]
        %v2136 = vld [vmem:[%s1140 + $0x2c] sm:$0xf]
        %v2137 = vld [vmem:[%s1140 + $0x30] sm:$0xf]
        %v2138 = vld [vmem:[%s1140 + $0x34] sm:$0xf]
        %v2139 = vld [vmem:[%s1140 + $0x38] sm:$0xf]
        %v2140 = vld [vmem:[%s1140 + $0x3c] sm:$0xf]
        %v2141 = vld [vmem:[%s1148] sm:$0x1]
        %v2143 = vlaneseq
        %v2144 = vshrl.u32 %v2143, 7
        %v2145 = vsub.s32 0, %v2144
        %v2146 = vrot.slane %v2141, %v2145
        %v2164 = vunpack.c.l.b16 %v2125
        %v2165 = vunpack.c.l.b16 %v2126
        %v2166 = vunpack.c.l.b16 %v2127
        %v2167 = vunpack.c.l.b16 %v2128
        %v2168 = vunpack.c.l.b16 %v2129
        %v2169 = vunpack.c.l.b16 %v2130
        %v2170 = vunpack.c.l.b16 %v2131
        %v2171 = vunpack.c.l.b16 %v2132
        %v2172 = vunpack.c.l.b16 %v2133
        %v2173 = vunpack.c.l.b16 %v2134
        %v2174 = vunpack.c.l.b16 %v2135
        %v2175 = vunpack.c.l.b16 %v2136
        %v2176 = vunpack.c.l.b16 %v2137
        %v2177 = vunpack.c.l.b16 %v2138
        %v2178 = vunpack.c.l.b16 %v2139
        %v2179 = vunpack.c.l.b16 %v2140
        %v2180 = vpack.c.b16 %v2165, %v2164
        %v2181 = vpack.c.b16 %v2167, %v2166
        %v2182 = vpack.c.b16 %v2169, %v2168
        %v2183 = vpack.c.b16 %v2171, %v2170
        %v2184 = vpack.c.b16 %v2173, %v2172
        %v2185 = vpack.c.b16 %v2175, %v2174
        %v2186 = vpack.c.b16 %v2177, %v2176
        %v2187 = vpack.c.b16 %v2179, %v2178
        %2196 = vmatprep.subr.bf16.mxu0 0
        %2197 = vmatpush1.bf16.msra.mxu0 %v2187
        %2198 = vmatprep.subr.bf16.mxu0 0
        %2199 = vmatpush1.bf16.msra.mxu0 %v2186
        %2200 = vmatprep.subr.bf16.mxu0 0
        %2201 = vmatpush1.bf16.msra.mxu0 %v2185
        %2202 = vmatprep.subr.bf16.mxu0 0
        %2203 = vmatpush1.bf16.msra.mxu0 %v2184
        %2204 = vmatprep.subr.bf16.mxu0 0
        %2205 = vmatpush1.bf16.msra.mxu0 %v2183
        %2206 = vmatprep.subr.bf16.mxu0 0
        %2207 = vmatpush1.bf16.msra.mxu0 %v2182
        %2208 = vmatprep.subr.bf16.mxu0 0
        %2209 = vmatpush1.bf16.msra.mxu0 %v2181
        %2210 = vmatprep.subr.bf16.mxu0 0
        %2211 = vmatpush1.bf16.msra.mxu0 %v2180
        %2212 = vmatprep.subr.bf16.mxu0 0
        %2213 = vmatpush2.bf16.msra.mxu0 0
        %2214 = vmatprep.subr.bf16.mxu0 0
        %2215 = vmatpush2.bf16.msra.mxu0 0
        %2216 = vmatprep.subr.bf16.mxu0 0
        %2217 = vmatpush2.bf16.msra.mxu0 0
        %2218 = vmatprep.subr.bf16.mxu0 0
        %2219 = vmatpush2.bf16.msra.mxu0 0
        %2220 = vmatprep.subr.bf16.mxu0 0
        %2221 = vmatpush2.bf16.msra.mxu0 0
        %2222 = vmatprep.subr.bf16.mxu0 0
        %2223 = vmatpush2.bf16.msra.mxu0 0
        %2224 = vmatprep.subr.bf16.mxu0 0
        %2225 = vmatpush2.bf16.msra.mxu0 0
        %2226 = vmatprep.subr.bf16.mxu0 0
        %2227 = vmatpush2.bf16.msra.mxu0 0
        %2228 = vmatprep.mubr.bf16.mxu0 0
        %2229 = vmatmul.mubr.bf16.gmra.mxu0 %v2124
        %v2230 = vpop.f32.mrf.mxu0
        %v2231 = vadd.f32 %v2146, %v2230
        %v2232 = vpop.f32.mrf.mxu0
        %v2233 = vpop.f32.mrf.mxu0
        %v2234 = vpop.f32.mrf.mxu0
        %2235 = vdwg.mxu0
        %v2236 = vadd.f32 %v1402, %v2231
        %v2237 = vld [vmem:[%s1375] sm:$0x1]
        %v2238 = vld [vmem:[%s1378] sm:$0x1]
        %2239 = vadd.xlane.f32.xlu0 %v2236
        %v2240 = vpop.xlane.xlu0 %2239
        %v2241 = vrcp.pop 128.0
        %v2242 = vmul.f32 %v2240, %v2241
        %v2243 = vsub.f32 %v2236, %v2242
        %v2244 = vmul.f32 %v2243, %v2243
        %2245 = vadd.xlane.f32.xlu0 %v2244
        %v2246 = vpop.xlane.xlu0 %2245
        %v2247 = vmul.f32 %v2246, %v2241
        %v2248 = vadd.f32 %v2247, 1e-05
        %v2249 = vrsqrt.pop %v2248
        %v2250 = vmul.f32 %v2243, %v2249
        %v2252 = vlaneseq
        %v2253 = vshrl.u32 %v2252, 7
        %v2254 = vsub.s32 0, %v2253
        %v2255 = vrot.slane %v2237, %v2254
        %v2257 = vmul.f32 %v2250, %v2255
        %v2259 = vlaneseq
        %v2260 = vshrl.u32 %v2259, 7
        %v2261 = vsub.s32 0, %v2260
        %v2262 = vrot.slane %v2238, %v2261
        %v2264 = vadd.f32 %v2257, %v2262
        %v2265 = vpack.c.bf16 %v2264, %v2264
        %v2266 = vld [vmem:[%s1157] sm:$0xf]
        %v2267 = vld [vmem:[%s1157 + $0x4] sm:$0xf]
        %v2268 = vld [vmem:[%s1157 + $0x8] sm:$0xf]
        %v2269 = vld [vmem:[%s1157 + $0xc] sm:$0xf]
        %v2270 = vld [vmem:[%s1157 + $0x10] sm:$0xf]
        %v2271 = vld [vmem:[%s1157 + $0x14] sm:$0xf]
        %v2272 = vld [vmem:[%s1157 + $0x18] sm:$0xf]
        %v2273 = vld [vmem:[%s1157 + $0x1c] sm:$0xf]
        %v2274 = vld [vmem:[%s1157 + $0x20] sm:$0xf]
        %v2275 = vld [vmem:[%s1157 + $0x24] sm:$0xf]
        %v2276 = vld [vmem:[%s1157 + $0x28] sm:$0xf]
        %v2277 = vld [vmem:[%s1157 + $0x2c] sm:$0xf]
        %v2278 = vld [vmem:[%s1157 + $0x30] sm:$0xf]
        %v2279 = vld [vmem:[%s1157 + $0x34] sm:$0xf]
        %v2280 = vld [vmem:[%s1157 + $0x38] sm:$0xf]
        %v2281 = vld [vmem:[%s1157 + $0x3c] sm:$0xf]
        %v2282 = vld [vmem:[%s1165] sm:$0x1]
        %v2284 = vlaneseq
        %v2285 = vshrl.u32 %v2284, 7
        %v2286 = vsub.s32 0, %v2285
        %v2287 = vrot.slane %v2282, %v2286
        %v2305 = vunpack.c.l.b16 %v2266
        %v2306 = vunpack.c.l.b16 %v2267
        %v2307 = vunpack.c.l.b16 %v2268
        %v2308 = vunpack.c.l.b16 %v2269
        %v2309 = vunpack.c.l.b16 %v2270
        %v2310 = vunpack.c.l.b16 %v2271
        %v2311 = vunpack.c.l.b16 %v2272
        %v2312 = vunpack.c.l.b16 %v2273
        %v2313 = vunpack.c.l.b16 %v2274
        %v2314 = vunpack.c.l.b16 %v2275
        %v2315 = vunpack.c.l.b16 %v2276
        %v2316 = vunpack.c.l.b16 %v2277
        %v2317 = vunpack.c.l.b16 %v2278
        %v2318 = vunpack.c.l.b16 %v2279
        %v2319 = vunpack.c.l.b16 %v2280
        %v2320 = vunpack.c.l.b16 %v2281
        %v2321 = vpack.c.b16 %v2306, %v2305
        %v2322 = vpack.c.b16 %v2308, %v2307
        %v2323 = vpack.c.b16 %v2310, %v2309
        %v2324 = vpack.c.b16 %v2312, %v2311
        %v2325 = vpack.c.b16 %v2314, %v2313
        %v2326 = vpack.c.b16 %v2316, %v2315
        %v2327 = vpack.c.b16 %v2318, %v2317
        %v2328 = vpack.c.b16 %v2320, %v2319
        %2337 = vmatprep.subr.bf16.mxu0 0
        %2338 = vmatpush1.bf16.msra.mxu0 %v2328
        %2339 = vmatprep.subr.bf16.mxu0 0
        %2340 = vmatpush1.bf16.msra.mxu0 %v2327
        %2341 = vmatprep.subr.bf16.mxu0 0
        %2342 = vmatpush1.bf16.msra.mxu0 %v2326
        %2343 = vmatprep.subr.bf16.mxu0 0
        %2344 = vmatpush1.bf16.msra.mxu0 %v2325
        %2345 = vmatprep.subr.bf16.mxu0 0
        %2346 = vmatpush1.bf16.msra.mxu0 %v2324
        %2347 = vmatprep.subr.bf16.mxu0 0
        %2348 = vmatpush1.bf16.msra.mxu0 %v2323
        %2349 = vmatprep.subr.bf16.mxu0 0
        %2350 = vmatpush1.bf16.msra.mxu0 %v2322
        %2351 = vmatprep.subr.bf16.mxu0 0
        %2352 = vmatpush1.bf16.msra.mxu0 %v2321
        %2353 = vmatprep.subr.bf16.mxu0 0
        %2354 = vmatpush2.bf16.msra.mxu0 0
        %2355 = vmatprep.subr.bf16.mxu0 0
        %2356 = vmatpush2.bf16.msra.mxu0 0
        %2357 = vmatprep.subr.bf16.mxu0 0
        %2358 = vmatpush2.bf16.msra.mxu0 0
        %2359 = vmatprep.subr.bf16.mxu0 0
        %2360 = vmatpush2.bf16.msra.mxu0 0
        %2361 = vmatprep.subr.bf16.mxu0 0
        %2362 = vmatpush2.bf16.msra.mxu0 0
        %2363 = vmatprep.subr.bf16.mxu0 0
        %2364 = vmatpush2.bf16.msra.mxu0 0
        %2365 = vmatprep.subr.bf16.mxu0 0
        %2366 = vmatpush2.bf16.msra.mxu0 0
        %2367 = vmatprep.subr.bf16.mxu0 0
        %2368 = vmatpush2.bf16.msra.mxu0 0
        %2369 = vmatprep.mubr.bf16.mxu0 0
        %2370 = vmatmul.mubr.bf16.gmra.mxu0 %v2265
        %v2371 = vpop.f32.mrf.mxu0
        %v2372 = vadd.f32 %v2287, %v2371
        %v2373 = vpop.f32.mrf.mxu0
        %v2374 = vpop.f32.mrf.mxu0
        %v2375 = vpop.f32.mrf.mxu0
        %2376 = vdwg.mxu0
        %v2377 = vpack.c.bf16 %v1404, %v1403
        %v2378 = vld [vmem:[%s1174] sm:$0xff]
        %v2379 = vld [vmem:[%s1174 + $0x8] sm:$0xff]
        %v2380 = vld [vmem:[%s1174 + $0x10] sm:$0xff]
        %v2381 = vld [vmem:[%s1174 + $0x18] sm:$0xff]
        %v2382 = vld [vmem:[%s1174 + $0x20] sm:$0xff]
        %v2383 = vld [vmem:[%s1174 + $0x28] sm:$0xff]
        %v2384 = vld [vmem:[%s1174 + $0x30] sm:$0xff]
        %v2385 = vld [vmem:[%s1174 + $0x38] sm:$0xff]
        %v2386 = vld [vmem:[%s1174 + $0x40] sm:$0xff]
        %v2387 = vld [vmem:[%s1174 + $0x48] sm:$0xff]
        %v2388 = vld [vmem:[%s1174 + $0x50] sm:$0xff]
        %v2389 = vld [vmem:[%s1174 + $0x58] sm:$0xff]
        %v2390 = vld [vmem:[%s1174 + $0x60] sm:$0xff]
        %v2391 = vld [vmem:[%s1174 + $0x68] sm:$0xff]
        %v2392 = vld [vmem:[%s1174 + $0x70] sm:$0xff]
        %v2393 = vld [vmem:[%s1174 + $0x78] sm:$0xff]
        %v2394 = vld [vmem:[%s1369] sm:$0x3]
        %v2396 = vlaneseq
        %v2397 = vshrl.u32 %v2396, 7
        %v2398 = vsub.s32 0, %v2397
        %v2399 = vrot.slane %v2394, %v2398
        %v2400 = vlaneseq
        %v2401 = vshrl.u32 %v2400, 7
        %v2402 = vsub.s32 1, %v2401
        %v2403 = vrot.slane %v2394, %v2402
        %v2422 = vunpack.c.l.b16 %v2378
        %v2423 = vunpack.c.h.b16 %v2378
        %v2424 = vunpack.c.l.b16 %v2379
        %v2425 = vunpack.c.h.b16 %v2379
        %v2426 = vunpack.c.l.b16 %v2380
        %v2427 = vunpack.c.h.b16 %v2380
        %v2428 = vunpack.c.l.b16 %v2381
        %v2429 = vunpack.c.h.b16 %v2381
        %v2430 = vunpack.c.l.b16 %v2382
        %v2431 = vunpack.c.h.b16 %v2382
        %v2432 = vunpack.c.l.b16 %v2383
        %v2433 = vunpack.c.h.b16 %v2383
        %v2434 = vunpack.c.l.b16 %v2384
        %v2435 = vunpack.c.h.b16 %v2384
        %v2436 = vunpack.c.l.b16 %v2385
        %v2437 = vunpack.c.h.b16 %v2385
        %v2438 = vunpack.c.l.b16 %v2386
        %v2439 = vunpack.c.h.b16 %v2386
        %v2440 = vunpack.c.l.b16 %v2387
        %v2441 = vunpack.c.h.b16 %v2387
        %v2442 = vunpack.c.l.b16 %v2388
        %v2443 = vunpack.c.h.b16 %v2388
        %v2444 = vunpack.c.l.b16 %v2389
        %v2445 = vunpack.c.h.b16 %v2389
        %v2446 = vunpack.c.l.b16 %v2390
        %v2447 = vunpack.c.h.b16 %v2390
        %v2448 = vunpack.c.l.b16 %v2391
        %v2449 = vunpack.c.h.b16 %v2391
        %v2450 = vunpack.c.l.b16 %v2392
        %v2451 = vunpack.c.h.b16 %v2392
        %v2452 = vunpack.c.l.b16 %v2393
        %v2453 = vunpack.c.h.b16 %v2393
        %v2454 = vpack.c.b16 %v2424, %v2422
        %v2455 = vpack.c.b16 %v2425, %v2423
        %v2456 = vpack.c.b16 %v2428, %v2426
        %v2457 = vpack.c.b16 %v2429, %v2427
        %v2458 = vpack.c.b16 %v2432, %v2430
        %v2459 = vpack.c.b16 %v2433, %v2431
        %v2460 = vpack.c.b16 %v2436, %v2434
        %v2461 = vpack.c.b16 %v2437, %v2435
        %v2462 = vpack.c.b16 %v2440, %v2438
        %v2463 = vpack.c.b16 %v2441, %v2439
        %v2464 = vpack.c.b16 %v2444, %v2442
        %v2465 = vpack.c.b16 %v2445, %v2443
        %v2466 = vpack.c.b16 %v2448, %v2446
        %v2467 = vpack.c.b16 %v2449, %v2447
        %v2468 = vpack.c.b16 %v2452, %v2450
        %v2469 = vpack.c.b16 %v2453, %v2451
        %2486 = vmatprep.subr.bf16.mxu0 %v2469
        %2487 = vmatpush1.bf16.msra.mxu0 %v2468
        %2488 = vmatprep.subr.bf16.mxu0 %v2467
        %2489 = vmatpush1.bf16.msra.mxu0 %v2466
        %2490 = vmatprep.subr.bf16.mxu0 %v2465
        %2491 = vmatpush1.bf16.msra.mxu0 %v2464
        %2492 = vmatprep.subr.bf16.mxu0 %v2463
        %2493 = vmatpush1.bf16.msra.mxu0 %v2462
        %2494 = vmatprep.subr.bf16.mxu0 %v2461
        %2495 = vmatpush1.bf16.msra.mxu0 %v2460
        %2496 = vmatprep.subr.bf16.mxu0 %v2459
        %2497 = vmatpush1.bf16.msra.mxu0 %v2458
        %2498 = vmatprep.subr.bf16.mxu0 %v2457
        %2499 = vmatpush1.bf16.msra.mxu0 %v2456
        %2500 = vmatprep.subr.bf16.mxu0 %v2455
        %2501 = vmatpush1.bf16.msra.mxu0 %v2454
        %2502 = vmatprep.subr.bf16.mxu0 0
        %2503 = vmatpush2.bf16.msra.mxu0 0
        %2504 = vmatprep.subr.bf16.mxu0 0
        %2505 = vmatpush2.bf16.msra.mxu0 0
        %2506 = vmatprep.subr.bf16.mxu0 0
        %2507 = vmatpush2.bf16.msra.mxu0 0
        %2508 = vmatprep.subr.bf16.mxu0 0
        %2509 = vmatpush2.bf16.msra.mxu0 0
        %2510 = vmatprep.subr.bf16.mxu0 0
        %2511 = vmatpush2.bf16.msra.mxu0 0
        %2512 = vmatprep.subr.bf16.mxu0 0
        %2513 = vmatpush2.bf16.msra.mxu0 0
        %2514 = vmatprep.subr.bf16.mxu0 0
        %2515 = vmatpush2.bf16.msra.mxu0 0
        %2516 = vmatprep.subr.bf16.mxu0 0
        %2517 = vmatpush2.bf16.msra.mxu0 0
        %2518 = vmatprep.mubr.bf16.mxu0 0
        %2519 = vmatmul.mubr.bf16.gmra.mxu0 %v2377
        %v2520 = vpop.f32.mrf.mxu0
        %v2521 = vadd.f32 %v2399, %v2520
        %v2522 = vpop.f32.mrf.mxu0
        %v2523 = vadd.f32 %v2403, %v2522
        %v2524 = vpop.f32.mrf.mxu0
        %v2525 = vadd.f32 %v2399, %v2524
        %v2526 = vpop.f32.mrf.mxu0
        %v2527 = vadd.f32 %v2403, %v2526
        %2528 = vdwg.mxu0
        %v2529 = vpack.c.bf16 %v2372, %v2372
        %v2530 = vpack.c.bf16 %v2525, %v2521
        %v2531 = vpack.c.bf16 %v2527, %v2523
        %v2533 = vsel %vm1667, %v2529, 0
        %v2536 = vsel %vm1667, %v2530, 0
        %2538 = vmatprep.subr.bf16.mxu0 0
        %2539 = vmatpush1.bf16.xpose.msra.mxu0 0
        %2540 = vmatprep.subr.bf16.mxu0 0
        %2541 = vmatpush1.bf16.xpose.msra.mxu0 0
        %2542 = vmatprep.subr.bf16.mxu0 0
        %2543 = vmatpush1.bf16.xpose.msra.mxu0 0
        %2544 = vmatprep.subr.bf16.mxu0 0
        %2545 = vmatpush1.bf16.xpose.msra.mxu0 0
        %2546 = vmatprep.subr.bf16.mxu0 0
        %2547 = vmatpush1.bf16.xpose.msra.mxu0 0
        %2548 = vmatprep.subr.bf16.mxu0 0
        %2549 = vmatpush1.bf16.xpose.msra.mxu0 0
        %2550 = vmatprep.subr.bf16.mxu0 0
        %2551 = vmatpush1.bf16.xpose.msra.mxu0 0
        %2552 = vmatprep.subr.bf16.mxu0 0
        %2553 = vmatpush1.bf16.xpose.msra.mxu0 %v2536
        %2554 = vmatprep.subr.bf16.mxu0 0
        %2555 = vmatpush2.bf16.xpose.msra.mxu0 0
        %2556 = vmatprep.subr.bf16.mxu0 0
        %2557 = vmatpush2.bf16.xpose.msra.mxu0 0
        %2558 = vmatprep.subr.bf16.mxu0 0
        %2559 = vmatpush2.bf16.xpose.msra.mxu0 0
        %2560 = vmatprep.subr.bf16.mxu0 0
        %2561 = vmatpush2.bf16.xpose.msra.mxu0 0
        %2562 = vmatprep.subr.bf16.mxu0 0
        %2563 = vmatpush2.bf16.xpose.msra.mxu0 0
        %2564 = vmatprep.subr.bf16.mxu0 0
        %2565 = vmatpush2.bf16.xpose.msra.mxu0 0
        %2566 = vmatprep.subr.bf16.mxu0 0
        %2567 = vmatpush2.bf16.xpose.msra.mxu0 0
        %2568 = vmatprep.subr.bf16.mxu0 0
        %2569 = vmatpush2.bf16.xpose.msra.mxu0 0
        %2570 = vmatprep.mubr.bf16.mxu0 0
        %2571 = vmatmul.mubr.bf16.gmra.mxu0 %v2533
        %v2572 = vpop.f32.mrf.mxu0
        %v2573 = vadd.f32 0.0, %v2572
        %v2574 = vpop.f32.mrf.mxu0
        %v2575 = vpop.f32.mrf.mxu0
        %v2576 = vpop.f32.mrf.mxu0
        %2577 = vdwg.mxu0
        %vm2578 = vcmask 130048
        %v2579 = vsel %vm2578, %v2573, -inf
        %2580 = vmax.xlane.f32.xlu0 %v2579
        %v2581 = vpop.xlane.xlu0 %2580
        %v2582 = vsub.f32 %v2573, %v2581
        %v2583 = vmul.f32 %v2582, 1.442695
        %v2584 = vpow.pop %v2583
        %v2585 = vsel %vm2578, %v2584, 0.0
        %2586 = vadd.xlane.f32.xlu0 %v2585
        %v2587 = vpop.xlane.xlu0 %2586
        %v2588 = vrcp.pop %v2587
        %v2589 = vmul.f32 %v2584, %v2588
        %v2590 = vpack.c.bf16 %v2589, %v2589
        %v2592 = vsel %vm2578, %v2590, 0
        %2594 = vmatprep.subr.bf16.mxu0 0
        %2595 = vmatpush1.bf16.msra.mxu0 0
        %2596 = vmatprep.subr.bf16.mxu0 0
        %2597 = vmatpush1.bf16.msra.mxu0 0
        %2598 = vmatprep.subr.bf16.mxu0 0
        %2599 = vmatpush1.bf16.msra.mxu0 0
        %2600 = vmatprep.subr.bf16.mxu0 0
        %2601 = vmatpush1.bf16.msra.mxu0 0
        %2602 = vmatprep.subr.bf16.mxu0 0
        %2603 = vmatpush1.bf16.msra.mxu0 0
        %2604 = vmatprep.subr.bf16.mxu0 0
        %2605 = vmatpush1.bf16.msra.mxu0 0
        %2606 = vmatprep.subr.bf16.mxu0 0
        %2607 = vmatpush1.bf16.msra.mxu0 0
        %2608 = vmatprep.subr.bf16.mxu0 0
        %2609 = vmatpush1.bf16.msra.mxu0 %v2531
        %2610 = vmatprep.subr.bf16.mxu0 0
        %2611 = vmatpush2.bf16.msra.mxu0 0
        %2612 = vmatprep.subr.bf16.mxu0 0
        %2613 = vmatpush2.bf16.msra.mxu0 0
        %2614 = vmatprep.subr.bf16.mxu0 0
        %2615 = vmatpush2.bf16.msra.mxu0 0
        %2616 = vmatprep.subr.bf16.mxu0 0
        %2617 = vmatpush2.bf16.msra.mxu0 0
        %2618 = vmatprep.subr.bf16.mxu0 0
        %2619 = vmatpush2.bf16.msra.mxu0 0
        %2620 = vmatprep.subr.bf16.mxu0 0
        %2621 = vmatpush2.bf16.msra.mxu0 0
        %2622 = vmatprep.subr.bf16.mxu0 0
        %2623 = vmatpush2.bf16.msra.mxu0 0
        %2624 = vmatprep.subr.bf16.mxu0 0
        %2625 = vmatpush2.bf16.msra.mxu0 0
        %2626 = vmatprep.mubr.bf16.mxu0 0
        %2627 = vmatmul.mubr.bf16.gmra.mxu0 %v2592
        %v2628 = vpop.f32.mrf.mxu0
        %v2629 = vadd.f32 0.0, %v2628
        %v2630 = vpop.f32.mrf.mxu0
        %v2631 = vpop.f32.mrf.mxu0
        %v2632 = vpop.f32.mrf.mxu0
        %2633 = vdwg.mxu0
        %2635 = vrot.lane.b32.xlu0 %v2529, 96
        %v2636 = vpop.permute.xlu0 %2635
        %2638 = vrot.lane.b32.xlu0 %v2530, 96
        %v2639 = vpop.permute.xlu0 %2638
        %v2641 = vsel %vm1667, %v2636, 0
        %v2644 = vsel %vm1667, %v2639, 0
        %2646 = vmatprep.subr.bf16.mxu0 0
        %2647 = vmatpush1.bf16.xpose.msra.mxu0 0
        %2648 = vmatprep.subr.bf16.mxu0 0
        %2649 = vmatpush1.bf16.xpose.msra.mxu0 0
        %2650 = vmatprep.subr.bf16.mxu0 0
        %2651 = vmatpush1.bf16.xpose.msra.mxu0 0
        %2652 = vmatprep.subr.bf16.mxu0 0
        %2653 = vmatpush1.bf16.xpose.msra.mxu0 0
        %2654 = vmatprep.subr.bf16.mxu0 0
        %2655 = vmatpush1.bf16.xpose.msra.mxu0 0
        %2656 = vmatprep.subr.bf16.mxu0 0
        %2657 = vmatpush1.bf16.xpose.msra.mxu0 0
        %2658 = vmatprep.subr.bf16.mxu0 0
        %2659 = vmatpush1.bf16.xpose.msra.mxu0 0
        %2660 = vmatprep.subr.bf16.mxu0 0
        %2661 = vmatpush1.bf16.xpose.msra.mxu0 %v2644
        %2662 = vmatprep.subr.bf16.mxu0 0
        %2663 = vmatpush2.bf16.xpose.msra.mxu0 0
        %2664 = vmatprep.subr.bf16.mxu0 0
        %2665 = vmatpush2.bf16.xpose.msra.mxu0 0
        %2666 = vmatprep.subr.bf16.mxu0 0
        %2667 = vmatpush2.bf16.xpose.msra.mxu0 0
        %2668 = vmatprep.subr.bf16.mxu0 0
        %2669 = vmatpush2.bf16.xpose.msra.mxu0 0
        %2670 = vmatprep.subr.bf16.mxu0 0
        %2671 = vmatpush2.bf16.xpose.msra.mxu0 0
        %2672 = vmatprep.subr.bf16.mxu0 0
        %2673 = vmatpush2.bf16.xpose.msra.mxu0 0
        %2674 = vmatprep.subr.bf16.mxu0 0
        %2675 = vmatpush2.bf16.xpose.msra.mxu0 0
        %2676 = vmatprep.subr.bf16.mxu0 0
        %2677 = vmatpush2.bf16.xpose.msra.mxu0 0
        %2678 = vmatprep.mubr.bf16.mxu0 0
        %2679 = vmatmul.mubr.bf16.gmra.mxu0 %v2641
        %v2680 = vpop.f32.mrf.mxu0
        %v2681 = vadd.f32 0.0, %v2680
        %v2682 = vpop.f32.mrf.mxu0
        %v2683 = vpop.f32.mrf.mxu0
        %v2684 = vpop.f32.mrf.mxu0
        %2685 = vdwg.mxu0
        %v2686 = vsel %vm2578, %v2681, -inf
        %2687 = vmax.xlane.f32.xlu0 %v2686
        %v2688 = vpop.xlane.xlu0 %2687
        %v2689 = vsub.f32 %v2681, %v2688
        %v2690 = vmul.f32 %v2689, 1.442695
        %v2691 = vpow.pop %v2690
        %v2692 = vsel %vm2578, %v2691, 0.0
        %2693 = vadd.xlane.f32.xlu0 %v2692
        %v2694 = vpop.xlane.xlu0 %2693
        %v2695 = vrcp.pop %v2694
        %v2696 = vmul.f32 %v2691, %v2695
        %v2697 = vpack.c.bf16 %v2696, %v2696
        %2699 = vrot.lane.b32.xlu0 %v2531, 96
        %v2700 = vpop.permute.xlu0 %2699
        %v2703 = vsel %vm2578, %v2697, 0
        %2705 = vmatprep.subr.bf16.mxu0 0
        %2706 = vmatpush1.bf16.msra.mxu0 0
        %2707 = vmatprep.subr.bf16.mxu0 0
        %2708 = vmatpush1.bf16.msra.mxu0 0
        %2709 = vmatprep.subr.bf16.mxu0 0
        %2710 = vmatpush1.bf16.msra.mxu0 0
        %2711 = vmatprep.subr.bf16.mxu0 0
        %2712 = vmatpush1.bf16.msra.mxu0 0
        %2713 = vmatprep.subr.bf16.mxu0 0
        %2714 = vmatpush1.bf16.msra.mxu0 0
        %2715 = vmatprep.subr.bf16.mxu0 0
        %2716 = vmatpush1.bf16.msra.mxu0 0
        %2717 = vmatprep.subr.bf16.mxu0 0
        %2718 = vmatpush1.bf16.msra.mxu0 0
        %2719 = vmatprep.subr.bf16.mxu0 0
        %2720 = vmatpush1.bf16.msra.mxu0 %v2700
        %2721 = vmatprep.subr.bf16.mxu0 0
        %2722 = vmatpush2.bf16.msra.mxu0 0
        %2723 = vmatprep.subr.bf16.mxu0 0
        %2724 = vmatpush2.bf16.msra.mxu0 0
        %2725 = vmatprep.subr.bf16.mxu0 0
        %2726 = vmatpush2.bf16.msra.mxu0 0
        %2727 = vmatprep.subr.bf16.mxu0 0
        %2728 = vmatpush2.bf16.msra.mxu0 0
        %2729 = vmatprep.subr.bf16.mxu0 0
        %2730 = vmatpush2.bf16.msra.mxu0 0
        %2731 = vmatprep.subr.bf16.mxu0 0
        %2732 = vmatpush2.bf16.msra.mxu0 0
        %2733 = vmatprep.subr.bf16.mxu0 0
        %2734 = vmatpush2.bf16.msra.mxu0 0
        %2735 = vmatprep.subr.bf16.mxu0 0
        %2736 = vmatpush2.bf16.msra.mxu0 0
        %2737 = vmatprep.mubr.bf16.mxu0 0
        %2738 = vmatmul.mubr.bf16.gmra.mxu0 %v2703
        %v2739 = vpop.f32.mrf.mxu0
        %v2740 = vadd.f32 0.0, %v2739
        %v2741 = vpop.f32.mrf.mxu0
        %v2742 = vpop.f32.mrf.mxu0
        %v2743 = vpop.f32.mrf.mxu0
        %2744 = vdwg.mxu0
        %2745 = vrot.lane.b32.xlu0 %v2529, 64
        %v2746 = vpop.permute.xlu0 %2745
        %2747 = vrot.lane.b32.xlu0 %v2530, 64
        %v2748 = vpop.permute.xlu0 %2747
        %v2750 = vsel %vm1667, %v2746, 0
        %v2753 = vsel %vm1667, %v2748, 0
        %2755 = vmatprep.subr.bf16.mxu0 0
        %2756 = vmatpush1.bf16.xpose.msra.mxu0 0
        %2757 = vmatprep.subr.bf16.mxu0 0
        %2758 = vmatpush1.bf16.xpose.msra.mxu0 0
        %2759 = vmatprep.subr.bf16.mxu0 0
        %2760 = vmatpush1.bf16.xpose.msra.mxu0 0
        %2761 = vmatprep.subr.bf16.mxu0 0
        %2762 = vmatpush1.bf16.xpose.msra.mxu0 0
        %2763 = vmatprep.subr.bf16.mxu0 0
        %2764 = vmatpush1.bf16.xpose.msra.mxu0 0
        %2765 = vmatprep.subr.bf16.mxu0 0
        %2766 = vmatpush1.bf16.xpose.msra.mxu0 0
        %2767 = vmatprep.subr.bf16.mxu0 0
        %2768 = vmatpush1.bf16.xpose.msra.mxu0 0
        %2769 = vmatprep.subr.bf16.mxu0 0
        %2770 = vmatpush1.bf16.xpose.msra.mxu0 %v2753
        %2771 = vmatprep.subr.bf16.mxu0 0
        %2772 = vmatpush2.bf16.xpose.msra.mxu0 0
        %2773 = vmatprep.subr.bf16.mxu0 0
        %2774 = vmatpush2.bf16.xpose.msra.mxu0 0
        %2775 = vmatprep.subr.bf16.mxu0 0
        %2776 = vmatpush2.bf16.xpose.msra.mxu0 0
        %2777 = vmatprep.subr.bf16.mxu0 0
        %2778 = vmatpush2.bf16.xpose.msra.mxu0 0
        %2779 = vmatprep.subr.bf16.mxu0 0
        %2780 = vmatpush2.bf16.xpose.msra.mxu0 0
        %2781 = vmatprep.subr.bf16.mxu0 0
        %2782 = vmatpush2.bf16.xpose.msra.mxu0 0
        %2783 = vmatprep.subr.bf16.mxu0 0
        %2784 = vmatpush2.bf16.xpose.msra.mxu0 0
        %2785 = vmatprep.subr.bf16.mxu0 0
        %2786 = vmatpush2.bf16.xpose.msra.mxu0 0
        %2787 = vmatprep.mubr.bf16.mxu0 0
        %2788 = vmatmul.mubr.bf16.gmra.mxu0 %v2750
        %v2789 = vpop.f32.mrf.mxu0
        %v2790 = vadd.f32 0.0, %v2789
        %v2791 = vpop.f32.mrf.mxu0
        %v2792 = vpop.f32.mrf.mxu0
        %v2793 = vpop.f32.mrf.mxu0
        %2794 = vdwg.mxu0
        %v2795 = vsel %vm2578, %v2790, -inf
        %2796 = vmax.xlane.f32.xlu0 %v2795
        %v2797 = vpop.xlane.xlu0 %2796
        %v2798 = vsub.f32 %v2790, %v2797
        %v2799 = vmul.f32 %v2798, 1.442695
        %v2800 = vpow.pop %v2799
        %v2801 = vsel %vm2578, %v2800, 0.0
        %2802 = vadd.xlane.f32.xlu0 %v2801
        %v2803 = vpop.xlane.xlu0 %2802
        %v2804 = vrcp.pop %v2803
        %v2805 = vmul.f32 %v2800, %v2804
        %v2806 = vpack.c.bf16 %v2805, %v2805
        %2807 = vrot.lane.b32.xlu0 %v2531, 64
        %v2808 = vpop.permute.xlu0 %2807
        %v2811 = vsel %vm2578, %v2806, 0
        %2813 = vmatprep.subr.bf16.mxu0 0
        %2814 = vmatpush1.bf16.msra.mxu0 0
        %2815 = vmatprep.subr.bf16.mxu0 0
        %2816 = vmatpush1.bf16.msra.mxu0 0
        %2817 = vmatprep.subr.bf16.mxu0 0
        %2818 = vmatpush1.bf16.msra.mxu0 0
        %2819 = vmatprep.subr.bf16.mxu0 0
        %2820 = vmatpush1.bf16.msra.mxu0 0
        %2821 = vmatprep.subr.bf16.mxu0 0
        %2822 = vmatpush1.bf16.msra.mxu0 0
        %2823 = vmatprep.subr.bf16.mxu0 0
        %2824 = vmatpush1.bf16.msra.mxu0 0
        %2825 = vmatprep.subr.bf16.mxu0 0
        %2826 = vmatpush1.bf16.msra.mxu0 0
        %2827 = vmatprep.subr.bf16.mxu0 0
        %2828 = vmatpush1.bf16.msra.mxu0 %v2808
        %2829 = vmatprep.subr.bf16.mxu0 0
        %2830 = vmatpush2.bf16.msra.mxu0 0
        %2831 = vmatprep.subr.bf16.mxu0 0
        %2832 = vmatpush2.bf16.msra.mxu0 0
        %2833 = vmatprep.subr.bf16.mxu0 0
        %2834 = vmatpush2.bf16.msra.mxu0 0
        %2835 = vmatprep.subr.bf16.mxu0 0
        %2836 = vmatpush2.bf16.msra.mxu0 0
        %2837 = vmatprep.subr.bf16.mxu0 0
        %2838 = vmatpush2.bf16.msra.mxu0 0
        %2839 = vmatprep.subr.bf16.mxu0 0
        %2840 = vmatpush2.bf16.msra.mxu0 0
        %2841 = vmatprep.subr.bf16.mxu0 0
        %2842 = vmatpush2.bf16.msra.mxu0 0
        %2843 = vmatprep.subr.bf16.mxu0 0
        %2844 = vmatpush2.bf16.msra.mxu0 0
        %2845 = vmatprep.mubr.bf16.mxu0 0
        %2846 = vmatmul.mubr.bf16.gmra.mxu0 %v2811
        %v2847 = vpop.f32.mrf.mxu0
        %v2848 = vadd.f32 0.0, %v2847
        %v2849 = vpop.f32.mrf.mxu0
        %v2850 = vpop.f32.mrf.mxu0
        %v2851 = vpop.f32.mrf.mxu0
        %2852 = vdwg.mxu0
        %2853 = vrot.lane.b32.xlu0 %v2529, 32
        %v2854 = vpop.permute.xlu0 %2853
        %2855 = vrot.lane.b32.xlu0 %v2530, 32
        %v2856 = vpop.permute.xlu0 %2855
        %v2858 = vsel %vm1667, %v2854, 0
        %v2861 = vsel %vm1667, %v2856, 0
        %2863 = vmatprep.subr.bf16.mxu0 0
        %2864 = vmatpush1.bf16.xpose.msra.mxu0 0
        %2865 = vmatprep.subr.bf16.mxu0 0
        %2866 = vmatpush1.bf16.xpose.msra.mxu0 0
        %2867 = vmatprep.subr.bf16.mxu0 0
        %2868 = vmatpush1.bf16.xpose.msra.mxu0 0
        %2869 = vmatprep.subr.bf16.mxu0 0
        %2870 = vmatpush1.bf16.xpose.msra.mxu0 0
        %2871 = vmatprep.subr.bf16.mxu0 0
        %2872 = vmatpush1.bf16.xpose.msra.mxu0 0
        %2873 = vmatprep.subr.bf16.mxu0 0
        %2874 = vmatpush1.bf16.xpose.msra.mxu0 0
        %2875 = vmatprep.subr.bf16.mxu0 0
        %2876 = vmatpush1.bf16.xpose.msra.mxu0 0
        %2877 = vmatprep.subr.bf16.mxu0 0
        %2878 = vmatpush1.bf16.xpose.msra.mxu0 %v2861
        %2879 = vmatprep.subr.bf16.mxu0 0
        %2880 = vmatpush2.bf16.xpose.msra.mxu0 0
        %2881 = vmatprep.subr.bf16.mxu0 0
        %2882 = vmatpush2.bf16.xpose.msra.mxu0 0
        %2883 = vmatprep.subr.bf16.mxu0 0
        %2884 = vmatpush2.bf16.xpose.msra.mxu0 0
        %2885 = vmatprep.subr.bf16.mxu0 0
        %2886 = vmatpush2.bf16.xpose.msra.mxu0 0
        %2887 = vmatprep.subr.bf16.mxu0 0
        %2888 = vmatpush2.bf16.xpose.msra.mxu0 0
        %2889 = vmatprep.subr.bf16.mxu0 0
        %2890 = vmatpush2.bf16.xpose.msra.mxu0 0
        %2891 = vmatprep.subr.bf16.mxu0 0
        %2892 = vmatpush2.bf16.xpose.msra.mxu0 0
        %2893 = vmatprep.subr.bf16.mxu0 0
        %2894 = vmatpush2.bf16.xpose.msra.mxu0 0
        %2895 = vmatprep.mubr.bf16.mxu0 0
        %2896 = vmatmul.mubr.bf16.gmra.mxu0 %v2858
        %v2897 = vpop.f32.mrf.mxu0
        %v2898 = vadd.f32 0.0, %v2897
        %v2899 = vpop.f32.mrf.mxu0
        %v2900 = vpop.f32.mrf.mxu0
        %v2901 = vpop.f32.mrf.mxu0
        %2902 = vdwg.mxu0
        %v2903 = vsel %vm2578, %v2898, -inf
        %2904 = vmax.xlane.f32.xlu0 %v2903
        %v2905 = vpop.xlane.xlu0 %2904
        %v2906 = vsub.f32 %v2898, %v2905
        %v2907 = vmul.f32 %v2906, 1.442695
        %v2908 = vpow.pop %v2907
        %v2909 = vsel %vm2578, %v2908, 0.0
        %2910 = vadd.xlane.f32.xlu0 %v2909
        %v2911 = vpop.xlane.xlu0 %2910
        %v2912 = vrcp.pop %v2911
        %v2913 = vmul.f32 %v2908, %v2912
        %v2914 = vpack.c.bf16 %v2913, %v2913
        %2915 = vrot.lane.b32.xlu0 %v2531, 32
        %v2916 = vpop.permute.xlu0 %2915
        %v2919 = vsel %vm2578, %v2914, 0
        %2921 = vmatprep.subr.bf16.mxu0 0
        %2922 = vmatpush1.bf16.msra.mxu0 0
        %2923 = vmatprep.subr.bf16.mxu0 0
        %2924 = vmatpush1.bf16.msra.mxu0 0
        %2925 = vmatprep.subr.bf16.mxu0 0
        %2926 = vmatpush1.bf16.msra.mxu0 0
        %2927 = vmatprep.subr.bf16.mxu0 0
        %2928 = vmatpush1.bf16.msra.mxu0 0
        %2929 = vmatprep.subr.bf16.mxu0 0
        %2930 = vmatpush1.bf16.msra.mxu0 0
        %2931 = vmatprep.subr.bf16.mxu0 0
        %2932 = vmatpush1.bf16.msra.mxu0 0
        %2933 = vmatprep.subr.bf16.mxu0 0
        %2934 = vmatpush1.bf16.msra.mxu0 0
        %2935 = vmatprep.subr.bf16.mxu0 0
        %2936 = vmatpush1.bf16.msra.mxu0 %v2916
        %2937 = vmatprep.subr.bf16.mxu0 0
        %2938 = vmatpush2.bf16.msra.mxu0 0
        %2939 = vmatprep.subr.bf16.mxu0 0
        %2940 = vmatpush2.bf16.msra.mxu0 0
        %2941 = vmatprep.subr.bf16.mxu0 0
        %2942 = vmatpush2.bf16.msra.mxu0 0
        %2943 = vmatprep.subr.bf16.mxu0 0
        %2944 = vmatpush2.bf16.msra.mxu0 0
        %2945 = vmatprep.subr.bf16.mxu0 0
        %2946 = vmatpush2.bf16.msra.mxu0 0
        %2947 = vmatprep.subr.bf16.mxu0 0
        %2948 = vmatpush2.bf16.msra.mxu0 0
        %2949 = vmatprep.subr.bf16.mxu0 0
        %2950 = vmatpush2.bf16.msra.mxu0 0
        %2951 = vmatprep.subr.bf16.mxu0 0
        %2952 = vmatpush2.bf16.msra.mxu0 0
        %2953 = vmatprep.mubr.bf16.mxu0 0
        %2954 = vmatmul.mubr.bf16.gmra.mxu0 %v2919
        %v2955 = vpop.f32.mrf.mxu0
        %v2956 = vadd.f32 0.0, %v2955
        %v2957 = vpop.f32.mrf.mxu0
        %v2958 = vpop.f32.mrf.mxu0
        %v2959 = vpop.f32.mrf.mxu0
        %2960 = vdwg.mxu0
        %2962 = vrot.lane.b32.xlu0 %v2740, 32
        %v2963 = vpop.permute.xlu0 %2962
        %2966 = vrot.lane.b32.xlu0 %v2848, 64
        %v2967 = vpop.permute.xlu0 %2966
        %2970 = vrot.lane.b32.xlu0 %v2956, 96
        %v2971 = vpop.permute.xlu0 %2970
        %v2973 = vsel %vm1667, %v2629, %v2963
        %v2974 = vsel %vm2120, %v2973, %v2967
        %v2975 = vsel %vm2122, %v2974, %v2971
        %v2976 = vpack.c.bf16 %v2975, %v2975
        %v2977 = vld [vmem:[%s1183] sm:$0xf]
        %v2978 = vld [vmem:[%s1183 + $0x4] sm:$0xf]
        %v2979 = vld [vmem:[%s1183 + $0x8] sm:$0xf]
        %v2980 = vld [vmem:[%s1183 + $0xc] sm:$0xf]
        %v2981 = vld [vmem:[%s1183 + $0x10] sm:$0xf]
        %v2982 = vld [vmem:[%s1183 + $0x14] sm:$0xf]
        %v2983 = vld [vmem:[%s1183 + $0x18] sm:$0xf]
        %v2984 = vld [vmem:[%s1183 + $0x1c] sm:$0xf]
        %v2985 = vld [vmem:[%s1183 + $0x20] sm:$0xf]
        %v2986 = vld [vmem:[%s1183 + $0x24] sm:$0xf]
        %v2987 = vld [vmem:[%s1183 + $0x28] sm:$0xf]
        %v2988 = vld [vmem:[%s1183 + $0x2c] sm:$0xf]
        %v2989 = vld [vmem:[%s1183 + $0x30] sm:$0xf]
        %v2990 = vld [vmem:[%s1183 + $0x34] sm:$0xf]
        %v2991 = vld [vmem:[%s1183 + $0x38] sm:$0xf]
        %v2992 = vld [vmem:[%s1183 + $0x3c] sm:$0xf]
        %v2993 = vld [vmem:[%s1372] sm:$0x1]
        %v2995 = vlaneseq
        %v2996 = vshrl.u32 %v2995, 7
        %v2997 = vsub.s32 0, %v2996
        %v2998 = vrot.slane %v2993, %v2997
        %v3016 = vunpack.c.l.b16 %v2977
        %v3017 = vunpack.c.l.b16 %v2978
        %v3018 = vunpack.c.l.b16 %v2979
        %v3019 = vunpack.c.l.b16 %v2980
        %v3020 = vunpack.c.l.b16 %v2981
        %v3021 = vunpack.c.l.b16 %v2982
        %v3022 = vunpack.c.l.b16 %v2983
        %v3023 = vunpack.c.l.b16 %v2984
        %v3024 = vunpack.c.l.b16 %v2985
        %v3025 = vunpack.c.l.b16 %v2986
        %v3026 = vunpack.c.l.b16 %v2987
        %v3027 = vunpack.c.l.b16 %v2988
        %v3028 = vunpack.c.l.b16 %v2989
        %v3029 = vunpack.c.l.b16 %v2990
        %v3030 = vunpack.c.l.b16 %v2991
        %v3031 = vunpack.c.l.b16 %v2992
        %v3032 = vpack.c.b16 %v3017, %v3016
        %v3033 = vpack.c.b16 %v3019, %v3018
        %v3034 = vpack.c.b16 %v3021, %v3020
        %v3035 = vpack.c.b16 %v3023, %v3022
        %v3036 = vpack.c.b16 %v3025, %v3024
        %v3037 = vpack.c.b16 %v3027, %v3026
        %v3038 = vpack.c.b16 %v3029, %v3028
        %v3039 = vpack.c.b16 %v3031, %v3030
        %3048 = vmatprep.subr.bf16.mxu0 0
        %3049 = vmatpush1.bf16.msra.mxu0 %v3039
        %3050 = vmatprep.subr.bf16.mxu0 0
        %3051 = vmatpush1.bf16.msra.mxu0 %v3038
        %3052 = vmatprep.subr.bf16.mxu0 0
        %3053 = vmatpush1.bf16.msra.mxu0 %v3037
        %3054 = vmatprep.subr.bf16.mxu0 0
        %3055 = vmatpush1.bf16.msra.mxu0 %v3036
        %3056 = vmatprep.subr.bf16.mxu0 0
        %3057 = vmatpush1.bf16.msra.mxu0 %v3035
        %3058 = vmatprep.subr.bf16.mxu0 0
        %3059 = vmatpush1.bf16.msra.mxu0 %v3034
        %3060 = vmatprep.subr.bf16.mxu0 0
        %3061 = vmatpush1.bf16.msra.mxu0 %v3033
        %3062 = vmatprep.subr.bf16.mxu0 0
        %3063 = vmatpush1.bf16.msra.mxu0 %v3032
        %3064 = vmatprep.subr.bf16.mxu0 0
        %3065 = vmatpush2.bf16.msra.mxu0 0
        %3066 = vmatprep.subr.bf16.mxu0 0
        %3067 = vmatpush2.bf16.msra.mxu0 0
        %3068 = vmatprep.subr.bf16.mxu0 0
        %3069 = vmatpush2.bf16.msra.mxu0 0
        %3070 = vmatprep.subr.bf16.mxu0 0
        %3071 = vmatpush2.bf16.msra.mxu0 0
        %3072 = vmatprep.subr.bf16.mxu0 0
        %3073 = vmatpush2.bf16.msra.mxu0 0
        %3074 = vmatprep.subr.bf16.mxu0 0
        %3075 = vmatpush2.bf16.msra.mxu0 0
        %3076 = vmatprep.subr.bf16.mxu0 0
        %3077 = vmatpush2.bf16.msra.mxu0 0
        %3078 = vmatprep.subr.bf16.mxu0 0
        %3079 = vmatpush2.bf16.msra.mxu0 0
        %3080 = vmatprep.mubr.bf16.mxu0 0
        %3081 = vmatmul.mubr.bf16.gmra.mxu0 %v2976
        %v3082 = vpop.f32.mrf.mxu0
        %v3083 = vadd.f32 %v2998, %v3082
        %v3084 = vpop.f32.mrf.mxu0
        %v3085 = vpop.f32.mrf.mxu0
        %v3086 = vpop.f32.mrf.mxu0
        %3087 = vdwg.mxu0
        %v3088 = vadd.f32 %v2264, %v3083
        %v3089 = vld [vmem:[%s1381] sm:$0x1]
        %v3090 = vld [vmem:[%s1384] sm:$0x1]
        %3091 = vadd.xlane.f32.xlu0 %v3088
        %v3092 = vpop.xlane.xlu0 %3091
        %v3093 = vmul.f32 %v3092, %v2241
        %v3094 = vsub.f32 %v3088, %v3093
        %v3095 = vmul.f32 %v3094, %v3094
        %3096 = vadd.xlane.f32.xlu0 %v3095
        %v3097 = vpop.xlane.xlu0 %3096
        %v3098 = vmul.f32 %v3097, %v2241
        %v3099 = vadd.f32 %v3098, 1e-05
        %v3100 = vrsqrt.pop %v3099
        %v3101 = vmul.f32 %v3094, %v3100
        %v3103 = vlaneseq
        %v3104 = vshrl.u32 %v3103, 7
        %v3105 = vsub.s32 0, %v3104
        %v3106 = vrot.slane %v3089, %v3105
        %v3108 = vmul.f32 %v3101, %v3106
        %v3110 = vlaneseq
        %v3111 = vshrl.u32 %v3110, 7
        %v3112 = vsub.s32 0, %v3111
        %v3113 = vrot.slane %v3090, %v3112
        %v3115 = vadd.f32 %v3108, %v3113
        %v3116 = vpack.c.bf16 %v3115, %v3115
        %v3117 = vld [vmem:[%s1200] sm:$0xff]
        %v3118 = vld [vmem:[%s1200 + $0x8] sm:$0xff]
        %v3119 = vld [vmem:[%s1200 + $0x10] sm:$0xff]
        %v3120 = vld [vmem:[%s1200 + $0x18] sm:$0xff]
        %v3121 = vld [vmem:[%s1200 + $0x20] sm:$0xff]
        %v3122 = vld [vmem:[%s1200 + $0x28] sm:$0xff]
        %v3123 = vld [vmem:[%s1200 + $0x30] sm:$0xff]
        %v3124 = vld [vmem:[%s1200 + $0x38] sm:$0xff]
        %v3125 = vld [vmem:[%s1200 + $0x40] sm:$0xff]
        %v3126 = vld [vmem:[%s1200 + $0x48] sm:$0xff]
        %v3127 = vld [vmem:[%s1200 + $0x50] sm:$0xff]
        %v3128 = vld [vmem:[%s1200 + $0x58] sm:$0xff]
        %v3129 = vld [vmem:[%s1200 + $0x60] sm:$0xff]
        %v3130 = vld [vmem:[%s1200 + $0x68] sm:$0xff]
        %v3131 = vld [vmem:[%s1200 + $0x70] sm:$0xff]
        %v3132 = vld [vmem:[%s1200 + $0x78] sm:$0xff]
        %v3133 = vld [vmem:[%s1391] sm:$0x3]
        %v3135 = vlaneseq
        %v3136 = vshrl.u32 %v3135, 7
        %v3137 = vsub.s32 0, %v3136
        %v3138 = vrot.slane %v3133, %v3137
        %v3139 = vlaneseq
        %v3140 = vshrl.u32 %v3139, 7
        %v3141 = vsub.s32 1, %v3140
        %v3142 = vrot.slane %v3133, %v3141
        %v3161 = vunpack.c.l.b16 %v3117
        %v3162 = vunpack.c.h.b16 %v3117
        %v3163 = vunpack.c.l.b16 %v3118
        %v3164 = vunpack.c.h.b16 %v3118
        %v3165 = vunpack.c.l.b16 %v3119
        %v3166 = vunpack.c.h.b16 %v3119
        %v3167 = vunpack.c.l.b16 %v3120
        %v3168 = vunpack.c.h.b16 %v3120
        %v3169 = vunpack.c.l.b16 %v3121
        %v3170 = vunpack.c.h.b16 %v3121
        %v3171 = vunpack.c.l.b16 %v3122
        %v3172 = vunpack.c.h.b16 %v3122
        %v3173 = vunpack.c.l.b16 %v3123
        %v3174 = vunpack.c.h.b16 %v3123
        %v3175 = vunpack.c.l.b16 %v3124
        %v3176 = vunpack.c.h.b16 %v3124
        %v3177 = vunpack.c.l.b16 %v3125
        %v3178 = vunpack.c.h.b16 %v3125
        %v3179 = vunpack.c.l.b16 %v3126
        %v3180 = vunpack.c.h.b16 %v3126
        %v3181 = vunpack.c.l.b16 %v3127
        %v3182 = vunpack.c.h.b16 %v3127
        %v3183 = vunpack.c.l.b16 %v3128
        %v3184 = vunpack.c.h.b16 %v3128
        %v3185 = vunpack.c.l.b16 %v3129
        %v3186 = vunpack.c.h.b16 %v3129
        %v3187 = vunpack.c.l.b16 %v3130
        %v3188 = vunpack.c.h.b16 %v3130
        %v3189 = vunpack.c.l.b16 %v3131
        %v3190 = vunpack.c.h.b16 %v3131
        %v3191 = vunpack.c.l.b16 %v3132
        %v3192 = vunpack.c.h.b16 %v3132
        %v3193 = vpack.c.b16 %v3163, %v3161
        %v3194 = vpack.c.b16 %v3164, %v3162
        %v3195 = vpack.c.b16 %v3167, %v3165
        %v3196 = vpack.c.b16 %v3168, %v3166
        %v3197 = vpack.c.b16 %v3171, %v3169
        %v3198 = vpack.c.b16 %v3172, %v3170
        %v3199 = vpack.c.b16 %v3175, %v3173
        %v3200 = vpack.c.b16 %v3176, %v3174
        %v3201 = vpack.c.b16 %v3179, %v3177
        %v3202 = vpack.c.b16 %v3180, %v3178
        %v3203 = vpack.c.b16 %v3183, %v3181
        %v3204 = vpack.c.b16 %v3184, %v3182
        %v3205 = vpack.c.b16 %v3187, %v3185
        %v3206 = vpack.c.b16 %v3188, %v3186
        %v3207 = vpack.c.b16 %v3191, %v3189
        %v3208 = vpack.c.b16 %v3192, %v3190
        %3225 = vmatprep.subr.bf16.mxu0 %v3208
        %3226 = vmatpush1.bf16.msra.mxu0 %v3207
        %3227 = vmatprep.subr.bf16.mxu0 %v3206
        %3228 = vmatpush1.bf16.msra.mxu0 %v3205
        %3229 = vmatprep.subr.bf16.mxu0 %v3204
        %3230 = vmatpush1.bf16.msra.mxu0 %v3203
        %3231 = vmatprep.subr.bf16.mxu0 %v3202
        %3232 = vmatpush1.bf16.msra.mxu0 %v3201
        %3233 = vmatprep.subr.bf16.mxu0 %v3200
        %3234 = vmatpush1.bf16.msra.mxu0 %v3199
        %3235 = vmatprep.subr.bf16.mxu0 %v3198
        %3236 = vmatpush1.bf16.msra.mxu0 %v3197
        %3237 = vmatprep.subr.bf16.mxu0 %v3196
        %3238 = vmatpush1.bf16.msra.mxu0 %v3195
        %3239 = vmatprep.subr.bf16.mxu0 %v3194
        %3240 = vmatpush1.bf16.msra.mxu0 %v3193
        %3241 = vmatprep.subr.bf16.mxu0 0
        %3242 = vmatpush2.bf16.msra.mxu0 0
        %3243 = vmatprep.subr.bf16.mxu0 0
        %3244 = vmatpush2.bf16.msra.mxu0 0
        %3245 = vmatprep.subr.bf16.mxu0 0
        %3246 = vmatpush2.bf16.msra.mxu0 0
        %3247 = vmatprep.subr.bf16.mxu0 0
        %3248 = vmatpush2.bf16.msra.mxu0 0
        %3249 = vmatprep.subr.bf16.mxu0 0
        %3250 = vmatpush2.bf16.msra.mxu0 0
        %3251 = vmatprep.subr.bf16.mxu0 0
        %3252 = vmatpush2.bf16.msra.mxu0 0
        %3253 = vmatprep.subr.bf16.mxu0 0
        %3254 = vmatpush2.bf16.msra.mxu0 0
        %3255 = vmatprep.subr.bf16.mxu0 0
        %3256 = vmatpush2.bf16.msra.mxu0 0
        %3257 = vmatprep.mubr.bf16.mxu0 0
        %3258 = vmatmul.mubr.bf16.gmra.mxu0 %v3116
        %v3259 = vpop.f32.mrf.mxu0
        %v3260 = vadd.f32 %v3138, %v3259
        %v3261 = vpop.f32.mrf.mxu0
        %v3262 = vadd.f32 %v3142, %v3261
        %v3263 = vpop.f32.mrf.mxu0
        %v3264 = vpop.f32.mrf.mxu0
        %3265 = vdwg.mxu0
        %v3266 = vmax.f32 %v3260, 0.0
        %v3267 = vmax.f32 %v3262, 0.0
        %v3268 = vpack.c.bf16 %v3266, %v3266
        %v3269 = vpack.c.bf16 %v3267, %v3267
        %v3270 = vld [vmem:[%s1209] sm:$0xf]
        %v3271 = vld [vmem:[%s1209 + $0x4] sm:$0xf]
        %v3272 = vld [vmem:[%s1209 + $0x8] sm:$0xf]
        %v3273 = vld [vmem:[%s1209 + $0xc] sm:$0xf]
        %v3274 = vld [vmem:[%s1209 + $0x10] sm:$0xf]
        %v3275 = vld [vmem:[%s1209 + $0x14] sm:$0xf]
        %v3276 = vld [vmem:[%s1209 + $0x18] sm:$0xf]
        %v3277 = vld [vmem:[%s1209 + $0x1c] sm:$0xf]
        %v3278 = vld [vmem:[%s1209 + $0x20] sm:$0xf]
        %v3279 = vld [vmem:[%s1209 + $0x24] sm:$0xf]
        %v3280 = vld [vmem:[%s1209 + $0x28] sm:$0xf]
        %v3281 = vld [vmem:[%s1209 + $0x2c] sm:$0xf]
        %v3282 = vld [vmem:[%s1209 + $0x30] sm:$0xf]
        %v3283 = vld [vmem:[%s1209 + $0x34] sm:$0xf]
        %v3284 = vld [vmem:[%s1209 + $0x38] sm:$0xf]
        %v3285 = vld [vmem:[%s1209 + $0x3c] sm:$0xf]
        %v3286 = vld [vmem:[%s1209 + $0x40] sm:$0xf]
        %v3287 = vld [vmem:[%s1209 + $0x44] sm:$0xf]
        %v3288 = vld [vmem:[%s1209 + $0x48] sm:$0xf]
        %v3289 = vld [vmem:[%s1209 + $0x4c] sm:$0xf]
        %v3290 = vld [vmem:[%s1209 + $0x50] sm:$0xf]
        %v3291 = vld [vmem:[%s1209 + $0x54] sm:$0xf]
        %v3292 = vld [vmem:[%s1209 + $0x58] sm:$0xf]
        %v3293 = vld [vmem:[%s1209 + $0x5c] sm:$0xf]
        %v3294 = vld [vmem:[%s1209 + $0x60] sm:$0xf]
        %v3295 = vld [vmem:[%s1209 + $0x64] sm:$0xf]
        %v3296 = vld [vmem:[%s1209 + $0x68] sm:$0xf]
        %v3297 = vld [vmem:[%s1209 + $0x6c] sm:$0xf]
        %v3298 = vld [vmem:[%s1209 + $0x70] sm:$0xf]
        %v3299 = vld [vmem:[%s1209 + $0x74] sm:$0xf]
        %v3300 = vld [vmem:[%s1209 + $0x78] sm:$0xf]
        %v3301 = vld [vmem:[%s1209 + $0x7c] sm:$0xf]
        %v3302 = vld [vmem:[%s1394] sm:$0x1]
        %v3304 = vlaneseq
        %v3305 = vshrl.u32 %v3304, 7
        %v3306 = vsub.s32 0, %v3305
        %v3307 = vrot.slane %v3302, %v3306
        %v3341 = vunpack.c.l.b16 %v3270
        %v3342 = vunpack.c.l.b16 %v3271
        %v3343 = vunpack.c.l.b16 %v3272
        %v3344 = vunpack.c.l.b16 %v3273
        %v3345 = vunpack.c.l.b16 %v3274
        %v3346 = vunpack.c.l.b16 %v3275
        %v3347 = vunpack.c.l.b16 %v3276
        %v3348 = vunpack.c.l.b16 %v3277
        %v3349 = vunpack.c.l.b16 %v3278
        %v3350 = vunpack.c.l.b16 %v3279
        %v3351 = vunpack.c.l.b16 %v3280
        %v3352 = vunpack.c.l.b16 %v3281
        %v3353 = vunpack.c.l.b16 %v3282
        %v3354 = vunpack.c.l.b16 %v3283
        %v3355 = vunpack.c.l.b16 %v3284
        %v3356 = vunpack.c.l.b16 %v3285
        %v3357 = vunpack.c.l.b16 %v3286
        %v3358 = vunpack.c.l.b16 %v3287
        %v3359 = vunpack.c.l.b16 %v3288
        %v3360 = vunpack.c.l.b16 %v3289
        %v3361 = vunpack.c.l.b16 %v3290
        %v3362 = vunpack.c.l.b16 %v3291
        %v3363 = vunpack.c.l.b16 %v3292
        %v3364 = vunpack.c.l.b16 %v3293
        %v3365 = vunpack.c.l.b16 %v3294
        %v3366 = vunpack.c.l.b16 %v3295
        %v3367 = vunpack.c.l.b16 %v3296
        %v3368 = vunpack.c.l.b16 %v3297
        %v3369 = vunpack.c.l.b16 %v3298
        %v3370 = vunpack.c.l.b16 %v3299
        %v3371 = vunpack.c.l.b16 %v3300
        %v3372 = vunpack.c.l.b16 %v3301
        %v3373 = vpack.c.b16 %v3342, %v3341
        %v3374 = vpack.c.b16 %v3344, %v3343
        %v3375 = vpack.c.b16 %v3346, %v3345
        %v3376 = vpack.c.b16 %v3348, %v3347
        %v3377 = vpack.c.b16 %v3350, %v3349
        %v3378 = vpack.c.b16 %v3352, %v3351
        %v3379 = vpack.c.b16 %v3354, %v3353
        %v3380 = vpack.c.b16 %v3356, %v3355
        %v3381 = vpack.c.b16 %v3358, %v3357
        %v3382 = vpack.c.b16 %v3360, %v3359
        %v3383 = vpack.c.b16 %v3362, %v3361
        %v3384 = vpack.c.b16 %v3364, %v3363
        %v3385 = vpack.c.b16 %v3366, %v3365
        %v3386 = vpack.c.b16 %v3368, %v3367
        %v3387 = vpack.c.b16 %v3370, %v3369
        %v3388 = vpack.c.b16 %v3372, %v3371
        %3405 = vmatprep.subr.bf16.mxu0 0
        %3406 = vmatpush1.bf16.msra.mxu0 %v3380
        %3407 = vmatprep.subr.bf16.mxu0 0
        %3408 = vmatpush1.bf16.msra.mxu0 %v3379
        %3409 = vmatprep.subr.bf16.mxu0 0
        %3410 = vmatpush1.bf16.msra.mxu0 %v3378
        %3411 = vmatprep.subr.bf16.mxu0 0
        %3412 = vmatpush1.bf16.msra.mxu0 %v3377
        %3413 = vmatprep.subr.bf16.mxu0 0
        %3414 = vmatpush1.bf16.msra.mxu0 %v3376
        %3415 = vmatprep.subr.bf16.mxu0 0
        %3416 = vmatpush1.bf16.msra.mxu0 %v3375
        %3417 = vmatprep.subr.bf16.mxu0 0
        %3418 = vmatpush1.bf16.msra.mxu0 %v3374
        %3419 = vmatprep.subr.bf16.mxu0 0
        %3420 = vmatpush1.bf16.msra.mxu0 %v3373
        %3421 = vmatprep.subr.bf16.mxu0 0
        %3422 = vmatpush2.bf16.msra.mxu0 %v3388
        %3423 = vmatprep.subr.bf16.mxu0 0
        %3424 = vmatpush2.bf16.msra.mxu0 %v3387
        %3425 = vmatprep.subr.bf16.mxu0 0
        %3426 = vmatpush2.bf16.msra.mxu0 %v3386
        %3427 = vmatprep.subr.bf16.mxu0 0
        %3428 = vmatpush2.bf16.msra.mxu0 %v3385
        %3429 = vmatprep.subr.bf16.mxu0 0
        %3430 = vmatpush2.bf16.msra.mxu0 %v3384
        %3431 = vmatprep.subr.bf16.mxu0 0
        %3432 = vmatpush2.bf16.msra.mxu0 %v3383
        %3433 = vmatprep.subr.bf16.mxu0 0
        %3434 = vmatpush2.bf16.msra.mxu0 %v3382
        %3435 = vmatprep.subr.bf16.mxu0 0
        %3436 = vmatpush2.bf16.msra.mxu0 %v3381
        %3437 = vmatprep.mubr.bf16.mxu0 %v3269
        %3438 = vmatmul.mubr.bf16.gmra.mxu0 %v3268
        %v3439 = vpop.f32.mrf.mxu0
        %v3440 = vadd.f32 %v3307, %v3439
        %v3441 = vpop.f32.mrf.mxu0
        %v3442 = vpop.f32.mrf.mxu0
        %v3443 = vpop.f32.mrf.mxu0
        %3444 = vdwg.mxu0
        %v3445 = vadd.f32 %v3115, %v3440
        %v3446 = vld [vmem:[%s1387] sm:$0x1]
        %v3447 = vld [vmem:[%s1191] sm:$0x1]
        %3448 = vadd.xlane.f32.xlu0 %v3445
        %v3449 = vpop.xlane.xlu0 %3448
        %v3450 = vmul.f32 %v3449, %v2241
        %v3451 = vsub.f32 %v3445, %v3450
        %v3452 = vmul.f32 %v3451, %v3451
        %3453 = vadd.xlane.f32.xlu0 %v3452
        %v3454 = vpop.xlane.xlu0 %3453
        %v3455 = vmul.f32 %v3454, %v2241
        %v3456 = vadd.f32 %v3455, 1e-05
        %v3457 = vrsqrt.pop %v3456
        %v3458 = vmul.f32 %v3451, %v3457
        %v3460 = vlaneseq
        %v3461 = vshrl.u32 %v3460, 7
        %v3462 = vsub.s32 0, %v3461
        %v3463 = vrot.slane %v3446, %v3462
        %v3465 = vmul.f32 %v3458, %v3463
        %v3467 = vlaneseq
        %v3468 = vshrl.u32 %v3467, 7
        %v3469 = vsub.s32 0, %v3468
        %v3470 = vrot.slane %v3447, %v3469
        %v3472 = vadd.f32 %v3465, %v3470
        %3473 = vst [vmem:[#allocation2] sm:$0xff] %v3472
        %p3474 = scmp.eq.s32.totalorder %s68, 2
        // Predicated region
        $region185: #{tpu_custom_call.1} parent=119 // pred_check
          %p3475 = pneg %p3474
        $region186: #{tpu_custom_call.1} parent=119 // pred_check_branch
          %3477 = sbr.rel (%p3475) target = $region188
        $region187: #{tpu_custom_call.1} parent=119 // pred_region
          %v3478 = vld [vmem:[#allocation8] sm:$0x1]
          %v3480 = vlaneseq
          %v3481 = vshrl.u32 %v3480, 7
          %v3482 = vsub.s32 0, %v3481
          %v3483 = vrot.slane %v3478, %v3482
          %v3485 = vmul.f32 %v3472, %v3483
          %v3486 = vpack.c.bf16 %v3485, %v3485
          %v3487 = vld [vmem:[#allocation26] sm:$0xf]
          %v3488 = vld [vmem:[#allocation26 + $0x4] sm:$0xf]
          %v3489 = vld [vmem:[#allocation26 + $0x8] sm:$0xf]
          %v3490 = vld [vmem:[#allocation26 + $0xc] sm:$0xf]
          %v3491 = vld [vmem:[#allocation26 + $0x10] sm:$0xf]
          %v3492 = vld [vmem:[#allocation26 + $0x14] sm:$0xf]
          %v3493 = vld [vmem:[#allocation26 + $0x18] sm:$0xf]
          %v3494 = vld [vmem:[#allocation26 + $0x1c] sm:$0xf]
          %v3495 = vld [vmem:[#allocation26 + $0x20] sm:$0xf]
          %v3496 = vld [vmem:[#allocation26 + $0x24] sm:$0xf]
          %v3497 = vld [vmem:[#allocation26 + $0x28] sm:$0xf]
          %v3498 = vld [vmem:[#allocation26 + $0x2c] sm:$0xf]
          %v3499 = vld [vmem:[#allocation26 + $0x30] sm:$0xf]
          %v3500 = vld [vmem:[#allocation26 + $0x34] sm:$0xf]
          %v3501 = vld [vmem:[#allocation26 + $0x38] sm:$0xf]
          %v3502 = vld [vmem:[#allocation26 + $0x3c] sm:$0xf]
          %v3503 = vld [vmem:[%s24] sm:$0x1]
          %v3505 = vlaneseq
          %v3506 = vshrl.u32 %v3505, 7
          %v3507 = vsub.s32 0, %v3506
          %v3508 = vrot.slane %v3503, %v3507
          %v3526 = vunpack.c.l.b16 %v3487
          %v3527 = vunpack.c.l.b16 %v3488
          %v3528 = vunpack.c.l.b16 %v3489
          %v3529 = vunpack.c.l.b16 %v3490
          %v3530 = vunpack.c.l.b16 %v3491
          %v3531 = vunpack.c.l.b16 %v3492
          %v3532 = vunpack.c.l.b16 %v3493
          %v3533 = vunpack.c.l.b16 %v3494
          %v3534 = vunpack.c.l.b16 %v3495
          %v3535 = vunpack.c.l.b16 %v3496
          %v3536 = vunpack.c.l.b16 %v3497
          %v3537 = vunpack.c.l.b16 %v3498
          %v3538 = vunpack.c.l.b16 %v3499
          %v3539 = vunpack.c.l.b16 %v3500
          %v3540 = vunpack.c.l.b16 %v3501
          %v3541 = vunpack.c.l.b16 %v3502
          %v3542 = vpack.c.b16 %v3527, %v3526
          %v3543 = vpack.c.b16 %v3529, %v3528
          %v3544 = vpack.c.b16 %v3531, %v3530
          %v3545 = vpack.c.b16 %v3533, %v3532
          %v3546 = vpack.c.b16 %v3535, %v3534
          %v3547 = vpack.c.b16 %v3537, %v3536
          %v3548 = vpack.c.b16 %v3539, %v3538
          %v3549 = vpack.c.b16 %v3541, %v3540
          %3558 = vmatprep.subr.bf16.mxu0 0
          %3559 = vmatpush1.bf16.msra.mxu0 %v3549
          %3560 = vmatprep.subr.bf16.mxu0 0
          %3561 = vmatpush1.bf16.msra.mxu0 %v3548
          %3562 = vmatprep.subr.bf16.mxu0 0
          %3563 = vmatpush1.bf16.msra.mxu0 %v3547
          %3564 = vmatprep.subr.bf16.mxu0 0
          %3565 = vmatpush1.bf16.msra.mxu0 %v3546
          %3566 = vmatprep.subr.bf16.mxu0 0
          %3567 = vmatpush1.bf16.msra.mxu0 %v3545
          %3568 = vmatprep.subr.bf16.mxu0 0
          %3569 = vmatpush1.bf16.msra.mxu0 %v3544
          %3570 = vmatprep.subr.bf16.mxu0 0
          %3571 = vmatpush1.bf16.msra.mxu0 %v3543
          %3572 = vmatprep.subr.bf16.mxu0 0
          %3573 = vmatpush1.bf16.msra.mxu0 %v3542
          %3574 = vmatprep.subr.bf16.mxu0 0
          %3575 = vmatpush2.bf16.msra.mxu0 0
          %3576 = vmatprep.subr.bf16.mxu0 0
          %3577 = vmatpush2.bf16.msra.mxu0 0
          %3578 = vmatprep.subr.bf16.mxu0 0
          %3579 = vmatpush2.bf16.msra.mxu0 0
          %3580 = vmatprep.subr.bf16.mxu0 0
          %3581 = vmatpush2.bf16.msra.mxu0 0
          %3582 = vmatprep.subr.bf16.mxu0 0
          %3583 = vmatpush2.bf16.msra.mxu0 0
          %3584 = vmatprep.subr.bf16.mxu0 0
          %3585 = vmatpush2.bf16.msra.mxu0 0
          %3586 = vmatprep.subr.bf16.mxu0 0
          %3587 = vmatpush2.bf16.msra.mxu0 0
          %3588 = vmatprep.subr.bf16.mxu0 0
          %3589 = vmatpush2.bf16.msra.mxu0 0
          %3590 = vmatprep.mubr.bf16.mxu0 0
          %3591 = vmatmul.mubr.bf16.gmra.mxu0 %v3486
          %v3592 = vpop.f32.mrf.mxu0
          %v3593 = vadd.f32 %v3508, %v3592
          %v3594 = vpop.f32.mrf.mxu0
          %v3595 = vpop.f32.mrf.mxu0
          %v3596 = vpop.f32.mrf.mxu0
          %3597 = vdwg.mxu0
          %3598 = vst [vmem:[%s1365] sm:$0xff] %v3593
        $region188: #{tpu_custom_call.1} parent=119 // pred_fallthru
          _
        %s3599 = sand.u32 %s718, 1
        %s3600 = scalar_lea.sflag [#allocation5], %s3599
        %s3601 = sand.u32 %s718, 1
        %s3602 = smul.addr %s3601, 8
        %s3603 = scalar_lea.vmem [#allocation27], %s3602
        // Predicated region
        $region189: #{tpu_custom_call.1} parent=119 // pred_check
          %p3604 = pneg %p728
        $region190: #{tpu_custom_call.1} parent=119 // pred_check_branch
          %3606 = sbr.rel (%p3604) target = $region192
        $region191: #{tpu_custom_call.1} parent=119 // pred_region
          %s3608 = ssub.s32 128, 128
          %3609 = vsyncadd %s3600, %s3608
          %s3610 = smul.addr %s67, 128
          %s3611 = scalar_lea.hbm %s25, %s3610
          %s3613 = sshll.u32 %s3603, 4
          %s3614 = int_to_ptr.vmem [resolvable:$true] %s3613
          %3616 = dma.vmem_to_hbm [thread:$0]  %s3614, 128, %s3611, %s3600
        $region192: #{tpu_custom_call.1} parent=119 // pred_fallthru
          _
      $region120: #{tpu_custom_call.1} parent=5 // pred_fallthru
        _
      %p3617 = scmp.le.s32.totalorder 2, %s58
      // Predicated region
      $region193: #{tpu_custom_call.1} parent=5 // pred_check
        %p3618 = pneg %p3617
      $region194: #{tpu_custom_call.1} parent=5 // pred_check_branch
        %3620 = sbr.rel (%p3618) target = $region196
      $region195: #{tpu_custom_call.1} parent=5 // pred_region
        %s3621 = ssub.s32 %s58, 2
        // Predicated region
        $region197: #{tpu_custom_call.1} parent=195 // pred_check
          %p3622 = pneg %p734
        $region198: #{tpu_custom_call.1} parent=195 // pred_check_branch
          %3624 = sbr.rel (%p3622) target = $region200
        $region199: #{tpu_custom_call.1} parent=195 // pred_region
          %s3625 = sand.u32 %s719, 1
          %s3626 = scalar_lea.sflag [#allocation5], %s3625
          %s3627 = sand.u32 %s719, 1
          %s3628 = smul.addr %s3627, 8
          %s3629 = scalar_lea.vmem [#allocation27], %s3628
          %3630 = dma.done %s3626, 128
        $region200: #{tpu_custom_call.1} parent=195 // pred_fallthru
          _
      $region196: #{tpu_custom_call.1} parent=5 // pred_fallthru
        _
    $region6: #{tpu_custom_call.1} parent=1 // loop_footer
      %s62 = sadd.s32 1, %s58
    $region7: #{tpu_custom_call.1} parent=1 // loop_footer_branch
      %57 = sbr.rel target = $region3
    $region8: #{tpu_custom_call.1} parent=1 // loop_exit
      _
    %3631 = vsyncpa [#allocation4], 1
    %s3632 = scalar_lea.sflag [#allocation4], 1
    %3633 = vsyncpa %s3632, 1
    %3634 = vsyncpa [#allocation7], 1
    %s3635 = scalar_lea.sflag [#allocation7], 1
    %3636 = vsyncpa %s3635, 1
    %3637 = vsyncpa [#allocation10], 1
    %s3638 = scalar_lea.sflag [#allocation10], 1
    %3639 = vsyncpa %s3638, 1
    %3640 = vsyncpa [#allocation13], 1
    %s3641 = scalar_lea.sflag [#allocation13], 1
    %3642 = vsyncpa %s3641, 1
    %3643 = vsyncpa [#allocation16], 1
    %s3644 = scalar_lea.sflag [#allocation16], 1
    %3645 = vsyncpa %s3644, 1
    %3646 = vsyncpa [#allocation19], 1
    %s3647 = scalar_lea.sflag [#allocation19], 1
    %3648 = vsyncpa %s3647, 1
    %3649 = vsyncpa [#allocation22], 1
    %s3650 = scalar_lea.sflag [#allocation22], 1
    %3651 = vsyncpa %s3650, 1
    %3652 = vsyncpa [#allocation25], 1
    %s3653 = scalar_lea.sflag [#allocation25], 1
    %3654 = vsyncpa %s3653, 1
    %3655 = vsyncpa [#allocation5], 1
    %s3656 = scalar_lea.sflag [#allocation5], 1
    %3657 = vsyncpa %s3656, 1

</llo_original>
